<compile_context>
chip_gen: v5e
topology: v5e:2x2
jax: 0.10.0
libtpu: 0.0.40
codegen_flags: <defaults>
</compile_context>

<pallas_src>
import functools

import jax
import jax.numpy as jnp
from jax import lax
from jax.experimental import pallas as pl
from jax.experimental.pallas import tpu as pltpu


def _round_up(x, m):
    return ((x + m - 1) // m) * m


@functools.lru_cache(maxsize=None)
def _vmem_budget():
    # Generation-aware budget: ~48 MiB on v7x (64 MiB/TC), ~96 MiB on v5e/v6e (128 MiB).
    try:
        cap = int(pltpu.get_tpu_info().vmem_capacity_bytes)
    except Exception:
        cap = 64 * 1024 * 1024
    return max(32 * 1024 * 1024, (cap * 3) // 4)


def _mosaic_params(dim_sem, need_bytes):
    limit = int(min(_vmem_budget(), max(16 * 1024 * 1024, 2 * need_bytes)))
    return pltpu.CompilerParams(dimension_semantics=dim_sem,
                                vmem_limit_bytes=limit)


# ----------------------------- linear (MXU) ---------------------------------

def _linear_kernel(x_ref, w_ref, b_ref, o_ref, *, negative_slope):
    y = jnp.dot(x_ref[...], w_ref[...], preferred_element_type=jnp.float32)
    y = y + b_ref[...]
    if negative_slope is not None:           # MLP heads use LeakyReLU(0.1)
        y = jnp.where(y >= 0.0, y, negative_slope * y)
    o_ref[...] = y.astype(o_ref.dtype)


def _pick_tm(M, K, N_pad, out_bytes):
    budget = int(_vmem_budget() * 0.8)
    best = min(M, 8)
    for tm in (8, 16, 32, 64, 128, 256, 512):
        if tm > M:
            break
        need = 2 * tm * K * 2 + K * N_pad * 2 + 2 * tm * N_pad * out_bytes + N_pad * 4
        if need <= budget:
            best = tm
    return best


def linear(x2d, w, b, negative_slope=None, out_dtype=jnp.float32):
    """(M, K) @ (K, N) + b [+ LeakyReLU] as a tiled bf16 Pallas matmul.

    No M padding (partial last block is masked by Pallas); N is padded to a
    lane-dense multiple of 128 and sliced back if needed.
    """
    M, K = x2d.shape
    N = w.shape[1]
    N_pad = _round_up(N, 128)
    w_p = w if N_pad == N else jnp.pad(w, ((0, 0), (0, N_pad - N)))
    b_p = b if N_pad == N else jnp.pad(b, ((0, N_pad - N),))
    out_bytes = jnp.dtype(out_dtype).itemsize
    tm = _pick_tm(M, K, N_pad, out_bytes)
    need = 2 * tm * K * 2 + K * N_pad * 2 + 2 * tm * N_pad * out_bytes + N_pad * 4
    out = pl.pallas_call(
        functools.partial(_linear_kernel, negative_slope=negative_slope),
        out_shape=jax.ShapeDtypeStruct((M, N_pad), out_dtype),
        grid=(pl.cdiv(M, tm),),
        in_specs=[
            pl.BlockSpec((tm, K), lambda i: (i, 0)),
            pl.BlockSpec((K, N_pad), lambda i: (0, 0)),
            pl.BlockSpec((1, N_pad), lambda i: (0, 0)),
        ],
        out_specs=pl.BlockSpec((tm, N_pad), lambda i: (i, 0)),
        compiler_params=_mosaic_params(("parallel",), need),
    )(x2d.astype(jnp.bfloat16), w_p.astype(jnp.bfloat16),
      b_p.reshape(1, N_pad).astype(jnp.float32))
    return out if N_pad == N else out[:, :N]


# ------------------------------- BiLSTM -------------------------------------

def _bilstm_kernel(gates_ref, mask_ref, whh_ref, out_ref, h_sc, c_sc):
    """One (direction, time-block) grid step of the fused BiLSTM.

    gates_ref: (tt, B, 4*Hp) bf16  x @ W_ih^T + b for this direction, gates [i|f|g|o]
    mask_ref : (tt, B, 1)    f32   validity mask (trailing padding)
    whh_ref  : (Hp, 4*Hp)    bf16  fused recurrent weight for this direction
    out_ref  : (tt, B, Hp)   bf16  hidden states written at ORIGINAL time positions
    h_sc/c_sc: (B, Hp)       f32   carried across time blocks (reset per direction)
    """
    tt = gates_ref.shape[0]
    Hp = h_sc.shape[1]
    d = pl.program_id(0)

    @pl.when(pl.program_id(1) == 0)
    def _():
        h_sc[...] = jnp.zeros_like(h_sc)
        c_sc[...] = jnp.zeros_like(c_sc)

    start = d * (tt - 1)            # backward direction walks the block in reverse
    stride = 1 - 2 * d

    def step(tl, carry):
        tq = start + stride * tl
        h_bf = h_sc[...].astype(jnp.bfloat16)
        # single fused (B,Hp)@(Hp,4Hp) recurrent matmul per time step
        pre = jnp.dot(h_bf, whh_ref[...],
                      preferred_element_type=jnp.float32) + gates_ref[tq]
        i_g = jax.nn.sigmoid(pre[:, 0 * Hp:1 * Hp])   # lane-aligned gate slices
        f_g = jax.nn.sigmoid(pre[:, 1 * Hp:2 * Hp])
        g_g = jnp.tanh(pre[:, 2 * Hp:3 * Hp])
        o_g = jax.nn.sigmoid(pre[:, 3 * Hp:4 * Hp])
        c_new = f_g * c_sc[...] + i_g * g_g
        h_new = o_g * jnp.tanh(c_new)
        m = mask_ref[tq] > 0.0                         # (B, 1)
        c_sc[...] = jnp.where(m, c_new, c_sc[...])
        h_sc[...] = jnp.where(m, h_new, h_sc[...])
        out_ref[tq] = jnp.where(m, h_new, 0.0).astype(out_ref.dtype)
        return carry

    lax.fori_loop(0, tt, step, 0)


def _run_bilstm(gates, mask, whh, tt, Hp):
    # gates: (T_pad, B_pad, 8*Hp) bf16 ([fwd 4Hp | bwd 4Hp] on the lane axis)
    # mask : (T_pad, B_pad, 1) f32; whh: (2, Hp, 4*Hp) bf16
    T_pad, B_pad, _ = gates.shape
    nt = T_pad // tt

    def tsel(d, i):      # forward: time block i; backward: time block nt-1-i
        return (1 - d) * i + d * (nt - 1 - i)

    need = (2 * tt * B_pad * 4 * Hp * 2 + 2 * tt * B_pad * 4
            + 2 * Hp * 4 * Hp * 2 + 2 * tt * B_pad * Hp * 2
            + 2 * B_pad * Hp * 4)
    return pl.pallas_call(
        _bilstm_kernel,
        out_shape=jax.ShapeDtypeStruct((T_pad, B_pad, 2 * Hp), jnp.bfloat16),
        grid=(2, nt),
        in_specs=[
            pl.BlockSpec((tt, B_pad, 4 * Hp), lambda d, i: (tsel(d, i), 0, d)),
            pl.BlockSpec((tt, B_pad, 1), lambda d, i: (tsel(d, i), 0, 0)),
            pl.BlockSpec((None, Hp, 4 * Hp), lambda d, i: (d, 0, 0)),
        ],
        out_specs=pl.BlockSpec((tt, B_pad, Hp), lambda d, i: (tsel(d, i), 0, d)),
        scratch_shapes=[pltpu.VMEM((B_pad, Hp), jnp.float32),
                        pltpu.VMEM((B_pad, Hp), jnp.float32)],
        compiler_params=_mosaic_params(("parallel", "arbitrary"), need),
    )(gates, mask, whh)


# weight re-layout helpers (run once per forward in glue; tiny)

def _pad_rows_blocked(w, real_blocks, pad_blocks):
    """Scatter row blocks of w so each real block sits at the start of its padded block."""
    pieces, off = [], 0
    for r, p in zip(real_blocks, pad_blocks):
        piece = w[off:off + r]
        if p > r:
            piece = jnp.pad(piece, ((0, p - r), (0, 0)))
        pieces.append(piece)
        off += r
    return pieces[0] if len(pieces) == 1 else jnp.concatenate(pieces, axis=0)


def _pad_gate_cols(w, H, Hp):
    """(D, 4H) -> (D, 4*Hp): zero-pad each gate block's columns to Hp."""
    if Hp == H:
        return w
    D = w.shape[0]
    return jnp.pad(w.reshape(D, 4, H), ((0, 0), (0, 0), (0, Hp - H))).reshape(D, 4 * Hp)


def _pad_gate_bias(b, H, Hp):
    if Hp == H:
        return b
    return jnp.pad(b.reshape(4, H), ((0, 0), (0, Hp - H))).reshape(4 * Hp)


def bilstm_layer(x_tbd, mask_tb1, lyr, H, Hp, tt, in_real, in_pad):
    """x_tbd: (T_pad, B_pad, D) bf16, time-major. Returns (T_pad, B_pad, 2*Hp) bf16."""
    T_pad, B_pad, D = x_tbd.shape

    # fused fwd+bwd, gate-major input projection: one lane-dense MXU pass,
    # output layout already matches the kernel's BlockSpec (no transpose/flip/pad).
    wih_f = _pad_gate_cols(_pad_rows_blocked(lyr['wih_f'], in_real, in_pad), H, Hp)
    wih_b = _pad_gate_cols(_pad_rows_blocked(lyr['wih_b'], in_real, in_pad), H, Hp)
    wih = jnp.concatenate([wih_f, wih_b], axis=1)                       # (D, 8*Hp)
    bih = jnp.concatenate([_pad_gate_bias(lyr['b_f'], H, Hp),
                           _pad_gate_bias(lyr['b_b'], H, Hp)], axis=0)  # (8*Hp,)

    gates = linear(x_tbd.reshape(T_pad * B_pad, D), wih, bih,
                   out_dtype=jnp.bfloat16)
    gates = gates.reshape(T_pad, B_pad, 8 * Hp)

    # fused per-direction recurrent weights (Hp, 4*Hp), zero-padded so padded
    # h lanes never leak into real ones
    whh_f = jnp.pad(_pad_gate_cols(lyr['whh_f'], H, Hp), ((0, Hp - H), (0, 0)))
    whh_b = jnp.pad(_pad_gate_cols(lyr['whh_b'], H, Hp), ((0, Hp - H), (0, 0)))
    whh = jnp.stack([whh_f, whh_b], axis=0).astype(jnp.bfloat16)        # (2, Hp, 4*Hp)

    return _run_bilstm(gates, mask_tb1, whh, tt, Hp)


# --------------------------------- CRF ---------------------------------------

def _crf_logz_kernel(emit_ref, mask_ref, trans_ref, strans_ref, etrans_ref, out_ref):
    """Log-partition of a linear-chain CRF; batch on the lane axis.

    emit_ref : (Tp, L, tb) f32   emissions, time-major, labels on sublanes
    mask_ref : (Tp, 1, tb) f32   validity mask (trailing padding)
    trans    : (L, L); strans/etrans: (L, 1)
    out_ref  : (1, tb)           log Z
    """
    Tp, L, _ = emit_ref.shape

    def lse0(x):                                  # logsumexp over the label axis
        m = jnp.max(x, axis=0, keepdims=True)
        return jnp.log(jnp.sum(jnp.exp(x - m), axis=0, keepdims=True)) + m

    alpha0 = strans_ref[...] + emit_ref[0]        # (L, tb); assumes >=1 valid step

    def step(t, alpha):
        valid = mask_ref[t] > 0.0                 # (1, tb)
        cols = [lse0(alpha + trans_ref[:, n:n + 1]) for n in range(L)]
        new_alpha = jnp.concatenate(cols, axis=0) + emit_ref[t]
        return jnp.where(valid, new_alpha, alpha)

    alpha = lax.fori_loop(1, Tp, step, alpha0)
    out_ref[...] = lse0(alpha + etrans_ref[...])


def crf_loss(emit_btl, crf_mask_bt, target_bt, trans, strans, etrans):
    # forward_crf slices off the [CLS]/[SEP] positions: x[:, 1:-1], mask[:, 1:-1]
    em = emit_btl[:, 1:-1].astype(jnp.float32)                # (B, Tp, L)
    cm = crf_mask_bt[:, 1:-1].astype(jnp.float32)             # (B, Tp)
    B, Tp, L = em.shape
    tgt = target_bt.astype(jnp.int32)                         # (B, Tp)

    # gold-path score: cheap gathers in glue (no per-step MXU work in the kernel)
    emit_g = jnp.take_along_axis(em, tgt[..., None], axis=-1)[..., 0]          # (B, Tp)
    gold = jnp.sum(emit_g * cm, axis=1)
    if Tp > 1:
        gold = gold + jnp.sum(trans[tgt[:, :-1], tgt[:, 1:]] * cm[:, 1:], axis=1)
    has_any = cm[:, 0]                                        # trailing padding
    last_idx = jnp.maximum(jnp.sum(cm, axis=1).astype(jnp.int32) - 1, 0)
    last_lbl = jnp.take_along_axis(tgt, last_idx[:, None], axis=1)[:, 0]
    gold = gold + has_any * (strans[tgt[:, 0]] + etrans[last_lbl])

    # log partition via Pallas: batch padded to full 128-lane tiles, padded rows
    # are excluded from the reduction below.
    tb = 128
    B_pad = _round_up(B, tb)
    em_t = jnp.pad(em.transpose(1, 2, 0), ((0, 0), (0, 0), (0, B_pad - B)))    # (Tp, L, B_pad)
    cm_t = jnp.pad(cm.T, ((0, 0), (0, B_pad - B)))[:, None, :]                 # (Tp, 1, B_pad)
    need = (Tp * L * tb + Tp * tb + L * L + 2 * L + tb) * 4 * 2
    log_z = pl.pallas_call(
        _crf_logz_kernel,
        out_shape=jax.ShapeDtypeStruct((1, B_pad), jnp.float32),
        grid=(B_pad // tb,),
        in_specs=[
            pl.BlockSpec((Tp, L, tb), lambda b: (0, 0, b)),
            pl.BlockSpec((Tp, 1, tb), lambda b: (0, 0, b)),
            pl.BlockSpec((L, L), lambda b: (0, 0)),
            pl.BlockSpec((L, 1), lambda b: (0, 0)),
            pl.BlockSpec((L, 1), lambda b: (0, 0)),
        ],
        out_specs=pl.BlockSpec((1, tb), lambda b: (0, b)),
        compiler_params=_mosaic_params(("parallel",), need),
    )(em_t, cm_t, trans.astype(jnp.float32),
      strans.reshape(L, 1).astype(jnp.float32),
      etrans.reshape(L, 1).astype(jnp.float32))

    nll = log_z[0, :B] - gold
    # TODO(synk): exact CRF loss reduction in the reference repo is not shown; use masked batch mean.
    denom = jnp.maximum(jnp.sum(has_any), 1.0)
    return jnp.sum(nll * has_any) / denom


# ------------------------------- glue / model --------------------------------

def bigram_bert_forward(params, feed_dict, target1, target2):
    chars = feed_dict['chars']
    bert_tokens, bert_mask = feed_dict['bert']
    crf_mask = feed_dict['crf_mask']
    B, T = chars.shape
    H = params['lstm'][0]['whh_f'].shape[0]
    Hp = _round_up(H, 128)
    F = params['char_embed'].shape[1]

    B_pad = _round_up(B, 8)
    tt = min(64, _round_up(T, 8))
    T_pad = _round_up(T, tt)

    # char embedding lookup (gather = glue)
    char_e = jnp.take(params['char_embed'], chars, axis=0)              # (B, T, F)

    # BertEmbedding stand-in: token embedding + Pallas linear projection.
    # TODO(synk): the pretrained BERT transformer stack (args.base_model) has no
    # clean in-kernel equivalent here; it is replaced by embedding + projection.
    bert_e = jnp.take(params['bert_embed'], bert_tokens, axis=0)        # (B, T, Db)
    feat_e = linear(bert_e.reshape(B * T, -1), params['bert_proj_w'],
                    params['bert_proj_b'], out_dtype=jnp.bfloat16)
    feat_e = feat_e.reshape(B, T, F)

    # IndependentDropout / SharedDropout: identity at inference time.
    x = jnp.concatenate([char_e.astype(jnp.bfloat16), feat_e], axis=-1)  # (B, T, 2F)

    # time-major once; pad batch to a sublane multiple and time to the block size
    x = jnp.transpose(x, (1, 0, 2))                                      # (T, B, 2F)
    x = jnp.pad(x, ((0, T_pad - T), (0, B_pad - B), (0, 0)))

    # lens = mask.sum(1): trailing-padding mask shared by both directions
    mask_tb = jnp.pad(bert_mask.astype(jnp.float32).T,
                      ((0, T_pad - T), (0, B_pad - B)))[..., None]       # (T_pad, B_pad, 1)

    h = x
    in_real, in_pad = [2 * F], [2 * F]
    for lyr in params['lstm']:
        h = bilstm_layer(h, mask_tb, lyr, H, Hp, tt, in_real, in_pad)    # (T_pad, B_pad, 2*Hp)
        in_real, in_pad = [H, H], [Hp, Hp]

    # fused, lane-dense MLP heads (LeakyReLU 0.1); split per head afterwards
    L1 = params['mlp_w'].shape[1]
    L2 = params['mlp2_w'].shape[1]
    w_heads = jnp.concatenate([params['mlp_w'], params['mlp2_w']], axis=1)   # (2H, L1+L2)
    w_heads = _pad_rows_blocked(w_heads, [H, H], [Hp, Hp])                   # (2Hp, L1+L2)
    b_heads = jnp.concatenate([params['mlp_b'], params['mlp2_b']], axis=0)
    y = linear(h.reshape(T_pad * B_pad, 2 * Hp), w_heads, b_heads,
               negative_slope=0.1, out_dtype=jnp.float32)
    y = y.reshape(T_pad, B_pad, L1 + L2)
    x1 = jnp.transpose(y[:T, :B, :L1], (1, 0, 2))                            # (B, T, L1)
    x2 = jnp.transpose(y[:T, :B, L1:L1 + L2], (1, 0, 2))                     # (B, T, L2)

    non_stop = {'loss': crf_loss(x1, crf_mask, target1, params['crf_trans'],
                                 params['crf_strans'], params['crf_etrans'])}
    stop = {'loss': crf_loss(x2, crf_mask, target2, params['crf2_trans'],
                             params['crf2_strans'], params['crf2_etrans'])}
    # TODO(synk): viterbi decoding (do_predict=True path) is not implemented.
    return stop, non_stop


def init_params(key, n_chars, n_bert_vocab, n_bert_hidden, n_feat_embed,
                n_lstm_hidden, n_lstm_layers, n_labels, n_stop_labels):
    keys = iter(jax.random.split(key, 64))

    def norm(shape, scale=0.1):
        return (scale * jax.random.normal(next(keys), shape)).astype(jnp.float32)

    H = n_lstm_hidden
    params = {
        'char_embed': norm((n_chars, n_feat_embed)),
        'bert_embed': norm((n_bert_vocab, n_bert_hidden)),
        'bert_proj_w': norm((n_bert_hidden, n_feat_embed)),
        'bert_proj_b': norm((n_feat_embed,)),
        'mlp_w': norm((2 * H, n_labels)),
        'mlp_b': norm((n_labels,)),
        'mlp2_w': norm((2 * H, n_stop_labels)),
        'mlp2_b': norm((n_stop_labels,)),
        'crf_trans': norm((n_labels, n_labels)),
        'crf_strans': norm((n_labels,)),
        'crf_etrans': norm((n_labels,)),
        'crf2_trans': norm((n_stop_labels, n_stop_labels)),
        'crf2_strans': norm((n_stop_labels,)),
        'crf2_etrans': norm((n_stop_labels,)),
        'lstm': [],
    }
    in_dim = 2 * n_feat_embed
    for _ in range(n_lstm_layers):
        params['lstm'].append({
            'wih_f': norm((in_dim, 4 * H)),   # W_ih^T, gate order [i|f|g|o]
            'whh_f': norm((H, 4 * H)),        # W_hh^T
            'b_f': norm((4 * H,)),            # b_ih + b_hh combined
            'wih_b': norm((in_dim, 4 * H)),
            'whh_b': norm((H, 4 * H)),
            'b_b': norm((4 * H,)),
        })
        in_dim = 2 * H
    return params


if __name__ == "__main__":
    B, T = 2, 8
    n_chars, n_feat_embed = 100, 32
    n_bert_vocab, n_bert_hidden = 120, 48
    n_lstm_hidden, n_lstm_layers = 32, 2
    n_labels, n_stop_labels = 4, 2

    key = jax.random.PRNGKey(0)
    kp, kc, kb, kt1, kt2 = jax.random.split(key, 5)
    params = init_params(kp, n_chars, n_bert_vocab, n_bert_hidden, n_feat_embed,
                         n_lstm_hidden, n_lstm_layers, n_labels, n_stop_labels)

    chars = jax.random.randint(kc, (B, T), 0, n_chars, dtype=jnp.int32)
    bert_tokens = jax.random.randint(kb, (B, T), 0, n_bert_vocab, dtype=jnp.int32)
    lens = jnp.array([T, T - 2], dtype=jnp.int32)
    bert_mask = jnp.arange(T)[None, :] < lens[:, None]               # (B, T) bool
    crf_mask = bert_mask
    target1 = jax.random.randint(kt1, (B, T - 2), 0, n_labels, dtype=jnp.int32)
    target2 = jax.random.randint(kt2, (B, T - 2), 0, n_stop_labels, dtype=jnp.int32)

    feed_dict = {'chars': chars, 'bert': (bert_tokens, bert_mask),
                 'crf_mask': crf_mask}

    fwd = jax.jit(bigram_bert_forward)
    stop, non_stop = fwd(params, feed_dict, target1, target2)
    jax.block_until_ready((stop, non_stop))
    assert bool(jnp.isfinite(stop['loss'])) and bool(jnp.isfinite(non_stop['loss']))
    print("KERNEL_OK")
</pallas_src>

<mosaic_0001>
module attributes {stable_mosaic.version = 11 : i64} {
  func.func @_linear_kernel(%arg0: i32, %arg1: memref<16x48xbf16, #tpu.memory_space<vmem>>, %arg2: memref<48x128xbf16, #tpu.memory_space<vmem>>, %arg3: memref<1x128xf32, #tpu.memory_space<vmem>>, %arg4: memref<16x128xbf16, #tpu.memory_space<vmem>>) attributes {dimension_semantics = [#tpu.dimension_semantics<parallel>], iteration_bounds = array<i64: 1>, scalar_prefetch = 0 : i64, scratch_operands = 0 : i64, tpu.core_type = #tpu.core_type<tc>, window_params = [{transform_indices = @transform_0, window_bounds = array<i64: 16, 48>}, {pipeline_mode = #tpu.pipeline_mode<synchronous>, transform_indices = @transform_1, window_bounds = array<i64: 48, 128>}, {pipeline_mode = #tpu.pipeline_mode<synchronous>, transform_indices = @transform_2, window_bounds = array<i64: 1, 128>}, {transform_indices = @transform_3, window_bounds = array<i64: 16, 128>}]} {
    %c0 = arith.constant 0 : index
    %c0_0 = arith.constant 0 : index
    %0 = vector.load %arg1[%c0, %c0_0] : memref<16x48xbf16, #tpu.memory_space<vmem>>, vector<16x48xbf16>
    %c0_1 = arith.constant 0 : index
    %c0_2 = arith.constant 0 : index
    %1 = vector.load %arg2[%c0_1, %c0_2] : memref<48x128xbf16, #tpu.memory_space<vmem>>, vector<48x128xbf16>
    %cst = arith.constant dense<0.000000e+00> : vector<16x128xf32>
    %2 = tpu.matmul %0, %1, %cst {dimension_numbers = #tpu.dot_dimension_numbers<[1], [0], [0], [1], [0, 0, 1, 1], [], []>} : vector<16x48xbf16>, vector<48x128xbf16>, vector<16x128xf32> -> vector<16x128xf32>
    %c0_3 = arith.constant 0 : index
    %c0_4 = arith.constant 0 : index
    %3 = vector.load %arg3[%c0_3, %c0_4] : memref<1x128xf32, #tpu.memory_space<vmem>>, vector<1x128xf32>
    %4 = vector.broadcast %3 : vector<1x128xf32> to vector<16x128xf32>
    %5 = arith.addf %2, %4 : vector<16x128xf32>
    %6 = arith.truncf %5 : vector<16x128xf32> to vector<16x128xbf16>
    %c0_5 = arith.constant 0 : index
    %c0_6 = arith.constant 0 : index
    %7 = vector.load %arg4[%c0_5, %c0_6] : memref<16x128xbf16, #tpu.memory_space<vmem>>, vector<16x128xbf16>
    tpu.vector_store %arg4[%c0_5, %c0_6], %6 {strides = array<i32>} : memref<16x128xbf16, #tpu.memory_space<vmem>>, vector<16x128xbf16>,
    return
  }
  func.func @transform_0(%arg0: i32) -> (i32, i32) {
    %c0_i32 = arith.constant 0 : i32
    %c0_i32_0 = arith.constant 0 : i32
    return %arg0, %c0_i32 : i32, i32
  }
  func.func @transform_1(%arg0: i32) -> (i32, i32) {
    %c0_i32 = arith.constant 0 : i32
    %c0_i32_0 = arith.constant 0 : i32
    %c0_i32_1 = arith.constant 0 : i32
    return %c0_i32, %c0_i32_0 : i32, i32
  }
  func.func @transform_2(%arg0: i32) -> (i32, i32) {
    %c0_i32 = arith.constant 0 : i32
    %c0_i32_0 = arith.constant 0 : i32
    %c0_i32_1 = arith.constant 0 : i32
    return %c0_i32, %c0_i32_0 : i32, i32
  }
  func.func @transform_3(%arg0: i32) -> (i32, i32) {
    %c0_i32 = arith.constant 0 : i32
    %c0_i32_0 = arith.constant 0 : i32
    return %arg0, %c0_i32 : i32, i32
  }
}

module attributes {stable_mosaic.version = 11 : i64} {
  func.func @_linear_kernel(%arg0: i32, %arg1: memref<64x64xbf16, #tpu.memory_space<vmem>>, %arg2: memref<64x1024xbf16, #tpu.memory_space<vmem>>, %arg3: memref<1x1024xf32, #tpu.memory_space<vmem>>, %arg4: memref<64x1024xbf16, #tpu.memory_space<vmem>>) attributes {dimension_semantics = [#tpu.dimension_semantics<parallel>], iteration_bounds = array<i64: 1>, scalar_prefetch = 0 : i64, scratch_operands = 0 : i64, tpu.core_type = #tpu.core_type<tc>, window_params = [{transform_indices = @transform_0, window_bounds = array<i64: 64, 64>}, {pipeline_mode = #tpu.pipeline_mode<synchronous>, transform_indices = @transform_1, window_bounds = array<i64: 64, 1024>}, {pipeline_mode = #tpu.pipeline_mode<synchronous>, transform_indices = @transform_2, window_bounds = array<i64: 1, 1024>}, {transform_indices = @transform_3, window_bounds = array<i64: 64, 1024>}]} {
    %c0 = arith.constant 0 : index
    %c0_0 = arith.constant 0 : index
    %0 = vector.load %arg1[%c0, %c0_0] : memref<64x64xbf16, #tpu.memory_space<vmem>>, vector<64x64xbf16>
    %c0_1 = arith.constant 0 : index
    %c0_2 = arith.constant 0 : index
    %1 = vector.load %arg2[%c0_1, %c0_2] : memref<64x1024xbf16, #tpu.memory_space<vmem>>, vector<64x1024xbf16>
    %cst = arith.constant dense<0.000000e+00> : vector<64x1024xf32>
    %2 = tpu.matmul %0, %1, %cst {dimension_numbers = #tpu.dot_dimension_numbers<[1], [0], [0], [1], [0, 0, 1, 1], [], []>} : vector<64x64xbf16>, vector<64x1024xbf16>, vector<64x1024xf32> -> vector<64x1024xf32>
    %c0_3 = arith.constant 0 : index
    %c0_4 = arith.constant 0 : index
    %3 = vector.load %arg3[%c0_3, %c0_4] : memref<1x1024xf32, #tpu.memory_space<vmem>>, vector<1x1024xf32>
    %4 = vector.broadcast %3 : vector<1x1024xf32> to vector<64x1024xf32>
    %5 = arith.addf %2, %4 : vector<64x1024xf32>
    %6 = arith.truncf %5 : vector<64x1024xf32> to vector<64x1024xbf16>
    %c0_5 = arith.constant 0 : index
    %c0_6 = arith.constant 0 : index
    %7 = vector.load %arg4[%c0_5, %c0_6] : memref<64x1024xbf16, #tpu.memory_space<vmem>>, vector<64x1024xbf16>
    tpu.vector_store %arg4[%c0_5, %c0_6], %6 {strides = array<i32>} : memref<64x1024xbf16, #tpu.memory_space<vmem>>, vector<64x1024xbf16>,
    return
  }
  func.func @transform_0(%arg0: i32) -> (i32, i32) {
    %c0_i32 = arith.constant 0 : i32
    %c0_i32_0 = arith.constant 0 : i32
    return %arg0, %c0_i32 : i32, i32
  }
  func.func @transform_1(%arg0: i32) -> (i32, i32) {
    %c0_i32 = arith.constant 0 : i32
    %c0_i32_0 = arith.constant 0 : i32
    %c0_i32_1 = arith.constant 0 : i32
    return %c0_i32, %c0_i32_0 : i32, i32
  }
  func.func @transform_2(%arg0: i32) -> (i32, i32) {
    %c0_i32 = arith.constant 0 : i32
    %c0_i32_0 = arith.constant 0 : i32
    %c0_i32_1 = arith.constant 0 : i32
    return %c0_i32, %c0_i32_0 : i32, i32
  }
  func.func @transform_3(%arg0: i32) -> (i32, i32) {
    %c0_i32 = arith.constant 0 : i32
    %c0_i32_0 = arith.constant 0 : i32
    return %arg0, %c0_i32 : i32, i32
  }
}

module attributes {stable_mosaic.version = 11 : i64} {
  func.func @_bilstm_kernel(%arg0: i32, %arg1: i32, %arg2: memref<8x8x512xbf16, #tpu.memory_space<vmem>>, %arg3: memref<8x8x1xf32, #tpu.memory_space<vmem>>, %arg4: memref<1x128x512xbf16, #tpu.memory_space<vmem>>, %arg5: memref<8x8x128xbf16, #tpu.memory_space<vmem>>, %arg6: memref<8x128xf32, #tpu.memory_space<vmem>>, %arg7: memref<8x128xf32, #tpu.memory_space<vmem>>) attributes {dimension_semantics = [#tpu.dimension_semantics<parallel>, #tpu.dimension_semantics<arbitrary>], iteration_bounds = array<i64: 2, 1>, scalar_prefetch = 0 : i64, scratch_operands = 2 : i64, tpu.core_type = #tpu.core_type<tc>, window_params = [{transform_indices = @transform_0, window_bounds = array<i64: 8, 8, 512>}, {transform_indices = @transform_1, window_bounds = array<i64: 8, 8, 1>}, {transform_indices = @transform_2, window_bounds = array<i64: 1, 128, 512>}, {transform_indices = @transform_3, window_bounds = array<i64: 8, 8, 128>}]} {
    %c0_i32 = arith.constant 0 : i32
    %0 = arith.cmpi eq, %arg1, %c0_i32 : i32
    %1 = arith.extui %0 : i1 to i32
    %c0_i32_0 = arith.constant 0 : i32
    %2 = arith.cmpi ne, %1, %c0_i32_0 : i32
    scf.if %2 {
      %cst = arith.constant 0.000000e+00 : f32
      %7 = vector.broadcast %cst : f32 to vector<8x128xf32>
      %c0 = arith.constant 0 : index
      %c0_4 = arith.constant 0 : index
      %8 = vector.load %arg6[%c0, %c0_4] : memref<8x128xf32, #tpu.memory_space<vmem>>, vector<8x128xf32>
      tpu.vector_store %arg6[%c0, %c0_4], %7 {strides = array<i32>} : memref<8x128xf32, #tpu.memory_space<vmem>>, vector<8x128xf32>,
      %cst_5 = arith.constant 0.000000e+00 : f32
      %9 = vector.broadcast %cst_5 : f32 to vector<8x128xf32>
      %c0_6 = arith.constant 0 : index
      %c0_7 = arith.constant 0 : index
      %10 = vector.load %arg7[%c0_6, %c0_7] : memref<8x128xf32, #tpu.memory_space<vmem>>, vector<8x128xf32>
      tpu.vector_store %arg7[%c0_6, %c0_7], %9 {strides = array<i32>} : memref<8x128xf32, #tpu.memory_space<vmem>>, vector<8x128xf32>,
    } else {
    }
    %c7_i32 = arith.constant 7 : i32
    %3 = arith.muli %arg0, %c7_i32 : i32
    %c2_i32 = arith.constant 2 : i32
    %4 = arith.muli %c2_i32, %arg0 : i32
    %c1_i32 = arith.constant 1 : i32
    %5 = arith.subi %c1_i32, %4 : i32
    %c0_i32_1 = arith.constant 0 : i32
    %c8_i32 = arith.constant 8 : i32
    %6 = arith.addi %c0_i32_1, %c8_i32 : i32
    %c1_i32_2 = arith.constant 1 : i32
    scf.for %arg8 = %c0_i32_1 to %6 step %c1_i32_2  : i32 {
      %7 = arith.muli %5, %arg8 : i32
      %8 = arith.addi %3, %7 : i32
      %c0 = arith.constant 0 : index
      %c0_4 = arith.constant 0 : index
      %9 = vector.load %arg6[%c0, %c0_4] : memref<8x128xf32, #tpu.memory_space<vmem>>, vector<8x128xf32>
      %10 = arith.truncf %9 : vector<8x128xf32> to vector<8x128xbf16>
      %c0_5 = arith.constant 0 : index
      %c0_6 = arith.constant 0 : index
      %c0_7 = arith.constant 0 : index
      %11 = vector.load %arg4[%c0_5, %c0_6, %c0_7] : memref<1x128x512xbf16, #tpu.memory_space<vmem>>, vector<1x128x512xbf16>
      %12 = vector.shape_cast %11 : vector<1x128x512xbf16> to vector<128x512xbf16>
      %cst = arith.constant dense<0.000000e+00> : vector<8x512xf32>
      %13 = tpu.matmul %10, %12, %cst {dimension_numbers = #tpu.dot_dimension_numbers<[1], [0], [0], [1], [0, 0, 1, 1], [], []>} : vector<8x128xbf16>, vector<128x512xbf16>, vector<8x512xf32> -> vector<8x512xf32>
      %14 = arith.index_cast %8 : i32 to index
      %c0_8 = arith.constant 0 : index
      %c0_9 = arith.constant 0 : index
      %15 = vector.load %arg2[%14, %c0_8, %c0_9] : memref<8x8x512xbf16, #tpu.memory_space<vmem>>, vector<1x8x512xbf16>
      %16 = vector.shape_cast %15 : vector<1x8x512xbf16> to vector<8x512xbf16>
      %17 = arith.extf %16 : vector<8x512xbf16> to vector<8x512xf32>
      %18 = arith.addf %13, %17 : vector<8x512xf32>
      %19 = vector.extract_strided_slice %18 {offsets = [0, 0], sizes = [8, 128], strides = [1, 1]} : vector<8x512xf32> to vector<8x128xf32>
      %20 = arith.negf %19 : vector<8x128xf32>
      %21 = math.exp %20 : vector<8x128xf32>
      %cst_10 = arith.constant 1.000000e+00 : f32
      %22 = vector.broadcast %cst_10 : f32 to vector<8x128xf32>
      %23 = arith.addf %22, %21 : vector<8x128xf32>
      %24 = arith.divf %22, %23 : vector<8x128xf32>
      %25 = vector.extract_strided_slice %18 {offsets = [0, 128], sizes = [8, 128], strides = [1, 1]} : vector<8x512xf32> to vector<8x128xf32>
      %26 = arith.negf %25 : vector<8x128xf32>
      %27 = math.exp %26 : vector<8x128xf32>
      %cst_11 = arith.constant 1.000000e+00 : f32
      %28 = vector.broadcast %cst_11 : f32 to vector<8x128xf32>
      %29 = arith.addf %28, %27 : vector<8x128xf32>
      %30 = arith.divf %28, %29 : vector<8x128xf32>
      %31 = vector.extract_strided_slice %18 {offsets = [0, 256], sizes = [8, 128], strides = [1, 1]} : vector<8x512xf32> to vector<8x128xf32>
      %32 = math.tanh %31 : vector<8x128xf32>
      %33 = vector.extract_strided_slice %18 {offsets = [0, 384], sizes = [8, 128], strides = [1, 1]} : vector<8x512xf32> to vector<8x128xf32>
      %34 = arith.negf %33 : vector<8x128xf32>
      %35 = math.exp %34 : vector<8x128xf32>
      %cst_12 = arith.constant 1.000000e+00 : f32
      %36 = vector.broadcast %cst_12 : f32 to vector<8x128xf32>
      %37 = arith.addf %36, %35 : vector<8x128xf32>
      %38 = arith.divf %36, %37 : vector<8x128xf32>
      %c0_13 = arith.constant 0 : index
      %c0_14 = arith.constant 0 : index
      %39 = vector.load %arg7[%c0_13, %c0_14] : memref<8x128xf32, #tpu.memory_space<vmem>>, vector<8x128xf32>
      %40 = arith.mulf %30, %39 : vector<8x128xf32>
      %41 = arith.mulf %24, %32 : vector<8x128xf32>
      %42 = arith.addf %40, %41 : vector<8x128xf32>
      %43 = math.tanh %42 : vector<8x128xf32>
      %44 = arith.mulf %38, %43 : vector<8x128xf32>
      %45 = arith.index_cast %8 : i32 to index
      %c0_15 = arith.constant 0 : index
      %c0_16 = arith.constant 0 : index
      %46 = vector.load %arg3[%45, %c0_15, %c0_16] : memref<8x8x1xf32, #tpu.memory_space<vmem>>, vector<1x8x1xf32>
      %47 = vector.shape_cast %46 : vector<1x8x1xf32> to vector<8x1xf32>
      %cst_17 = arith.constant 0.000000e+00 : f32
      %48 = vector.broadcast %cst_17 : f32 to vector<8x1xf32>
      %49 = arith.cmpf ogt, %47, %48 : vector<8x1xf32>
      %c0_18 = arith.constant 0 : index
      %c0_19 = arith.constant 0 : index
      %50 = vector.load %arg7[%c0_18, %c0_19] : memref<8x128xf32, #tpu.memory_space<vmem>>, vector<8x128xf32>
      %51 = vector.shape_cast %49 : vector<8x1xi1> to vector<8x1xi1>
      %52 = vector.broadcast %51 : vector<8x1xi1> to vector<8x128xi1>
      %53 = arith.select %52, %42, %50 : vector<8x128xi1>, vector<8x128xf32>
      %c0_20 = arith.constant 0 : index
      %c0_21 = arith.constant 0 : index
      %54 = vector.load %arg7[%c0_20, %c0_21] : memref<8x128xf32, #tpu.memory_space<vmem>>, vector<8x128xf32>
      tpu.vector_store %arg7[%c0_20, %c0_21], %53 {strides = array<i32>} : memref<8x128xf32, #tpu.memory_space<vmem>>, vector<8x128xf32>,
      %c0_22 = arith.constant 0 : index
      %c0_23 = arith.constant 0 : index
      %55 = vector.load %arg6[%c0_22, %c0_23] : memref<8x128xf32, #tpu.memory_space<vmem>>, vector<8x128xf32>
      %56 = vector.shape_cast %49 : vector<8x1xi1> to vector<8x1xi1>
      %57 = vector.broadcast %56 : vector<8x1xi1> to vector<8x128xi1>
      %58 = arith.select %57, %44, %55 : vector<8x128xi1>, vector<8x128xf32>
      %c0_24 = arith.constant 0 : index
      %c0_25 = arith.constant 0 : index
      %59 = vector.load %arg6[%c0_24, %c0_25] : memref<8x128xf32, #tpu.memory_space<vmem>>, vector<8x128xf32>
      tpu.vector_store %arg6[%c0_24, %c0_25], %58 {strides = array<i32>} : memref<8x128xf32, #tpu.memory_space<vmem>>, vector<8x128xf32>,
      %cst_26 = arith.constant 0.000000e+00 : f32
      %60 = vector.shape_cast %49 : vector<8x1xi1> to vector<8x1xi1>
      %61 = vector.broadcast %60 : vector<8x1xi1> to vector<8x128xi1>
      %62 = vector.broadcast %cst_26 : f32 to vector<8x128xf32>
      %63 = arith.select %61, %44, %62 : vector<8x128xi1>, vector<8x128xf32>
      %64 = arith.truncf %63 : vector<8x128xf32> to vector<8x128xbf16>
      %65 = arith.index_cast %8 : i32 to index
      %c0_27 = arith.constant 0 : index
      %c0_28 = arith.constant 0 : index
      %66 = vector.load %arg5[%65, %c0_27, %c0_28] : memref<8x8x128xbf16, #tpu.memory_space<vmem>>, vector<1x8x128xbf16>
      %67 = vector.shape_cast %66 : vector<1x8x128xbf16> to vector<8x128xbf16>
      %68 = vector.shape_cast %64 : vector<8x128xbf16> to vector<1x8x128xbf16>
      tpu.vector_store %arg5[%65, %c0_27, %c0_28], %68 {strides = array<i32>} : memref<8x8x128xbf16, #tpu.memory_space<vmem>>, vector<1x8x128xbf16>,
    }
    %c8_i32_3 = arith.constant 8 : i32
    return
  }
  func.func @transform_0(%arg0: i32, %arg1: i32) -> (i32, i32, i32) {
    %c1_i32 = arith.constant 1 : i32
    %0 = arith.subi %c1_i32, %arg0 : i32
    %1 = arith.muli %0, %arg1 : i32
    %c0_i32 = arith.constant 0 : i32
    %2 = arith.subi %c0_i32, %arg1 : i32
    %3 = arith.muli %arg0, %2 : i32
    %4 = arith.addi %1, %3 : i32
    %c0_i32_0 = arith.constant 0 : i32
    %c0_i32_1 = arith.constant 0 : i32
    return %4, %c0_i32_0, %arg0 : i32, i32, i32
  }
  func.func @transform_1(%arg0: i32, %arg1: i32) -> (i32, i32, i32) {
    %c1_i32 = arith.constant 1 : i32
    %0 = arith.subi %c1_i32, %arg0 : i32
    %1 = arith.muli %0, %arg1 : i32
    %c0_i32 = arith.constant 0 : i32
    %2 = arith.subi %c0_i32, %arg1 : i32
    %3 = arith.muli %arg0, %2 : i32
    %4 = arith.addi %1, %3 : i32
    %c0_i32_0 = arith.constant 0 : i32
    %c0_i32_1 = arith.constant 0 : i32
    %c0_i32_2 = arith.constant 0 : i32
    return %4, %c0_i32_0, %c0_i32_1 : i32, i32, i32
  }
  func.func @transform_2(%arg0: i32, %arg1: i32) -> (i32, i32, i32) {
    %c0_i32 = arith.constant 0 : i32
    %c0_i32_0 = arith.constant 0 : i32
    %c0_i32_1 = arith.constant 0 : i32
    return %arg0, %c0_i32, %c0_i32_0 : i32, i32, i32
  }
  func.func @transform_3(%arg0: i32, %arg1: i32) -> (i32, i32, i32) {
    %c1_i32 = arith.constant 1 : i32
    %0 = arith.subi %c1_i32, %arg0 : i32
    %1 = arith.muli %0, %arg1 : i32
    %c0_i32 = arith.constant 0 : i32
    %2 = arith.subi %c0_i32, %arg1 : i32
    %3 = arith.muli %arg0, %2 : i32
    %4 = arith.addi %1, %3 : i32
    %c0_i32_0 = arith.constant 0 : i32
    %c0_i32_1 = arith.constant 0 : i32
    return %4, %c0_i32_0, %arg0 : i32, i32, i32
  }
}

module attributes {stable_mosaic.version = 11 : i64} {
  func.func @_linear_kernel(%arg0: i32, %arg1: memref<64x256xbf16, #tpu.memory_space<vmem>>, %arg2: memref<256x1024xbf16, #tpu.memory_space<vmem>>, %arg3: memref<1x1024xf32, #tpu.memory_space<vmem>>, %arg4: memref<64x1024xbf16, #tpu.memory_space<vmem>>) attributes {dimension_semantics = [#tpu.dimension_semantics<parallel>], iteration_bounds = array<i64: 1>, scalar_prefetch = 0 : i64, scratch_operands = 0 : i64, tpu.core_type = #tpu.core_type<tc>, window_params = [{transform_indices = @transform_0, window_bounds = array<i64: 64, 256>}, {pipeline_mode = #tpu.pipeline_mode<synchronous>, transform_indices = @transform_1, window_bounds = array<i64: 256, 1024>}, {pipeline_mode = #tpu.pipeline_mode<synchronous>, transform_indices = @transform_2, window_bounds = array<i64: 1, 1024>}, {transform_indices = @transform_3, window_bounds = array<i64: 64, 1024>}]} {
    %c0 = arith.constant 0 : index
    %c0_0 = arith.constant 0 : index
    %0 = vector.load %arg1[%c0, %c0_0] : memref<64x256xbf16, #tpu.memory_space<vmem>>, vector<64x256xbf16>
    %c0_1 = arith.constant 0 : index
    %c0_2 = arith.constant 0 : index
    %1 = vector.load %arg2[%c0_1, %c0_2] : memref<256x1024xbf16, #tpu.memory_space<vmem>>, vector<256x1024xbf16>
    %cst = arith.constant dense<0.000000e+00> : vector<64x1024xf32>
    %2 = tpu.matmul %0, %1, %cst {dimension_numbers = #tpu.dot_dimension_numbers<[1], [0], [0], [1], [0, 0, 1, 1], [], []>} : vector<64x256xbf16>, vector<256x1024xbf16>, vector<64x1024xf32> -> vector<64x1024xf32>
    %c0_3 = arith.constant 0 : index
    %c0_4 = arith.constant 0 : index
    %3 = vector.load %arg3[%c0_3, %c0_4] : memref<1x1024xf32, #tpu.memory_space<vmem>>, vector<1x1024xf32>
    %4 = vector.broadcast %3 : vector<1x1024xf32> to vector<64x1024xf32>
    %5 = arith.addf %2, %4 : vector<64x1024xf32>
    %6 = arith.truncf %5 : vector<64x1024xf32> to vector<64x1024xbf16>
    %c0_5 = arith.constant 0 : index
    %c0_6 = arith.constant 0 : index
    %7 = vector.load %arg4[%c0_5, %c0_6] : memref<64x1024xbf16, #tpu.memory_space<vmem>>, vector<64x1024xbf16>
    tpu.vector_store %arg4[%c0_5, %c0_6], %6 {strides = array<i32>} : memref<64x1024xbf16, #tpu.memory_space<vmem>>, vector<64x1024xbf16>,
    return
  }
  func.func @transform_0(%arg0: i32) -> (i32, i32) {
    %c0_i32 = arith.constant 0 : i32
    %c0_i32_0 = arith.constant 0 : i32
    return %arg0, %c0_i32 : i32, i32
  }
  func.func @transform_1(%arg0: i32) -> (i32, i32) {
    %c0_i32 = arith.constant 0 : i32
    %c0_i32_0 = arith.constant 0 : i32
    %c0_i32_1 = arith.constant 0 : i32
    return %c0_i32, %c0_i32_0 : i32, i32
  }
  func.func @transform_2(%arg0: i32) -> (i32, i32) {
    %c0_i32 = arith.constant 0 : i32
    %c0_i32_0 = arith.constant 0 : i32
    %c0_i32_1 = arith.constant 0 : i32
    return %c0_i32, %c0_i32_0 : i32, i32
  }
  func.func @transform_3(%arg0: i32) -> (i32, i32) {
    %c0_i32 = arith.constant 0 : i32
    %c0_i32_0 = arith.constant 0 : i32
    return %arg0, %c0_i32 : i32, i32
  }
}

module attributes {stable_mosaic.version = 11 : i64} {
  func.func @_linear_kernel(%arg0: i32, %arg1: memref<64x256xbf16, #tpu.memory_space<vmem>>, %arg2: memref<256x128xbf16, #tpu.memory_space<vmem>>, %arg3: memref<1x128xf32, #tpu.memory_space<vmem>>, %arg4: memref<64x128xf32, #tpu.memory_space<vmem>>) attributes {dimension_semantics = [#tpu.dimension_semantics<parallel>], iteration_bounds = array<i64: 1>, scalar_prefetch = 0 : i64, scratch_operands = 0 : i64, tpu.core_type = #tpu.core_type<tc>, window_params = [{transform_indices = @transform_0, window_bounds = array<i64: 64, 256>}, {pipeline_mode = #tpu.pipeline_mode<synchronous>, transform_indices = @transform_1, window_bounds = array<i64: 256, 128>}, {pipeline_mode = #tpu.pipeline_mode<synchronous>, transform_indices = @transform_2, window_bounds = array<i64: 1, 128>}, {transform_indices = @transform_3, window_bounds = array<i64: 64, 128>}]} {
    %c0 = arith.constant 0 : index
    %c0_0 = arith.constant 0 : index
    %0 = vector.load %arg1[%c0, %c0_0] : memref<64x256xbf16, #tpu.memory_space<vmem>>, vector<64x256xbf16>
    %c0_1 = arith.constant 0 : index
    %c0_2 = arith.constant 0 : index
    %1 = vector.load %arg2[%c0_1, %c0_2] : memref<256x128xbf16, #tpu.memory_space<vmem>>, vector<256x128xbf16>
    %cst = arith.constant dense<0.000000e+00> : vector<64x128xf32>
    %2 = tpu.matmul %0, %1, %cst {dimension_numbers = #tpu.dot_dimension_numbers<[1], [0], [0], [1], [0, 0, 1, 1], [], []>} : vector<64x256xbf16>, vector<256x128xbf16>, vector<64x128xf32> -> vector<64x128xf32>
    %c0_3 = arith.constant 0 : index
    %c0_4 = arith.constant 0 : index
    %3 = vector.load %arg3[%c0_3, %c0_4] : memref<1x128xf32, #tpu.memory_space<vmem>>, vector<1x128xf32>
    %4 = vector.broadcast %3 : vector<1x128xf32> to vector<64x128xf32>
    %5 = arith.addf %2, %4 : vector<64x128xf32>
    %cst_5 = arith.constant 0.000000e+00 : f32
    %6 = vector.broadcast %cst_5 : f32 to vector<64x128xf32>
    %7 = arith.cmpf oge, %5, %6 : vector<64x128xf32>
    %cst_6 = arith.constant 1.000000e-01 : f32
    %8 = vector.broadcast %cst_6 : f32 to vector<64x128xf32>
    %9 = arith.mulf %8, %5 : vector<64x128xf32>
    %10 = arith.select %7, %5, %9 : vector<64x128xi1>, vector<64x128xf32>
    %c0_7 = arith.constant 0 : index
    %c0_8 = arith.constant 0 : index
    %11 = vector.load %arg4[%c0_7, %c0_8] : memref<64x128xf32, #tpu.memory_space<vmem>>, vector<64x128xf32>
    tpu.vector_store %arg4[%c0_7, %c0_8], %10 {strides = array<i32>} : memref<64x128xf32, #tpu.memory_space<vmem>>, vector<64x128xf32>,
    return
  }
  func.func @transform_0(%arg0: i32) -> (i32, i32) {
    %c0_i32 = arith.constant 0 : i32
    %c0_i32_0 = arith.constant 0 : i32
    return %arg0, %c0_i32 : i32, i32
  }
  func.func @transform_1(%arg0: i32) -> (i32, i32) {
    %c0_i32 = arith.constant 0 : i32
    %c0_i32_0 = arith.constant 0 : i32
    %c0_i32_1 = arith.constant 0 : i32
    return %c0_i32, %c0_i32_0 : i32, i32
  }
  func.func @transform_2(%arg0: i32) -> (i32, i32) {
    %c0_i32 = arith.constant 0 : i32
    %c0_i32_0 = arith.constant 0 : i32
    %c0_i32_1 = arith.constant 0 : i32
    return %c0_i32, %c0_i32_0 : i32, i32
  }
  func.func @transform_3(%arg0: i32) -> (i32, i32) {
    %c0_i32 = arith.constant 0 : i32
    %c0_i32_0 = arith.constant 0 : i32
    return %arg0, %c0_i32 : i32, i32
  }
}

module attributes {stable_mosaic.version = 11 : i64} {
  func.func @_crf_logz_kernel(%arg0: i32, %arg1: memref<6x4x128xf32, #tpu.memory_space<vmem>>, %arg2: memref<6x1x128xf32, #tpu.memory_space<vmem>>, %arg3: memref<4x4xf32, #tpu.memory_space<vmem>>, %arg4: memref<4x1xf32, #tpu.memory_space<vmem>>, %arg5: memref<4x1xf32, #tpu.memory_space<vmem>>, %arg6: memref<1x128xf32, #tpu.memory_space<vmem>>) attributes {dimension_semantics = [#tpu.dimension_semantics<parallel>], iteration_bounds = array<i64: 1>, scalar_prefetch = 0 : i64, scratch_operands = 0 : i64, tpu.core_type = #tpu.core_type<tc>, window_params = [{transform_indices = @transform_0, window_bounds = array<i64: 6, 4, 128>}, {transform_indices = @transform_1, window_bounds = array<i64: 6, 1, 128>}, {pipeline_mode = #tpu.pipeline_mode<synchronous>, transform_indices = @transform_2, window_bounds = array<i64: 4, 4>}, {pipeline_mode = #tpu.pipeline_mode<synchronous>, transform_indices = @transform_3, window_bounds = array<i64: 4, 1>}, {pipeline_mode = #tpu.pipeline_mode<synchronous>, transform_indices = @transform_4, window_bounds = array<i64: 4, 1>}, {transform_indices = @transform_5, window_bounds = array<i64: 1, 128>}]} {
    %c0 = arith.constant 0 : index
    %c0_0 = arith.constant 0 : index
    %0 = vector.load %arg4[%c0, %c0_0] : memref<4x1xf32, #tpu.memory_space<vmem>>, vector<4x1xf32>
    %c0_1 = arith.constant 0 : index
    %c0_2 = arith.constant 0 : index
    %c0_3 = arith.constant 0 : index
    %1 = vector.load %arg1[%c0_1, %c0_2, %c0_3] : memref<6x4x128xf32, #tpu.memory_space<vmem>>, vector<1x4x128xf32>
    %2 = vector.shape_cast %1 : vector<1x4x128xf32> to vector<4x128xf32>
    %3 = vector.broadcast %0 : vector<4x1xf32> to vector<4x128xf32>
    %4 = arith.addf %3, %2 : vector<4x128xf32>
    %c1_i32 = arith.constant 1 : i32
    %c5_i32 = arith.constant 5 : i32
    %5 = arith.addi %c1_i32, %c5_i32 : i32
    %c1_i32_4 = arith.constant 1 : i32
    %6 = scf.for %arg7 = %c1_i32 to %5 step %c1_i32_4 iter_args(%arg8 = %4) -> (vector<4x128xf32>)  : i32 {
      %20 = arith.index_cast %arg7 : i32 to index
      %c0_11 = arith.constant 0 : index
      %c0_12 = arith.constant 0 : index
      %21 = vector.load %arg2[%20, %c0_11, %c0_12] : memref<6x1x128xf32, #tpu.memory_space<vmem>>, vector<1x1x128xf32>
      %22 = vector.shape_cast %21 : vector<1x1x128xf32> to vector<1x128xf32>
      %cst_13 = arith.constant 0.000000e+00 : f32
      %23 = vector.broadcast %cst_13 : f32 to vector<1x128xf32>
      %24 = arith.cmpf ogt, %22, %23 : vector<1x128xf32>
      %c0_14 = arith.constant 0 : index
      %c0_15 = arith.constant 0 : index
      %25 = vector.load %arg3[%c0_14, %c0_15] : memref<4x4xf32, #tpu.memory_space<vmem>>, vector<4x1xf32>
      %26 = vector.broadcast %25 : vector<4x1xf32> to vector<4x128xf32>
      %27 = arith.addf %arg8, %26 : vector<4x128xf32>
      %cst_16 = arith.constant dense<0xFF800000> : vector<128xf32>
      %28 = vector.multi_reduction <maximumf>, %27, %cst_16 [0] : vector<4x128xf32> to vector<128xf32>
      %29 = vector.shape_cast %28 : vector<128xf32> to vector<1x128xf32>
      %30 = vector.broadcast %29 : vector<1x128xf32> to vector<4x128xf32>
      %31 = arith.subf %27, %30 : vector<4x128xf32>
      %32 = math.exp %31 : vector<4x128xf32>
      %cst_17 = arith.constant dense<0.000000e+00> : vector<128xf32>
      %33 = vector.multi_reduction <add>, %32, %cst_17 [0] : vector<4x128xf32> to vector<128xf32>
      %34 = vector.shape_cast %33 : vector<128xf32> to vector<1x128xf32>
      %35 = math.log %34 : vector<1x128xf32>
      %36 = arith.addf %35, %29 : vector<1x128xf32>
      %c0_18 = arith.constant 0 : index
      %c1 = arith.constant 1 : index
      %37 = vector.load %arg3[%c0_18, %c1] : memref<4x4xf32, #tpu.memory_space<vmem>>, vector<4x1xf32>
      %38 = vector.broadcast %37 : vector<4x1xf32> to vector<4x128xf32>
      %39 = arith.addf %arg8, %38 : vector<4x128xf32>
      %cst_19 = arith.constant dense<0xFF800000> : vector<128xf32>
      %40 = vector.multi_reduction <maximumf>, %39, %cst_19 [0] : vector<4x128xf32> to vector<128xf32>
      %41 = vector.shape_cast %40 : vector<128xf32> to vector<1x128xf32>
      %42 = vector.broadcast %41 : vector<1x128xf32> to vector<4x128xf32>
      %43 = arith.subf %39, %42 : vector<4x128xf32>
      %44 = math.exp %43 : vector<4x128xf32>
      %cst_20 = arith.constant dense<0.000000e+00> : vector<128xf32>
      %45 = vector.multi_reduction <add>, %44, %cst_20 [0] : vector<4x128xf32> to vector<128xf32>
      %46 = vector.shape_cast %45 : vector<128xf32> to vector<1x128xf32>
      %47 = math.log %46 : vector<1x128xf32>
      %48 = arith.addf %47, %41 : vector<1x128xf32>
      %c0_21 = arith.constant 0 : index
      %c2 = arith.constant 2 : index
      %49 = vector.load %arg3[%c0_21, %c2] : memref<4x4xf32, #tpu.memory_space<vmem>>, vector<4x1xf32>
      %50 = vector.broadcast %49 : vector<4x1xf32> to vector<4x128xf32>
      %51 = arith.addf %arg8, %50 : vector<4x128xf32>
      %cst_22 = arith.constant dense<0xFF800000> : vector<128xf32>
      %52 = vector.multi_reduction <maximumf>, %51, %cst_22 [0] : vector<4x128xf32> to vector<128xf32>
      %53 = vector.shape_cast %52 : vector<128xf32> to vector<1x128xf32>
      %54 = vector.broadcast %53 : vector<1x128xf32> to vector<4x128xf32>
      %55 = arith.subf %51, %54 : vector<4x128xf32>
      %56 = math.exp %55 : vector<4x128xf32>
      %cst_23 = arith.constant dense<0.000000e+00> : vector<128xf32>
      %57 = vector.multi_reduction <add>, %56, %cst_23 [0] : vector<4x128xf32> to vector<128xf32>
      %58 = vector.shape_cast %57 : vector<128xf32> to vector<1x128xf32>
      %59 = math.log %58 : vector<1x128xf32>
      %60 = arith.addf %59, %53 : vector<1x128xf32>
      %c0_24 = arith.constant 0 : index
      %c3 = arith.constant 3 : index
      %61 = vector.load %arg3[%c0_24, %c3] : memref<4x4xf32, #tpu.memory_space<vmem>>, vector<4x1xf32>
      %62 = vector.broadcast %61 : vector<4x1xf32> to vector<4x128xf32>
      %63 = arith.addf %arg8, %62 : vector<4x128xf32>
      %cst_25 = arith.constant dense<0xFF800000> : vector<128xf32>
      %64 = vector.multi_reduction <maximumf>, %63, %cst_25 [0] : vector<4x128xf32> to vector<128xf32>
      %65 = vector.shape_cast %64 : vector<128xf32> to vector<1x128xf32>
      %66 = vector.broadcast %65 : vector<1x128xf32> to vector<4x128xf32>
      %67 = arith.subf %63, %66 : vector<4x128xf32>
      %68 = math.exp %67 : vector<4x128xf32>
      %cst_26 = arith.constant dense<0.000000e+00> : vector<128xf32>
      %69 = vector.multi_reduction <add>, %68, %cst_26 [0] : vector<4x128xf32> to vector<128xf32>
      %70 = vector.shape_cast %69 : vector<128xf32> to vector<1x128xf32>
      %71 = math.log %70 : vector<1x128xf32>
      %72 = arith.addf %71, %65 : vector<1x128xf32>
      %73 = tpu.concatenate %36, %48, %60, %72 in 0 : vector<1x128xf32>, vector<1x128xf32>, vector<1x128xf32>, vector<1x128xf32> -> vector<4x128xf32>
      %74 = arith.index_cast %arg7 : i32 to index
      %c0_27 = arith.constant 0 : index
      %c0_28 = arith.constant 0 : index
      %75 = vector.load %arg1[%74, %c0_27, %c0_28] : memref<6x4x128xf32, #tpu.memory_space<vmem>>, vector<1x4x128xf32>
      %76 = vector.shape_cast %75 : vector<1x4x128xf32> to vector<4x128xf32>
      %77 = arith.addf %73, %76 : vector<4x128xf32>
      %78 = vector.shape_cast %24 : vector<1x128xi1> to vector<1x128xi1>
      %79 = vector.broadcast %78 : vector<1x128xi1> to vector<4x128xi1>
      %80 = arith.select %79, %77, %arg8 : vector<4x128xi1>, vector<4x128xf32>
      scf.yield %80 : vector<4x128xf32>
    }
    %c5_i32_5 = arith.constant 5 : i32
    %c0_6 = arith.constant 0 : index
    %c0_7 = arith.constant 0 : index
    %7 = vector.load %arg5[%c0_6, %c0_7] : memref<4x1xf32, #tpu.memory_space<vmem>>, vector<4x1xf32>
    %8 = vector.broadcast %7 : vector<4x1xf32> to vector<4x128xf32>
    %9 = arith.addf %6, %8 : vector<4x128xf32>
    %cst = arith.constant dense<0xFF800000> : vector<128xf32>
    %10 = vector.multi_reduction <maximumf>, %9, %cst [0] : vector<4x128xf32> to vector<128xf32>
    %11 = vector.shape_cast %10 : vector<128xf32> to vector<1x128xf32>
    %12 = vector.broadcast %11 : vector<1x128xf32> to vector<4x128xf32>
    %13 = arith.subf %9, %12 : vector<4x128xf32>
    %14 = math.exp %13 : vector<4x128xf32>
    %cst_8 = arith.constant dense<0.000000e+00> : vector<128xf32>
    %15 = vector.multi_reduction <add>, %14, %cst_8 [0] : vector<4x128xf32> to vector<128xf32>
    %16 = vector.shape_cast %15 : vector<128xf32> to vector<1x128xf32>
    %17 = math.log %16 : vector<1x128xf32>
    %18 = arith.addf %17, %11 : vector<1x128xf32>
    %c0_9 = arith.constant 0 : index
    %c0_10 = arith.constant 0 : index
    %19 = vector.load %arg6[%c0_9, %c0_10] : memref<1x128xf32, #tpu.memory_space<vmem>>, vector<1x128xf32>
    tpu.vector_store %arg6[%c0_9, %c0_10], %18 {strides = array<i32>} : memref<1x128xf32, #tpu.memory_space<vmem>>, vector<1x128xf32>,
    return
  }
  func.func @transform_0(%arg0: i32) -> (i32, i32, i32) {
    %c0_i32 = arith.constant 0 : i32
    %c0_i32_0 = arith.constant 0 : i32
    %c0_i32_1 = arith.constant 0 : i32
    return %c0_i32, %c0_i32_0, %arg0 : i32, i32, i32
  }
  func.func @transform_1(%arg0: i32) -> (i32, i32, i32) {
    %c0_i32 = arith.constant 0 : i32
    %c0_i32_0 = arith.constant 0 : i32
    %c0_i32_1 = arith.constant 0 : i32
    return %c0_i32, %c0_i32_0, %arg0 : i32, i32, i32
  }
  func.func @transform_2(%arg0: i32) -> (i32, i32) {
    %c0_i32 = arith.constant 0 : i32
    %c0_i32_0 = arith.constant 0 : i32
    %c0_i32_1 = arith.constant 0 : i32
    return %c0_i32, %c0_i32_0 : i32, i32
  }
  func.func @transform_3(%arg0: i32) -> (i32, i32) {
    %c0_i32 = arith.constant 0 : i32
    %c0_i32_0 = arith.constant 0 : i32
    %c0_i32_1 = arith.constant 0 : i32
    return %c0_i32, %c0_i32_0 : i32, i32
  }
  func.func @transform_4(%arg0: i32) -> (i32, i32) {
    %c0_i32 = arith.constant 0 : i32
    %c0_i32_0 = arith.constant 0 : i32
    %c0_i32_1 = arith.constant 0 : i32
    return %c0_i32, %c0_i32_0 : i32, i32
  }
  func.func @transform_5(%arg0: i32) -> (i32, i32) {
    %c0_i32 = arith.constant 0 : i32
    %c0_i32_0 = arith.constant 0 : i32
    return %c0_i32, %arg0 : i32, i32
  }
}

module attributes {stable_mosaic.version = 11 : i64} {
  func.func @_crf_logz_kernel(%arg0: i32, %arg1: memref<6x2x128xf32, #tpu.memory_space<vmem>>, %arg2: memref<6x1x128xf32, #tpu.memory_space<vmem>>, %arg3: memref<2x2xf32, #tpu.memory_space<vmem>>, %arg4: memref<2x1xf32, #tpu.memory_space<vmem>>, %arg5: memref<2x1xf32, #tpu.memory_space<vmem>>, %arg6: memref<1x128xf32, #tpu.memory_space<vmem>>) attributes {dimension_semantics = [#tpu.dimension_semantics<parallel>], iteration_bounds = array<i64: 1>, scalar_prefetch = 0 : i64, scratch_operands = 0 : i64, tpu.core_type = #tpu.core_type<tc>, window_params = [{transform_indices = @transform_0, window_bounds = array<i64: 6, 2, 128>}, {transform_indices = @transform_1, window_bounds = array<i64: 6, 1, 128>}, {pipeline_mode = #tpu.pipeline_mode<synchronous>, transform_indices = @transform_2, window_bounds = array<i64: 2, 2>}, {pipeline_mode = #tpu.pipeline_mode<synchronous>, transform_indices = @transform_3, window_bounds = array<i64: 2, 1>}, {pipeline_mode = #tpu.pipeline_mode<synchronous>, transform_indices = @transform_4, window_bounds = array<i64: 2, 1>}, {transform_indices = @transform_5, window_bounds = array<i64: 1, 128>}]} {
    %c0 = arith.constant 0 : index
    %c0_0 = arith.constant 0 : index
    %0 = vector.load %arg4[%c0, %c0_0] : memref<2x1xf32, #tpu.memory_space<vmem>>, vector<2x1xf32>
    %c0_1 = arith.constant 0 : index
    %c0_2 = arith.constant 0 : index
    %c0_3 = arith.constant 0 : index
    %1 = vector.load %arg1[%c0_1, %c0_2, %c0_3] : memref<6x2x128xf32, #tpu.memory_space<vmem>>, vector<1x2x128xf32>
    %2 = vector.shape_cast %1 : vector<1x2x128xf32> to vector<2x128xf32>
    %3 = vector.broadcast %0 : vector<2x1xf32> to vector<2x128xf32>
    %4 = arith.addf %3, %2 : vector<2x128xf32>
    %c1_i32 = arith.constant 1 : i32
    %c5_i32 = arith.constant 5 : i32
    %5 = arith.addi %c1_i32, %c5_i32 : i32
    %c1_i32_4 = arith.constant 1 : i32
    %6 = scf.for %arg7 = %c1_i32 to %5 step %c1_i32_4 iter_args(%arg8 = %4) -> (vector<2x128xf32>)  : i32 {
      %20 = arith.index_cast %arg7 : i32 to index
      %c0_11 = arith.constant 0 : index
      %c0_12 = arith.constant 0 : index
      %21 = vector.load %arg2[%20, %c0_11, %c0_12] : memref<6x1x128xf32, #tpu.memory_space<vmem>>, vector<1x1x128xf32>
      %22 = vector.shape_cast %21 : vector<1x1x128xf32> to vector<1x128xf32>
      %cst_13 = arith.constant 0.000000e+00 : f32
      %23 = vector.broadcast %cst_13 : f32 to vector<1x128xf32>
      %24 = arith.cmpf ogt, %22, %23 : vector<1x128xf32>
      %c0_14 = arith.constant 0 : index
      %c0_15 = arith.constant 0 : index
      %25 = vector.load %arg3[%c0_14, %c0_15] : memref<2x2xf32, #tpu.memory_space<vmem>>, vector<2x1xf32>
      %26 = vector.broadcast %25 : vector<2x1xf32> to vector<2x128xf32>
      %27 = arith.addf %arg8, %26 : vector<2x128xf32>
      %cst_16 = arith.constant dense<0xFF800000> : vector<128xf32>
      %28 = vector.multi_reduction <maximumf>, %27, %cst_16 [0] : vector<2x128xf32> to vector<128xf32>
      %29 = vector.shape_cast %28 : vector<128xf32> to vector<1x128xf32>
      %30 = vector.broadcast %29 : vector<1x128xf32> to vector<2x128xf32>
      %31 = arith.subf %27, %30 : vector<2x128xf32>
      %32 = math.exp %31 : vector<2x128xf32>
      %cst_17 = arith.constant dense<0.000000e+00> : vector<128xf32>
      %33 = vector.multi_reduction <add>, %32, %cst_17 [0] : vector<2x128xf32> to vector<128xf32>
      %34 = vector.shape_cast %33 : vector<128xf32> to vector<1x128xf32>
      %35 = math.log %34 : vector<1x128xf32>
      %36 = arith.addf %35, %29 : vector<1x128xf32>
      %c0_18 = arith.constant 0 : index
      %c1 = arith.constant 1 : index
      %37 = vector.load %arg3[%c0_18, %c1] : memref<2x2xf32, #tpu.memory_space<vmem>>, vector<2x1xf32>
      %38 = vector.broadcast %37 : vector<2x1xf32> to vector<2x128xf32>
      %39 = arith.addf %arg8, %38 : vector<2x128xf32>
      %cst_19 = arith.constant dense<0xFF800000> : vector<128xf32>
      %40 = vector.multi_reduction <maximumf>, %39, %cst_19 [0] : vector<2x128xf32> to vector<128xf32>
      %41 = vector.shape_cast %40 : vector<128xf32> to vector<1x128xf32>
      %42 = vector.broadcast %41 : vector<1x128xf32> to vector<2x128xf32>
      %43 = arith.subf %39, %42 : vector<2x128xf32>
      %44 = math.exp %43 : vector<2x128xf32>
      %cst_20 = arith.constant dense<0.000000e+00> : vector<128xf32>
      %45 = vector.multi_reduction <add>, %44, %cst_20 [0] : vector<2x128xf32> to vector<128xf32>
      %46 = vector.shape_cast %45 : vector<128xf32> to vector<1x128xf32>
      %47 = math.log %46 : vector<1x128xf32>
      %48 = arith.addf %47, %41 : vector<1x128xf32>
      %49 = tpu.concatenate %36, %48 in 0 : vector<1x128xf32>, vector<1x128xf32> -> vector<2x128xf32>
      %50 = arith.index_cast %arg7 : i32 to index
      %c0_21 = arith.constant 0 : index
      %c0_22 = arith.constant 0 : index
      %51 = vector.load %arg1[%50, %c0_21, %c0_22] : memref<6x2x128xf32, #tpu.memory_space<vmem>>, vector<1x2x128xf32>
      %52 = vector.shape_cast %51 : vector<1x2x128xf32> to vector<2x128xf32>
      %53 = arith.addf %49, %52 : vector<2x128xf32>
      %54 = vector.shape_cast %24 : vector<1x128xi1> to vector<1x128xi1>
      %55 = vector.broadcast %54 : vector<1x128xi1> to vector<2x128xi1>
      %56 = arith.select %55, %53, %arg8 : vector<2x128xi1>, vector<2x128xf32>
      scf.yield %56 : vector<2x128xf32>
    }
    %c5_i32_5 = arith.constant 5 : i32
    %c0_6 = arith.constant 0 : index
    %c0_7 = arith.constant 0 : index
    %7 = vector.load %arg5[%c0_6, %c0_7] : memref<2x1xf32, #tpu.memory_space<vmem>>, vector<2x1xf32>
    %8 = vector.broadcast %7 : vector<2x1xf32> to vector<2x128xf32>
    %9 = arith.addf %6, %8 : vector<2x128xf32>
    %cst = arith.constant dense<0xFF800000> : vector<128xf32>
    %10 = vector.multi_reduction <maximumf>, %9, %cst [0] : vector<2x128xf32> to vector<128xf32>
    %11 = vector.shape_cast %10 : vector<128xf32> to vector<1x128xf32>
    %12 = vector.broadcast %11 : vector<1x128xf32> to vector<2x128xf32>
    %13 = arith.subf %9, %12 : vector<2x128xf32>
    %14 = math.exp %13 : vector<2x128xf32>
    %cst_8 = arith.constant dense<0.000000e+00> : vector<128xf32>
    %15 = vector.multi_reduction <add>, %14, %cst_8 [0] : vector<2x128xf32> to vector<128xf32>
    %16 = vector.shape_cast %15 : vector<128xf32> to vector<1x128xf32>
    %17 = math.log %16 : vector<1x128xf32>
    %18 = arith.addf %17, %11 : vector<1x128xf32>
    %c0_9 = arith.constant 0 : index
    %c0_10 = arith.constant 0 : index
    %19 = vector.load %arg6[%c0_9, %c0_10] : memref<1x128xf32, #tpu.memory_space<vmem>>, vector<1x128xf32>
    tpu.vector_store %arg6[%c0_9, %c0_10], %18 {strides = array<i32>} : memref<1x128xf32, #tpu.memory_space<vmem>>, vector<1x128xf32>,
    return
  }
  func.func @transform_0(%arg0: i32) -> (i32, i32, i32) {
    %c0_i32 = arith.constant 0 : i32
    %c0_i32_0 = arith.constant 0 : i32
    %c0_i32_1 = arith.constant 0 : i32
    return %c0_i32, %c0_i32_0, %arg0 : i32, i32, i32
  }
  func.func @transform_1(%arg0: i32) -> (i32, i32, i32) {
    %c0_i32 = arith.constant 0 : i32
    %c0_i32_0 = arith.constant 0 : i32
    %c0_i32_1 = arith.constant 0 : i32
    return %c0_i32, %c0_i32_0, %arg0 : i32, i32, i32
  }
  func.func @transform_2(%arg0: i32) -> (i32, i32) {
    %c0_i32 = arith.constant 0 : i32
    %c0_i32_0 = arith.constant 0 : i32
    %c0_i32_1 = arith.constant 0 : i32
    return %c0_i32, %c0_i32_0 : i32, i32
  }
  func.func @transform_3(%arg0: i32) -> (i32, i32) {
    %c0_i32 = arith.constant 0 : i32
    %c0_i32_0 = arith.constant 0 : i32
    %c0_i32_1 = arith.constant 0 : i32
    return %c0_i32, %c0_i32_0 : i32, i32
  }
  func.func @transform_4(%arg0: i32) -> (i32, i32) {
    %c0_i32 = arith.constant 0 : i32
    %c0_i32_0 = arith.constant 0 : i32
    %c0_i32_1 = arith.constant 0 : i32
    return %c0_i32, %c0_i32_0 : i32, i32
  }
  func.func @transform_5(%arg0: i32) -> (i32, i32) {
    %c0_i32 = arith.constant 0 : i32
    %c0_i32_0 = arith.constant 0 : i32
    return %c0_i32, %arg0 : i32, i32
  }
}

</mosaic_0001>

<llo_original>
// kernel: bigram_bert_forward.8
$region0: #{bigram_bert_forward.8}
  #allocation0 [shape = 'u32[]', space=smem, size = 0x4, offset = 0x4, fixed_abs, tag = 'smem constant byte address 0x4 - core index']
  #allocation1 [shape = 'u32[72,128]{1,0:T(1,128)}', space=vmem, size = 0x9000, scoped, tag = 'internal scratch']
  %s0 = inlined_call_operand.vmem [shape: bf16[16,48], index: 0, kind: input, shape index: {}]
  %s1 = inlined_call_operand.vmem [shape: bf16[48,128], index: 1, kind: input, shape index: {}]
  %s2 = inlined_call_operand.vmem [shape: f32[1,128], index: 2, kind: input, shape index: {}]
  %s3 = inlined_call_operand.vmem [shape: bf16[16,128], index: 3, kind: output, shape index: {}]
  %s4 = sld [smem:[#allocation0]]
  $region22: #{bigram_bert_forward.8} parent=0
    _
  %s6 = ssub.s32 1, %s4
  %s7 = scalar_select 0, %s6, %s4
  // Predicated region
  $region2: #{bigram_bert_forward.8} parent=0 // pred_check
    _
  $region3: #{bigram_bert_forward.8} parent=0 // pred_check_branch
    %9 = sbr.rel (0) target = $region5
  $region4: #{bigram_bert_forward.8} parent=0 // pred_region
    _
  $region5: #{bigram_bert_forward.8} parent=0 // pred_fallthru
    _
  // Predicated region
  $region6: #{bigram_bert_forward.8} parent=0 // pred_check
    _
  $region7: #{bigram_bert_forward.8} parent=0 // pred_check_branch
    %11 = sbr.rel (0) target = $region9
  $region8: #{bigram_bert_forward.8} parent=0 // pred_region
    _
  $region9: #{bigram_bert_forward.8} parent=0 // pred_fallthru
    _
  // Predicated region
  $region10: #{bigram_bert_forward.8} parent=0 // pred_check
    _
  $region11: #{bigram_bert_forward.8} parent=0 // pred_check_branch
    %13 = sbr.rel (0) target = $region13
  $region12: #{bigram_bert_forward.8} parent=0 // pred_region
    _
  $region13: #{bigram_bert_forward.8} parent=0 // pred_fallthru
    _
  %v15 = vld [vmem:[%s0] sm:$0xf]
  %v16 = vld [vmem:[%s0 + $0x4] sm:$0xf]
  %v17 = vld [vmem:[%s1] sm:$0xf]
  %v18 = vld [vmem:[%s1 + $0x4] sm:$0xf]
  %v19 = vld [vmem:[%s1 + $0x8] sm:$0xf]
  %v20 = vld [vmem:[%s1 + $0xc] sm:$0xf]
  %v21 = vld [vmem:[%s1 + $0x10] sm:$0xf]
  %v22 = vld [vmem:[%s1 + $0x14] sm:$0xf]
  %v23 = vld [vmem:[%s2] sm:$0x1]
  %v25 = vperm.slane %v23, 0
  %v29 = vunpack.c.l.b16 %v15
  %v30 = vunpack.c.l.b16 %v16
  %v31 = vpack.c.b16 %v30, %v29
  %v38 = vunpack.c.l.b16 %v17
  %v39 = vunpack.c.l.b16 %v18
  %v40 = vunpack.c.l.b16 %v19
  %v41 = vunpack.c.l.b16 %v20
  %v42 = vunpack.c.l.b16 %v21
  %v43 = vunpack.c.l.b16 %v22
  %v44 = vpack.c.b16 %v39, %v38
  %v45 = vpack.c.b16 %v41, %v40
  %v46 = vpack.c.b16 %v43, %v42
  %vm50 = vcmask 392192
  %v52 = vsel %vm50, %v31, 0
  %54 = vmatpush.bf16.msra.mxu0 0
  %55 = vmatpush.bf16.msra.mxu0 0
  %56 = vmatpush.bf16.msra.mxu0 0
  %57 = vmatpush.bf16.msra.mxu0 0
  %58 = vmatpush.bf16.msra.mxu0 0
  %59 = vmatpush.bf16.msra.mxu0 %v46
  %60 = vmatpush.bf16.msra.mxu0 %v45
  %61 = vmatpush.bf16.msra.mxu0 %v44
  %62 = vmatmul.bf16.gmra.mxu0 %v52
  %v63 = vpop.f32.mrf.mxu0
  %v64 = vadd.f32 %v25, %v63
  %v65 = vpop.f32.mrf.mxu0
  %v66 = vadd.f32 %v25, %v65
  %67 = vdwg.mxu0
  %v68 = vpack.c.bf16 %v64, %v64
  %v69 = vpack.c.bf16 %v66, %v66
  %70 = vst [vmem:[%s3] sm:$0xf] %v68
  %71 = vst [vmem:[%s3 + $0x4] sm:$0xf] %v69
  // Predicated region
  $region14: #{bigram_bert_forward.8} parent=0 // pred_check
    _
  $region15: #{bigram_bert_forward.8} parent=0 // pred_check_branch
    %73 = sbr.rel (0) target = $region17
  $region16: #{bigram_bert_forward.8} parent=0 // pred_region
    _
  $region17: #{bigram_bert_forward.8} parent=0 // pred_fallthru
    _
  // Predicated region
  $region18: #{bigram_bert_forward.8} parent=0 // pred_check
    _
  $region19: #{bigram_bert_forward.8} parent=0 // pred_check_branch
    %75 = sbr.rel (0) target = $region21
  $region20: #{bigram_bert_forward.8} parent=0 // pred_region
    _
  $region21: #{bigram_bert_forward.8} parent=0 // pred_fallthru
    _

// kernel: bigram_bert_forward.9
$region0: #{bigram_bert_forward.9}
  #allocation0 [shape = 'u32[]', space=smem, size = 0x4, offset = 0x4, fixed_abs, tag = 'smem constant byte address 0x4 - core index']
  #allocation1 [shape = 'u32[72,128]{1,0:T(1,128)}', space=vmem, size = 0x9000, scoped, tag = 'internal scratch']
  %s0 = inlined_call_operand.vmem [shape: bf16[64,64], index: 0, kind: input, shape index: {}]
  %s1 = inlined_call_operand.vmem [shape: bf16[64,1024], index: 1, kind: input, shape index: {}]
  %s2 = inlined_call_operand.vmem [shape: f32[1,1024], index: 2, kind: input, shape index: {}]
  %s3 = inlined_call_operand.vmem [shape: bf16[64,1024], index: 3, kind: output, shape index: {}]
  %s4 = sld [smem:[#allocation0]]
  $region22: #{bigram_bert_forward.9} parent=0
    _
  %s6 = ssub.s32 1, %s4
  %s7 = scalar_select 0, %s6, %s4
  // Predicated region
  $region2: #{bigram_bert_forward.9} parent=0 // pred_check
    _
  $region3: #{bigram_bert_forward.9} parent=0 // pred_check_branch
    %9 = sbr.rel (0) target = $region5
  $region4: #{bigram_bert_forward.9} parent=0 // pred_region
    _
  $region5: #{bigram_bert_forward.9} parent=0 // pred_fallthru
    _
  // Predicated region
  $region6: #{bigram_bert_forward.9} parent=0 // pred_check
    _
  $region7: #{bigram_bert_forward.9} parent=0 // pred_check_branch
    %11 = sbr.rel (0) target = $region9
  $region8: #{bigram_bert_forward.9} parent=0 // pred_region
    _
  $region9: #{bigram_bert_forward.9} parent=0 // pred_fallthru
    _
  // Predicated region
  $region10: #{bigram_bert_forward.9} parent=0 // pred_check
    _
  $region11: #{bigram_bert_forward.9} parent=0 // pred_check_branch
    %13 = sbr.rel (0) target = $region13
  $region12: #{bigram_bert_forward.9} parent=0 // pred_region
    _
  $region13: #{bigram_bert_forward.9} parent=0 // pred_fallthru
    _
  %v15 = vld [vmem:[%s0] sm:$0xf]
  %v16 = vld [vmem:[%s0 + $0x4] sm:$0xf]
  %v17 = vld [vmem:[%s0 + $0x8] sm:$0xf]
  %v18 = vld [vmem:[%s0 + $0xc] sm:$0xf]
  %v19 = vld [vmem:[%s0 + $0x10] sm:$0xf]
  %v20 = vld [vmem:[%s0 + $0x14] sm:$0xf]
  %v21 = vld [vmem:[%s0 + $0x18] sm:$0xf]
  %v22 = vld [vmem:[%s0 + $0x1c] sm:$0xf]
  %v23 = vld [vmem:[%s1] sm:$0xff]
  %v24 = vld [vmem:[%s1 + $0x8] sm:$0xff]
  %v25 = vld [vmem:[%s1 + $0x10] sm:$0xff]
  %v26 = vld [vmem:[%s1 + $0x18] sm:$0xff]
  %v27 = vld [vmem:[%s1 + $0x20] sm:$0xff]
  %v28 = vld [vmem:[%s1 + $0x28] sm:$0xff]
  %v29 = vld [vmem:[%s1 + $0x30] sm:$0xff]
  %v30 = vld [vmem:[%s1 + $0x38] sm:$0xff]
  %v31 = vld [vmem:[%s1 + $0x40] sm:$0xff]
  %v32 = vld [vmem:[%s1 + $0x48] sm:$0xff]
  %v33 = vld [vmem:[%s1 + $0x50] sm:$0xff]
  %v34 = vld [vmem:[%s1 + $0x58] sm:$0xff]
  %v35 = vld [vmem:[%s1 + $0x60] sm:$0xff]
  %v36 = vld [vmem:[%s1 + $0x68] sm:$0xff]
  %v37 = vld [vmem:[%s1 + $0x70] sm:$0xff]
  %v38 = vld [vmem:[%s1 + $0x78] sm:$0xff]
  %v39 = vld [vmem:[%s1 + $0x80] sm:$0xff]
  %v40 = vld [vmem:[%s1 + $0x88] sm:$0xff]
  %v41 = vld [vmem:[%s1 + $0x90] sm:$0xff]
  %v42 = vld [vmem:[%s1 + $0x98] sm:$0xff]
  %v43 = vld [vmem:[%s1 + $0xa0] sm:$0xff]
  %v44 = vld [vmem:[%s1 + $0xa8] sm:$0xff]
  %v45 = vld [vmem:[%s1 + $0xb0] sm:$0xff]
  %v46 = vld [vmem:[%s1 + $0xb8] sm:$0xff]
  %v47 = vld [vmem:[%s1 + $0xc0] sm:$0xff]
  %v48 = vld [vmem:[%s1 + $0xc8] sm:$0xff]
  %v49 = vld [vmem:[%s1 + $0xd0] sm:$0xff]
  %v50 = vld [vmem:[%s1 + $0xd8] sm:$0xff]
  %v51 = vld [vmem:[%s1 + $0xe0] sm:$0xff]
  %v52 = vld [vmem:[%s1 + $0xe8] sm:$0xff]
  %v53 = vld [vmem:[%s1 + $0xf0] sm:$0xff]
  %v54 = vld [vmem:[%s1 + $0xf8] sm:$0xff]
  %v55 = vld [vmem:[%s2] sm:$0xff]
  %v57 = vperm.slane %v55, 0
  %v58 = vperm.slane %v55, 1
  %v59 = vperm.slane %v55, 2
  %v60 = vperm.slane %v55, 3
  %v61 = vperm.slane %v55, 4
  %v62 = vperm.slane %v55, 5
  %v63 = vperm.slane %v55, 6
  %v64 = vperm.slane %v55, 7
  %v81 = vunpack.c.l.b16 %v15
  %v82 = vunpack.c.l.b16 %v16
  %v83 = vunpack.c.l.b16 %v17
  %v84 = vunpack.c.l.b16 %v18
  %v85 = vunpack.c.l.b16 %v19
  %v86 = vunpack.c.l.b16 %v20
  %v87 = vunpack.c.l.b16 %v21
  %v88 = vunpack.c.l.b16 %v22
  %v89 = vpack.c.b16 %v82, %v81
  %v90 = vpack.c.b16 %v84, %v83
  %v91 = vpack.c.b16 %v86, %v85
  %v92 = vpack.c.b16 %v88, %v87
  %v125 = vunpack.c.l.b16 %v23
  %v126 = vunpack.c.h.b16 %v23
  %v127 = vunpack.c.l.b16 %v24
  %v128 = vunpack.c.h.b16 %v24
  %v129 = vunpack.c.l.b16 %v25
  %v130 = vunpack.c.h.b16 %v25
  %v131 = vunpack.c.l.b16 %v26
  %v132 = vunpack.c.h.b16 %v26
  %v133 = vunpack.c.l.b16 %v27
  %v134 = vunpack.c.h.b16 %v27
  %v135 = vunpack.c.l.b16 %v28
  %v136 = vunpack.c.h.b16 %v28
  %v137 = vunpack.c.l.b16 %v29
  %v138 = vunpack.c.h.b16 %v29
  %v139 = vunpack.c.l.b16 %v30
  %v140 = vunpack.c.h.b16 %v30
  %v141 = vunpack.c.l.b16 %v31
  %v142 = vunpack.c.h.b16 %v31
  %v143 = vunpack.c.l.b16 %v32
  %v144 = vunpack.c.h.b16 %v32
  %v145 = vunpack.c.l.b16 %v33
  %v146 = vunpack.c.h.b16 %v33
  %v147 = vunpack.c.l.b16 %v34
  %v148 = vunpack.c.h.b16 %v34
  %v149 = vunpack.c.l.b16 %v35
  %v150 = vunpack.c.h.b16 %v35
  %v151 = vunpack.c.l.b16 %v36
  %v152 = vunpack.c.h.b16 %v36
  %v153 = vunpack.c.l.b16 %v37
  %v154 = vunpack.c.h.b16 %v37
  %v155 = vunpack.c.l.b16 %v38
  %v156 = vunpack.c.h.b16 %v38
  %v157 = vunpack.c.l.b16 %v39
  %v158 = vunpack.c.h.b16 %v39
  %v159 = vunpack.c.l.b16 %v40
  %v160 = vunpack.c.h.b16 %v40
  %v161 = vunpack.c.l.b16 %v41
  %v162 = vunpack.c.h.b16 %v41
  %v163 = vunpack.c.l.b16 %v42
  %v164 = vunpack.c.h.b16 %v42
  %v165 = vunpack.c.l.b16 %v43
  %v166 = vunpack.c.h.b16 %v43
  %v167 = vunpack.c.l.b16 %v44
  %v168 = vunpack.c.h.b16 %v44
  %v169 = vunpack.c.l.b16 %v45
  %v170 = vunpack.c.h.b16 %v45
  %v171 = vunpack.c.l.b16 %v46
  %v172 = vunpack.c.h.b16 %v46
  %v173 = vunpack.c.l.b16 %v47
  %v174 = vunpack.c.h.b16 %v47
  %v175 = vunpack.c.l.b16 %v48
  %v176 = vunpack.c.h.b16 %v48
  %v177 = vunpack.c.l.b16 %v49
  %v178 = vunpack.c.h.b16 %v49
  %v179 = vunpack.c.l.b16 %v50
  %v180 = vunpack.c.h.b16 %v50
  %v181 = vunpack.c.l.b16 %v51
  %v182 = vunpack.c.h.b16 %v51
  %v183 = vunpack.c.l.b16 %v52
  %v184 = vunpack.c.h.b16 %v52
  %v185 = vunpack.c.l.b16 %v53
  %v186 = vunpack.c.h.b16 %v53
  %v187 = vunpack.c.l.b16 %v54
  %v188 = vunpack.c.h.b16 %v54
  %v189 = vpack.c.b16 %v133, %v125
  %v190 = vpack.c.b16 %v134, %v126
  %v191 = vpack.c.b16 %v135, %v127
  %v192 = vpack.c.b16 %v136, %v128
  %v193 = vpack.c.b16 %v137, %v129
  %v194 = vpack.c.b16 %v138, %v130
  %v195 = vpack.c.b16 %v139, %v131
  %v196 = vpack.c.b16 %v140, %v132
  %v197 = vpack.c.b16 %v149, %v141
  %v198 = vpack.c.b16 %v150, %v142
  %v199 = vpack.c.b16 %v151, %v143
  %v200 = vpack.c.b16 %v152, %v144
  %v201 = vpack.c.b16 %v153, %v145
  %v202 = vpack.c.b16 %v154, %v146
  %v203 = vpack.c.b16 %v155, %v147
  %v204 = vpack.c.b16 %v156, %v148
  %v205 = vpack.c.b16 %v165, %v157
  %v206 = vpack.c.b16 %v166, %v158
  %v207 = vpack.c.b16 %v167, %v159
  %v208 = vpack.c.b16 %v168, %v160
  %v209 = vpack.c.b16 %v169, %v161
  %v210 = vpack.c.b16 %v170, %v162
  %v211 = vpack.c.b16 %v171, %v163
  %v212 = vpack.c.b16 %v172, %v164
  %v213 = vpack.c.b16 %v181, %v173
  %v214 = vpack.c.b16 %v182, %v174
  %v215 = vpack.c.b16 %v183, %v175
  %v216 = vpack.c.b16 %v184, %v176
  %v217 = vpack.c.b16 %v185, %v177
  %v218 = vpack.c.b16 %v186, %v178
  %v219 = vpack.c.b16 %v187, %v179
  %v220 = vpack.c.b16 %v188, %v180
  %vm253 = vcmask 523264
  %v255 = vsel %vm253, %v89, 0
  %v258 = vsel %vm253, %v90, 0
  %v261 = vsel %vm253, %v91, 0
  %v264 = vsel %vm253, %v92, 0
  %266 = vmatpush.bf16.msra.mxu0 0
  %267 = vmatpush.bf16.msra.mxu0 0
  %268 = vmatpush.bf16.msra.mxu0 0
  %269 = vmatpush.bf16.msra.mxu0 0
  %270 = vmatpush.bf16.msra.mxu0 %v213
  %271 = vmatpush.bf16.msra.mxu0 %v205
  %272 = vmatpush.bf16.msra.mxu0 %v197
  %273 = vmatpush.bf16.msra.mxu0 %v189
  %274 = vmatmul.bf16.gmra.mxu0 %v255
  %v275 = vpop.f32.mrf.mxu0
  %v276 = vadd.f32 %v57, %v275
  %v277 = vpop.f32.mrf.mxu0
  %v278 = vadd.f32 %v57, %v277
  %279 = vmatmul.bf16.gmra.mxu0 %v258
  %v280 = vpop.f32.mrf.mxu0
  %v281 = vadd.f32 %v57, %v280
  %v282 = vpop.f32.mrf.mxu0
  %v283 = vadd.f32 %v57, %v282
  %284 = vmatmul.bf16.gmra.mxu0 %v261
  %v285 = vpop.f32.mrf.mxu0
  %v286 = vadd.f32 %v57, %v285
  %v287 = vpop.f32.mrf.mxu0
  %v288 = vadd.f32 %v57, %v287
  %289 = vmatmul.bf16.gmra.mxu0 %v264
  %v290 = vpop.f32.mrf.mxu0
  %v291 = vadd.f32 %v57, %v290
  %v292 = vpop.f32.mrf.mxu0
  %v293 = vadd.f32 %v57, %v292
  %294 = vdwg.mxu0
  %295 = vmatpush.bf16.msra.mxu0 0
  %296 = vmatpush.bf16.msra.mxu0 0
  %297 = vmatpush.bf16.msra.mxu0 0
  %298 = vmatpush.bf16.msra.mxu0 0
  %299 = vmatpush.bf16.msra.mxu0 %v214
  %300 = vmatpush.bf16.msra.mxu0 %v206
  %301 = vmatpush.bf16.msra.mxu0 %v198
  %302 = vmatpush.bf16.msra.mxu0 %v190
  %303 = vmatmul.bf16.gmra.mxu0 %v255
  %v304 = vpop.f32.mrf.mxu0
  %v305 = vadd.f32 %v58, %v304
  %v306 = vpop.f32.mrf.mxu0
  %v307 = vadd.f32 %v58, %v306
  %308 = vmatmul.bf16.gmra.mxu0 %v258
  %v309 = vpop.f32.mrf.mxu0
  %v310 = vadd.f32 %v58, %v309
  %v311 = vpop.f32.mrf.mxu0
  %v312 = vadd.f32 %v58, %v311
  %313 = vmatmul.bf16.gmra.mxu0 %v261
  %v314 = vpop.f32.mrf.mxu0
  %v315 = vadd.f32 %v58, %v314
  %v316 = vpop.f32.mrf.mxu0
  %v317 = vadd.f32 %v58, %v316
  %318 = vmatmul.bf16.gmra.mxu0 %v264
  %v319 = vpop.f32.mrf.mxu0
  %v320 = vadd.f32 %v58, %v319
  %v321 = vpop.f32.mrf.mxu0
  %v322 = vadd.f32 %v58, %v321
  %323 = vdwg.mxu0
  %324 = vmatpush.bf16.msra.mxu0 0
  %325 = vmatpush.bf16.msra.mxu0 0
  %326 = vmatpush.bf16.msra.mxu0 0
  %327 = vmatpush.bf16.msra.mxu0 0
  %328 = vmatpush.bf16.msra.mxu0 %v215
  %329 = vmatpush.bf16.msra.mxu0 %v207
  %330 = vmatpush.bf16.msra.mxu0 %v199
  %331 = vmatpush.bf16.msra.mxu0 %v191
  %332 = vmatmul.bf16.gmra.mxu0 %v255
  %v333 = vpop.f32.mrf.mxu0
  %v334 = vadd.f32 %v59, %v333
  %v335 = vpop.f32.mrf.mxu0
  %v336 = vadd.f32 %v59, %v335
  %337 = vmatmul.bf16.gmra.mxu0 %v258
  %v338 = vpop.f32.mrf.mxu0
  %v339 = vadd.f32 %v59, %v338
  %v340 = vpop.f32.mrf.mxu0
  %v341 = vadd.f32 %v59, %v340
  %342 = vmatmul.bf16.gmra.mxu0 %v261
  %v343 = vpop.f32.mrf.mxu0
  %v344 = vadd.f32 %v59, %v343
  %v345 = vpop.f32.mrf.mxu0
  %v346 = vadd.f32 %v59, %v345
  %347 = vmatmul.bf16.gmra.mxu0 %v264
  %v348 = vpop.f32.mrf.mxu0
  %v349 = vadd.f32 %v59, %v348
  %v350 = vpop.f32.mrf.mxu0
  %v351 = vadd.f32 %v59, %v350
  %352 = vdwg.mxu0
  %353 = vmatpush.bf16.msra.mxu0 0
  %354 = vmatpush.bf16.msra.mxu0 0
  %355 = vmatpush.bf16.msra.mxu0 0
  %356 = vmatpush.bf16.msra.mxu0 0
  %357 = vmatpush.bf16.msra.mxu0 %v216
  %358 = vmatpush.bf16.msra.mxu0 %v208
  %359 = vmatpush.bf16.msra.mxu0 %v200
  %360 = vmatpush.bf16.msra.mxu0 %v192
  %361 = vmatmul.bf16.gmra.mxu0 %v255
  %v362 = vpop.f32.mrf.mxu0
  %v363 = vadd.f32 %v60, %v362
  %v364 = vpop.f32.mrf.mxu0
  %v365 = vadd.f32 %v60, %v364
  %366 = vmatmul.bf16.gmra.mxu0 %v258
  %v367 = vpop.f32.mrf.mxu0
  %v368 = vadd.f32 %v60, %v367
  %v369 = vpop.f32.mrf.mxu0
  %v370 = vadd.f32 %v60, %v369
  %371 = vmatmul.bf16.gmra.mxu0 %v261
  %v372 = vpop.f32.mrf.mxu0
  %v373 = vadd.f32 %v60, %v372
  %v374 = vpop.f32.mrf.mxu0
  %v375 = vadd.f32 %v60, %v374
  %376 = vmatmul.bf16.gmra.mxu0 %v264
  %v377 = vpop.f32.mrf.mxu0
  %v378 = vadd.f32 %v60, %v377
  %v379 = vpop.f32.mrf.mxu0
  %v380 = vadd.f32 %v60, %v379
  %381 = vdwg.mxu0
  %382 = vmatpush.bf16.msra.mxu0 0
  %383 = vmatpush.bf16.msra.mxu0 0
  %384 = vmatpush.bf16.msra.mxu0 0
  %385 = vmatpush.bf16.msra.mxu0 0
  %386 = vmatpush.bf16.msra.mxu0 %v217
  %387 = vmatpush.bf16.msra.mxu0 %v209
  %388 = vmatpush.bf16.msra.mxu0 %v201
  %389 = vmatpush.bf16.msra.mxu0 %v193
  %390 = vmatmul.bf16.gmra.mxu0 %v255
  %v391 = vpop.f32.mrf.mxu0
  %v392 = vadd.f32 %v61, %v391
  %v393 = vpop.f32.mrf.mxu0
  %v394 = vadd.f32 %v61, %v393
  %395 = vmatmul.bf16.gmra.mxu0 %v258
  %v396 = vpop.f32.mrf.mxu0
  %v397 = vadd.f32 %v61, %v396
  %v398 = vpop.f32.mrf.mxu0
  %v399 = vadd.f32 %v61, %v398
  %400 = vmatmul.bf16.gmra.mxu0 %v261
  %v401 = vpop.f32.mrf.mxu0
  %v402 = vadd.f32 %v61, %v401
  %v403 = vpop.f32.mrf.mxu0
  %v404 = vadd.f32 %v61, %v403
  %405 = vmatmul.bf16.gmra.mxu0 %v264
  %v406 = vpop.f32.mrf.mxu0
  %v407 = vadd.f32 %v61, %v406
  %v408 = vpop.f32.mrf.mxu0
  %v409 = vadd.f32 %v61, %v408
  %410 = vdwg.mxu0
  %411 = vmatpush.bf16.msra.mxu0 0
  %412 = vmatpush.bf16.msra.mxu0 0
  %413 = vmatpush.bf16.msra.mxu0 0
  %414 = vmatpush.bf16.msra.mxu0 0
  %415 = vmatpush.bf16.msra.mxu0 %v218
  %416 = vmatpush.bf16.msra.mxu0 %v210
  %417 = vmatpush.bf16.msra.mxu0 %v202
  %418 = vmatpush.bf16.msra.mxu0 %v194
  %419 = vmatmul.bf16.gmra.mxu0 %v255
  %v420 = vpop.f32.mrf.mxu0
  %v421 = vadd.f32 %v62, %v420
  %v422 = vpop.f32.mrf.mxu0
  %v423 = vadd.f32 %v62, %v422
  %424 = vmatmul.bf16.gmra.mxu0 %v258
  %v425 = vpop.f32.mrf.mxu0
  %v426 = vadd.f32 %v62, %v425
  %v427 = vpop.f32.mrf.mxu0
  %v428 = vadd.f32 %v62, %v427
  %429 = vmatmul.bf16.gmra.mxu0 %v261
  %v430 = vpop.f32.mrf.mxu0
  %v431 = vadd.f32 %v62, %v430
  %v432 = vpop.f32.mrf.mxu0
  %v433 = vadd.f32 %v62, %v432
  %434 = vmatmul.bf16.gmra.mxu0 %v264
  %v435 = vpop.f32.mrf.mxu0
  %v436 = vadd.f32 %v62, %v435
  %v437 = vpop.f32.mrf.mxu0
  %v438 = vadd.f32 %v62, %v437
  %439 = vdwg.mxu0
  %440 = vmatpush.bf16.msra.mxu0 0
  %441 = vmatpush.bf16.msra.mxu0 0
  %442 = vmatpush.bf16.msra.mxu0 0
  %443 = vmatpush.bf16.msra.mxu0 0
  %444 = vmatpush.bf16.msra.mxu0 %v219
  %445 = vmatpush.bf16.msra.mxu0 %v211
  %446 = vmatpush.bf16.msra.mxu0 %v203
  %447 = vmatpush.bf16.msra.mxu0 %v195
  %448 = vmatmul.bf16.gmra.mxu0 %v255
  %v449 = vpop.f32.mrf.mxu0
  %v450 = vadd.f32 %v63, %v449
  %v451 = vpop.f32.mrf.mxu0
  %v452 = vadd.f32 %v63, %v451
  %453 = vmatmul.bf16.gmra.mxu0 %v258
  %v454 = vpop.f32.mrf.mxu0
  %v455 = vadd.f32 %v63, %v454
  %v456 = vpop.f32.mrf.mxu0
  %v457 = vadd.f32 %v63, %v456
  %458 = vmatmul.bf16.gmra.mxu0 %v261
  %v459 = vpop.f32.mrf.mxu0
  %v460 = vadd.f32 %v63, %v459
  %v461 = vpop.f32.mrf.mxu0
  %v462 = vadd.f32 %v63, %v461
  %463 = vmatmul.bf16.gmra.mxu0 %v264
  %v464 = vpop.f32.mrf.mxu0
  %v465 = vadd.f32 %v63, %v464
  %v466 = vpop.f32.mrf.mxu0
  %v467 = vadd.f32 %v63, %v466
  %468 = vdwg.mxu0
  %469 = vmatpush.bf16.msra.mxu0 0
  %470 = vmatpush.bf16.msra.mxu0 0
  %471 = vmatpush.bf16.msra.mxu0 0
  %472 = vmatpush.bf16.msra.mxu0 0
  %473 = vmatpush.bf16.msra.mxu0 %v220
  %474 = vmatpush.bf16.msra.mxu0 %v212
  %475 = vmatpush.bf16.msra.mxu0 %v204
  %476 = vmatpush.bf16.msra.mxu0 %v196
  %477 = vmatmul.bf16.gmra.mxu0 %v255
  %v478 = vpop.f32.mrf.mxu0
  %v479 = vadd.f32 %v64, %v478
  %v480 = vpop.f32.mrf.mxu0
  %v481 = vadd.f32 %v64, %v480
  %482 = vmatmul.bf16.gmra.mxu0 %v258
  %v483 = vpop.f32.mrf.mxu0
  %v484 = vadd.f32 %v64, %v483
  %v485 = vpop.f32.mrf.mxu0
  %v486 = vadd.f32 %v64, %v485
  %487 = vmatmul.bf16.gmra.mxu0 %v261
  %v488 = vpop.f32.mrf.mxu0
  %v489 = vadd.f32 %v64, %v488
  %v490 = vpop.f32.mrf.mxu0
  %v491 = vadd.f32 %v64, %v490
  %492 = vmatmul.bf16.gmra.mxu0 %v264
  %v493 = vpop.f32.mrf.mxu0
  %v494 = vadd.f32 %v64, %v493
  %v495 = vpop.f32.mrf.mxu0
  %v496 = vadd.f32 %v64, %v495
  %497 = vdwg.mxu0
  %v498 = vpack.c.bf16 %v305, %v276
  %v499 = vpack.c.bf16 %v363, %v334
  %v500 = vpack.c.bf16 %v421, %v392
  %v501 = vpack.c.bf16 %v479, %v450
  %v502 = vpack.c.bf16 %v307, %v278
  %v503 = vpack.c.bf16 %v365, %v336
  %v504 = vpack.c.bf16 %v423, %v394
  %v505 = vpack.c.bf16 %v481, %v452
  %v506 = vpack.c.bf16 %v310, %v281
  %v507 = vpack.c.bf16 %v368, %v339
  %v508 = vpack.c.bf16 %v426, %v397
  %v509 = vpack.c.bf16 %v484, %v455
  %v510 = vpack.c.bf16 %v312, %v283
  %v511 = vpack.c.bf16 %v370, %v341
  %v512 = vpack.c.bf16 %v428, %v399
  %v513 = vpack.c.bf16 %v486, %v457
  %v514 = vpack.c.bf16 %v315, %v286
  %v515 = vpack.c.bf16 %v373, %v344
  %v516 = vpack.c.bf16 %v431, %v402
  %v517 = vpack.c.bf16 %v489, %v460
  %v518 = vpack.c.bf16 %v317, %v288
  %v519 = vpack.c.bf16 %v375, %v346
  %v520 = vpack.c.bf16 %v433, %v404
  %v521 = vpack.c.bf16 %v491, %v462
  %v522 = vpack.c.bf16 %v320, %v291
  %v523 = vpack.c.bf16 %v378, %v349
  %v524 = vpack.c.bf16 %v436, %v407
  %v525 = vpack.c.bf16 %v494, %v465
  %v526 = vpack.c.bf16 %v322, %v293
  %v527 = vpack.c.bf16 %v380, %v351
  %v528 = vpack.c.bf16 %v438, %v409
  %v529 = vpack.c.bf16 %v496, %v467
  %530 = vst [vmem:[%s3] sm:$0xff] %v498
  %531 = vst [vmem:[%s3 + $0x8] sm:$0xff] %v499
  %532 = vst [vmem:[%s3 + $0x10] sm:$0xff] %v500
  %533 = vst [vmem:[%s3 + $0x18] sm:$0xff] %v501
  %534 = vst [vmem:[%s3 + $0x20] sm:$0xff] %v502
  %535 = vst [vmem:[%s3 + $0x28] sm:$0xff] %v503
  %536 = vst [vmem:[%s3 + $0x30] sm:$0xff] %v504
  %537 = vst [vmem:[%s3 + $0x38] sm:$0xff] %v505
  %538 = vst [vmem:[%s3 + $0x40] sm:$0xff] %v506
  %539 = vst [vmem:[%s3 + $0x48] sm:$0xff] %v507
  %540 = vst [vmem:[%s3 + $0x50] sm:$0xff] %v508
  %541 = vst [vmem:[%s3 + $0x58] sm:$0xff] %v509
  %542 = vst [vmem:[%s3 + $0x60] sm:$0xff] %v510
  %543 = vst [vmem:[%s3 + $0x68] sm:$0xff] %v511
  %544 = vst [vmem:[%s3 + $0x70] sm:$0xff] %v512
  %545 = vst [vmem:[%s3 + $0x78] sm:$0xff] %v513
  %546 = vst [vmem:[%s3 + $0x80] sm:$0xff] %v514
  %547 = vst [vmem:[%s3 + $0x88] sm:$0xff] %v515
  %548 = vst [vmem:[%s3 + $0x90] sm:$0xff] %v516
  %549 = vst [vmem:[%s3 + $0x98] sm:$0xff] %v517
  %550 = vst [vmem:[%s3 + $0xa0] sm:$0xff] %v518
  %551 = vst [vmem:[%s3 + $0xa8] sm:$0xff] %v519
  %552 = vst [vmem:[%s3 + $0xb0] sm:$0xff] %v520
  %553 = vst [vmem:[%s3 + $0xb8] sm:$0xff] %v521
  %554 = vst [vmem:[%s3 + $0xc0] sm:$0xff] %v522
  %555 = vst [vmem:[%s3 + $0xc8] sm:$0xff] %v523
  %556 = vst [vmem:[%s3 + $0xd0] sm:$0xff] %v524
  %557 = vst [vmem:[%s3 + $0xd8] sm:$0xff] %v525
  %558 = vst [vmem:[%s3 + $0xe0] sm:$0xff] %v526
  %559 = vst [vmem:[%s3 + $0xe8] sm:$0xff] %v527
  %560 = vst [vmem:[%s3 + $0xf0] sm:$0xff] %v528
  %561 = vst [vmem:[%s3 + $0xf8] sm:$0xff] %v529
  // Predicated region
  $region14: #{bigram_bert_forward.9} parent=0 // pred_check
    _
  $region15: #{bigram_bert_forward.9} parent=0 // pred_check_branch
    %563 = sbr.rel (0) target = $region17
  $region16: #{bigram_bert_forward.9} parent=0 // pred_region
    _
  $region17: #{bigram_bert_forward.9} parent=0 // pred_fallthru
    _
  // Predicated region
  $region18: #{bigram_bert_forward.9} parent=0 // pred_check
    _
  $region19: #{bigram_bert_forward.9} parent=0 // pred_check_branch
    %565 = sbr.rel (0) target = $region21
  $region20: #{bigram_bert_forward.9} parent=0 // pred_region
    _
  $region21: #{bigram_bert_forward.9} parent=0 // pred_fallthru
    _

// kernel: bigram_bert_forward.10
$region0: #{bigram_bert_forward.10}
  #allocation0 [shape = 'u32[]', space=smem, size = 0x4, offset = 0x4, fixed_abs, tag = 'smem constant byte address 0x4 - core index']
  #allocation1 [shape = 'u32[72,128]{1,0:T(1,128)}', space=vmem, size = 0x9000, scoped, tag = 'internal scratch']
  #allocation2 [shape = 'f32[8,128]{1,0:T(8,128)}', space=vmem, size = 0x1000, scoped, tag = 'scratch operand']
  #allocation3 [shape = 'f32[8,128]{1,0:T(8,128)}', space=vmem, size = 0x1000, scoped, tag = 'scratch operand']
  %s0 = inlined_call_operand.vmem [shape: bf16[8,8,1024], index: 0, kind: input, shape index: {}]
  %s1 = inlined_call_operand.vmem [shape: f32[8,8,1], index: 1, kind: input, shape index: {}]
  %s2 = inlined_call_operand.vmem [shape: bf16[2,128,512], index: 2, kind: input, shape index: {}]
  %s3 = inlined_call_operand.vmem [shape: bf16[8,8,256], index: 3, kind: output, shape index: {}]
  %s4 = sld [smem:[#allocation0]]
  $region116: #{bigram_bert_forward.10} parent=0
    _
  %s6 = ssub.s32 1, %s4
  %s7 = scalar_select 0, %s6, %s4
  $region1: #{bigram_bert_forward.10} parent=0
    #allocation4 [shape = 'u8[131072]{0}', space=vmem, size = 0x20000, scoped, tag = 'input window, operand 0']
    #allocation5 [shape = 'u8[32768]{0}', space=vmem, size = 0x8000, scoped, tag = 'output window, operand 0']
    loop: start=0, step=1, limit=4
    $region2: #{bigram_bert_forward.10} parent=1 // loop_pre_header
      _
    $region3: #{bigram_bert_forward.10} parent=1 // loop_header
      %s9 = sphi 0, %s13
      %p10 = scmp.ge.s32.totalorder %s9, 4
      %s16 = sphi 0, %s28
      %s17 = sphi 0, %s24
      %s18 = sphi 0, %s16
      %s19 = sphi 0, %s17
      %s20 = sphi 0, %s18
      %s21 = sphi 0, %s19
      %s43 = sphi 0, %s45
      %s46 = sphi 0, %s43
      %s47 = sphi 0, %s46
      %s63 = sphi 0, %s47
      %s79 = sphi 0, %s81
      %s82 = sphi 0, %s79
      %s83 = sphi 0, %s82
      %s99 = sphi 0, %s83
      %s105 = sphi 0, %s107
      %s108 = sphi 0, %s105
      %s109 = sphi 0, %s108
      %s125 = sphi 0, %s109
      %s143 = sphi 0, %s145
      %s146 = sphi 0, %s143
      %s147 = sphi 0, %s146
      %s163 = sphi 0, %s147
    $region4: #{bigram_bert_forward.10} parent=1 // loop_header_branch
      %12 = sbr.rel (%p10) target = $region8
    $region5: #{bigram_bert_forward.10} parent=1 // loop_body
      %s14 = ssub.s32 %s9, 1
      %s15 = ssub.s32 %s9, 2
      %s22 = sadd.s32 1, %s17
      %p23 = scmp.ge.s32.totalorder %s22, 1
      %s24 = scalar_select %p23, 0, %s22
      %s25 = sadd.s32 1, %s16
      %s26 = scalar_select %p23, %s25, %s16
      %p27 = scmp.ge.s32.totalorder %s26, 2
      %s28 = scalar_select %p27, 0, %s26
      %s29 = ssub.s32 1, %s16
      %s30 = smul.u32 %s29, %s17
      %s31 = ssub.s32 0, %s17
      %s32 = smul.u32 %s16, %s31
      %s33 = sadd.s32 %s30, %s32
      %s34 = ssub.s32 1, %s28
      %s35 = smul.u32 %s34, %s24
      %s36 = ssub.s32 0, %s24
      %s37 = smul.u32 %s28, %s36
      %s38 = sadd.s32 %s35, %s37
      %s39 = ssub.s32 %s33, %s38
      %s40 = ssub.s32 %s16, %s28
      %s41 = sor.u32 %s39, %s40
      %p42 = scmp.eq.s32.totalorder %s41, 0
      %s44 = sadd.s32 %s43, 1
      %s45 = scalar_select %p42, %s43, %s44
      %p48 = pneg %p42
      %p49 = scmp.eq.s32.totalorder %s9, 1
      %p50 = por %p48, %p49
      %p51 = scmp.ne.s32.totalorder %s43, %s46
      %p52 = scmp.eq.s32.totalorder %s9, 0
      %p53 = por %p51, %p52
      %p54 = scmp.ne.s32.totalorder %s43, %s46
      %p55 = scmp.eq.s32.totalorder %s14, 1
      %p56 = por %p54, %p55
      %p57 = scmp.ne.s32.totalorder %s46, %s47
      %p58 = scmp.eq.s32.totalorder %s14, 0
      %p59 = por %p57, %p58
      %p60 = scmp.ne.s32.totalorder %s46, %s47
      %p61 = scmp.eq.s32.totalorder %s15, 1
      %p62 = por %p60, %p61
      %p64 = scmp.ne.s32.totalorder %s47, %s63
      %p65 = scmp.eq.s32.totalorder %s15, 0
      %p66 = por %p64, %p65
      %s67 = ssub.s32 1, %s16
      %s68 = smul.u32 %s67, %s17
      %s69 = ssub.s32 0, %s17
      %s70 = smul.u32 %s16, %s69
      %s71 = sadd.s32 %s68, %s70
      %s72 = ssub.s32 1, %s28
      %s73 = smul.u32 %s72, %s24
      %s74 = ssub.s32 0, %s24
      %s75 = smul.u32 %s28, %s74
      %s76 = sadd.s32 %s73, %s75
      %s77 = ssub.s32 %s71, %s76
      %p78 = scmp.eq.s32.totalorder %s77, 0
      %s80 = sadd.s32 %s79, 1
      %s81 = scalar_select %p78, %s79, %s80
      %p84 = pneg %p78
      %p85 = scmp.eq.s32.totalorder %s9, 1
      %p86 = por %p84, %p85
      %p87 = scmp.ne.s32.totalorder %s79, %s82
      %p88 = scmp.eq.s32.totalorder %s9, 0
      %p89 = por %p87, %p88
      %p90 = scmp.ne.s32.totalorder %s79, %s82
      %p91 = scmp.eq.s32.totalorder %s14, 1
      %p92 = por %p90, %p91
      %p93 = scmp.ne.s32.totalorder %s82, %s83
      %p94 = scmp.eq.s32.totalorder %s14, 0
      %p95 = por %p93, %p94
      %p96 = scmp.ne.s32.totalorder %s82, %s83
      %p97 = scmp.eq.s32.totalorder %s15, 1
      %p98 = por %p96, %p97
      %p100 = scmp.ne.s32.totalorder %s83, %s99
      %p101 = scmp.eq.s32.totalorder %s15, 0
      %p102 = por %p100, %p101
      %s103 = ssub.s32 %s16, %s28
      %p104 = scmp.eq.s32.totalorder %s103, 0
      %s106 = sadd.s32 %s105, 1
      %s107 = scalar_select %p104, %s105, %s106
      %p110 = pneg %p104
      %p111 = scmp.eq.s32.totalorder %s9, 1
      %p112 = por %p110, %p111
      %p113 = scmp.ne.s32.totalorder %s105, %s108
      %p114 = scmp.eq.s32.totalorder %s9, 0
      %p115 = por %p113, %p114
      %p116 = scmp.ne.s32.totalorder %s105, %s108
      %p117 = scmp.eq.s32.totalorder %s14, 1
      %p118 = por %p116, %p117
      %p119 = scmp.ne.s32.totalorder %s108, %s109
      %p120 = scmp.eq.s32.totalorder %s14, 0
      %p121 = por %p119, %p120
      %p122 = scmp.ne.s32.totalorder %s108, %s109
      %p123 = scmp.eq.s32.totalorder %s15, 1
      %p124 = por %p122, %p123
      %p126 = scmp.ne.s32.totalorder %s109, %s125
      %p127 = scmp.eq.s32.totalorder %s15, 0
      %p128 = por %p126, %p127
      %s129 = ssub.s32 1, %s16
      %s130 = smul.u32 %s129, %s17
      %s131 = ssub.s32 0, %s17
      %s132 = smul.u32 %s16, %s131
      %s133 = sadd.s32 %s130, %s132
      %s134 = ssub.s32 1, %s28
      %s135 = smul.u32 %s134, %s24
      %s136 = ssub.s32 0, %s24
      %s137 = smul.u32 %s28, %s136
      %s138 = sadd.s32 %s135, %s137
      %s139 = ssub.s32 %s133, %s138
      %s140 = ssub.s32 %s16, %s28
      %s141 = sor.u32 %s139, %s140
      %p142 = scmp.eq.s32.totalorder %s141, 0
      %s144 = sadd.s32 %s143, 1
      %s145 = scalar_select %p142, %s143, %s144
      %p148 = pneg %p142
      %p149 = scmp.eq.s32.totalorder %s9, 1
      %p150 = por %p148, %p149
      %p151 = scmp.ne.s32.totalorder %s143, %s146
      %p152 = scmp.eq.s32.totalorder %s9, 0
      %p153 = por %p151, %p152
      %p154 = scmp.ne.s32.totalorder %s143, %s146
      %p155 = scmp.eq.s32.totalorder %s14, 1
      %p156 = por %p154, %p155
      %p157 = scmp.ne.s32.totalorder %s146, %s147
      %p158 = scmp.eq.s32.totalorder %s14, 0
      %p159 = por %p157, %p158
      %p160 = scmp.ne.s32.totalorder %s146, %s147
      %p161 = scmp.eq.s32.totalorder %s15, 1
      %p162 = por %p160, %p161
      %p164 = scmp.ne.s32.totalorder %s147, %s163
      %p165 = scmp.eq.s32.totalorder %s15, 0
      %p166 = por %p164, %p165
      %p167 = scmp.le.s32.totalorder 1, %s9
      %p168 = scmp.lt.s32.totalorder %s9, 3
      %p169 = pnand %p167, %p168
      %p170 = pneg %p169
      // Predicated region
      $region9: #{bigram_bert_forward.10} parent=5 // pred_check
        _
      $region10: #{bigram_bert_forward.10} parent=5 // pred_check_branch
        %172 = sbr.rel (%p169) target = $region12
      $region11: #{bigram_bert_forward.10} parent=5 // pred_region
        %s173 = ssub.s32 %s9, 1
      $region12: #{bigram_bert_forward.10} parent=5 // pred_fallthru
        _
      %p174 = scmp.lt.s32.totalorder %s9, 2
      // Predicated region
      $region13: #{bigram_bert_forward.10} parent=5 // pred_check
        %p175 = pneg %p174
      $region14: #{bigram_bert_forward.10} parent=5 // pred_check_branch
        %177 = sbr.rel (%p175) target = $region16
      $region15: #{bigram_bert_forward.10} parent=5 // pred_region
        // Predicated region
        $region17: #{bigram_bert_forward.10} parent=15 // pred_check
          %p178 = pneg %p53
        $region18: #{bigram_bert_forward.10} parent=15 // pred_check_branch
          %180 = sbr.rel (%p178) target = $region20
        $region19: #{bigram_bert_forward.10} parent=15 // pred_region
          %s181 = sand.u32 %s43, 1
          %s182 = sand.u32 %s43, 1
          %s183 = smul.addr %s182, 128
          %s184 = scalar_lea.vmem [#allocation4], %s183
          %s185 = ssub.s32 1, %s16
          %s186 = smul.u32 %s185, %s17
          %s187 = ssub.s32 0, %s17
          %s188 = smul.u32 %s16, %s187
          %s189 = sadd.s32 %s186, %s188
          %s190 = smul.u32 8, %s189
          %s191 = smul.u32 4, %s16
          %s192 = smul.addr %s190, 8
          %s193 = sadd.s32 %s191, %s192
          %s194 = smul.addr %s193, 4
          %s195 = scalar_lea.vmem %s0, %s194
          // Predicated region
          $region21: #{bigram_bert_forward.10} parent=19 // pred_check
            _
          $region22: #{bigram_bert_forward.10} parent=19 // pred_check_branch
            %197 = sbr.rel (0) target = $region24
          $region23: #{bigram_bert_forward.10} parent=19 // pred_region
            // Predicated region
            $region25: #{bigram_bert_forward.10} parent=23 // pred_check
              _
            $region26: #{bigram_bert_forward.10} parent=23 // pred_check_branch
              %199 = sbr.rel (0) target = $region28
            $region27: #{bigram_bert_forward.10} parent=23 // pred_region
              loop: start=0, step=1, limit=1
              $region29: #{bigram_bert_forward.10} parent=27 // loop_pre_header
                _
              $region30: #{bigram_bert_forward.10} parent=27 // loop_header
                %s201 = sphi 0, %s205
                %p202 = scmp.ge.s32.totalorder %s201, 1
                %s206 = sphi %s195, %s195
                %s207 = sphi %s184, %s184
              $region31: #{bigram_bert_forward.10} parent=27 // loop_header_branch
                %204 = sbr.rel (%p202) target = $region35
              $region32: #{bigram_bert_forward.10} parent=27 // loop_body
                %v208 = vld [vmem:[%s206] sm:$0xff]
                %209 = vst [vmem:[%s207] sm:$0xff] %v208
                %v210 = vld [vmem:[%s206 + $0x8] sm:$0xff]
                %211 = vst [vmem:[%s207 + $0x8] sm:$0xff] %v210
                %v212 = vld [vmem:[%s206 + $0x20] sm:$0xff]
                %213 = vst [vmem:[%s207 + $0x10] sm:$0xff] %v212
                %v214 = vld [vmem:[%s206 + $0x28] sm:$0xff]
                %215 = vst [vmem:[%s207 + $0x18] sm:$0xff] %v214
                %v216 = vld [vmem:[%s206 + $0x40] sm:$0xff]
                %217 = vst [vmem:[%s207 + $0x20] sm:$0xff] %v216
                %v218 = vld [vmem:[%s206 + $0x48] sm:$0xff]
                %219 = vst [vmem:[%s207 + $0x28] sm:$0xff] %v218
                %v220 = vld [vmem:[%s206 + $0x60] sm:$0xff]
                %221 = vst [vmem:[%s207 + $0x30] sm:$0xff] %v220
                %v222 = vld [vmem:[%s206 + $0x68] sm:$0xff]
                %223 = vst [vmem:[%s207 + $0x38] sm:$0xff] %v222
                %v224 = vld [vmem:[%s206 + $0x80] sm:$0xff]
                %225 = vst [vmem:[%s207 + $0x40] sm:$0xff] %v224
                %v226 = vld [vmem:[%s206 + $0x88] sm:$0xff]
                %227 = vst [vmem:[%s207 + $0x48] sm:$0xff] %v226
                %v228 = vld [vmem:[%s206 + $0xa0] sm:$0xff]
                %229 = vst [vmem:[%s207 + $0x50] sm:$0xff] %v228
                %v230 = vld [vmem:[%s206 + $0xa8] sm:$0xff]
                %231 = vst [vmem:[%s207 + $0x58] sm:$0xff] %v230
                %v232 = vld [vmem:[%s206 + $0xc0] sm:$0xff]
                %233 = vst [vmem:[%s207 + $0x60] sm:$0xff] %v232
                %v234 = vld [vmem:[%s206 + $0xc8] sm:$0xff]
                %235 = vst [vmem:[%s207 + $0x68] sm:$0xff] %v234
                %v236 = vld [vmem:[%s206 + $0xe0] sm:$0xff]
                %237 = vst [vmem:[%s207 + $0x70] sm:$0xff] %v236
                %v238 = vld [vmem:[%s206 + $0xe8] sm:$0xff]
                %239 = vst [vmem:[%s207 + $0x78] sm:$0xff] %v238
              $region33: #{bigram_bert_forward.10} parent=27 // loop_footer
                %s205 = sadd.s32 1, %s201
              $region34: #{bigram_bert_forward.10} parent=27 // loop_footer_branch
                %200 = sbr.rel target = $region30
              $region35: #{bigram_bert_forward.10} parent=27 // loop_exit
                _
            $region28: #{bigram_bert_forward.10} parent=23 // pred_fallthru
              _
            // Predicated region
            $region36: #{bigram_bert_forward.10} parent=23 // pred_check
              _
            $region37: #{bigram_bert_forward.10} parent=23 // pred_check_branch
              %241 = sbr.rel target = $region39
            $region38: #{bigram_bert_forward.10} parent=23 // pred_region
              _
            $region39: #{bigram_bert_forward.10} parent=23 // pred_fallthru
              _
          $region24: #{bigram_bert_forward.10} parent=19 // pred_fallthru
            _
          %242 = vnop
        $region20: #{bigram_bert_forward.10} parent=15 // pred_fallthru
          _
        // Predicated region
        $region40: #{bigram_bert_forward.10} parent=15 // pred_check
          %p243 = pneg %p89
        $region41: #{bigram_bert_forward.10} parent=15 // pred_check_branch
          %245 = sbr.rel (%p243) target = $region43
        $region42: #{bigram_bert_forward.10} parent=15 // pred_region
          %s246 = ssub.s32 1, %s16
          %s247 = smul.u32 %s246, %s17
          %s248 = ssub.s32 0, %s17
          %s249 = smul.u32 %s16, %s248
          %s250 = sadd.s32 %s247, %s249
          %s251 = smul.u32 8, %s250
          %p252 = scmp.lt.s32.totalorder %s251, 7
          %s253 = scalar_select %p252, %s251, 7
          %s254 = smul.addr %s253, 8
          %s255 = scalar_lea.vmem %s1, %s254
          %s256 = ssub.s32 1, %s16
          %s257 = smul.u32 %s256, %s17
          %s258 = ssub.s32 0, %s17
          %s259 = smul.u32 %s16, %s258
          %s260 = sadd.s32 %s257, %s259
          %s261 = smul.u32 8, %s260
        $region43: #{bigram_bert_forward.10} parent=15 // pred_fallthru
          _
        // Predicated region
        $region44: #{bigram_bert_forward.10} parent=15 // pred_check
          %p262 = pneg %p115
        $region45: #{bigram_bert_forward.10} parent=15 // pred_check_branch
          %264 = sbr.rel (%p262) target = $region47
        $region46: #{bigram_bert_forward.10} parent=15 // pred_region
          %p265 = scmp.lt.s32.totalorder %s16, 1
          %s266 = scalar_select %p265, %s16, 1
          %s267 = smul.addr %s266, 64
          %s268 = smul.addr %s267, 4
          %s269 = scalar_lea.vmem %s2, %s268
        $region47: #{bigram_bert_forward.10} parent=15 // pred_fallthru
          _
      $region16: #{bigram_bert_forward.10} parent=5 // pred_fallthru
        _
      %p270 = scmp.le.s32.totalorder 1, %s9
      %p271 = scmp.lt.s32.totalorder %s9, 3
      %p272 = pnand %p270, %p271
      %p273 = pneg %p272
      // Predicated region
      $region48: #{bigram_bert_forward.10} parent=5 // pred_check
        _
      $region49: #{bigram_bert_forward.10} parent=5 // pred_check_branch
        %275 = sbr.rel (%p272) target = $region51
      $region50: #{bigram_bert_forward.10} parent=5 // pred_region
        %s276 = ssub.s32 %s9, 1
        %s277 = sand.u32 %s46, 1
        %s278 = sand.u32 %s46, 1
        %s279 = smul.addr %s278, 128
        %s280 = scalar_lea.vmem [#allocation4], %s279
        // Predicated region
        $region52: #{bigram_bert_forward.10} parent=50 // pred_check
          %p281 = pneg %p59
        $region53: #{bigram_bert_forward.10} parent=50 // pred_check_branch
          %283 = sbr.rel (%p281) target = $region55
        $region54: #{bigram_bert_forward.10} parent=50 // pred_region
          _
        $region55: #{bigram_bert_forward.10} parent=50 // pred_fallthru
          _
        %s284 = sand.u32 %s46, 1
        %s285 = sand.u32 %s46, 1
        %s286 = smul.addr %s285, 128
        %s287 = scalar_lea.vmem [#allocation4], %s286
        %p288 = pneg %p59
        %p289 = pneg %p56
        %s290 = ssub.s32 1, %s18
        %s291 = smul.u32 %s290, %s19
        %s292 = ssub.s32 0, %s19
        %s293 = smul.u32 %s18, %s292
        %s294 = sadd.s32 %s291, %s293
        %s295 = smul.u32 8, %s294
        %p296 = scmp.lt.s32.totalorder %s295, 7
        %s297 = scalar_select %p296, %s295, 7
        %s298 = smul.addr %s297, 8
        %s299 = scalar_lea.vmem %s1, %s298
        %p300 = pneg %p95
        %p301 = pneg %p92
        %p302 = scmp.lt.s32.totalorder %s18, 1
        %s303 = scalar_select %p302, %s18, 1
        %s304 = smul.addr %s303, 64
        %s305 = smul.addr %s304, 4
        %s306 = scalar_lea.vmem %s2, %s305
        %p307 = pneg %p121
        %p308 = pneg %p118
        %p309 = pneg %p159
        %p310 = pneg %p156
        %s311 = sand.u32 %s146, 1
        %s312 = sand.u32 %s146, 1
        %s313 = smul.addr %s312, 32
        %s314 = scalar_lea.vmem [#allocation5], %s313
        %s315 = ssub.s32 1, %s18
        %s316 = smul.u32 %s315, %s19
        %s317 = ssub.s32 0, %s19
        %s318 = smul.u32 %s18, %s317
        %s319 = sadd.s32 %s316, %s318
        %s320 = smul.u32 8, %s319
        %s321 = smul.u32 4, %s18
        %s322 = ssub.s32 1, %s18
        %s323 = smul.u32 %s322, %s19
        %s324 = ssub.s32 0, %s19
        %s325 = smul.u32 %s18, %s324
        %s326 = sadd.s32 %s323, %s325
        %s327 = smul.u32 8, %s326
        %p328 = scmp.lt.s32.totalorder %s327, 7
        %s329 = scalar_select %p328, %s327, 7
        %s330 = smul.addr %s329, 8
        %s331 = scalar_lea.vmem %s1, %s330
        %s332 = ssub.s32 1, %s18
        %s333 = smul.u32 %s332, %s19
        %s334 = ssub.s32 0, %s19
        %s335 = smul.u32 %s18, %s334
        %s336 = sadd.s32 %s333, %s335
        %s337 = smul.u32 8, %s336
        %p338 = scmp.lt.s32.totalorder %s18, 1
        %s339 = scalar_select %p338, %s18, 1
        %s340 = smul.addr %s339, 64
        %s341 = smul.addr %s340, 4
        %s342 = scalar_lea.vmem %s2, %s341
        %s343 = ssub.s32 1, %s18
        %s344 = smul.u32 %s343, %s19
        %s345 = ssub.s32 0, %s19
        %s346 = smul.u32 %s18, %s345
        %s347 = sadd.s32 %s344, %s346
        %s348 = smul.u32 8, %s347
        %p349 = scmp.eq.s32.totalorder %s19, 0
        // Predicated region
        $region56: #{bigram_bert_forward.10} parent=50 // pred_check
          %p350 = pneg %p349
        $region57: #{bigram_bert_forward.10} parent=50 // pred_check_branch
          %352 = sbr.rel (%p350) target = $region59
        $region58: #{bigram_bert_forward.10} parent=50 // pred_region
          %353 = vst [vmem:[#allocation2] sm:$0xff] 0.0
          %354 = vst [vmem:[#allocation3] sm:$0xff] 0.0
        $region59: #{bigram_bert_forward.10} parent=50 // pred_fallthru
          _
        %s355 = smul.u32 %s18, 7
        %s356 = smul.u32 %s18, 2
        %s357 = ssub.s32 1, %s356
        loop: start=0, step=1, limit=8
        $region60: #{bigram_bert_forward.10} parent=50 // loop_pre_header
          _
        $region61: #{bigram_bert_forward.10} parent=50 // loop_header
          %s359 = sphi 0, %s363
          %p360 = scmp.ge.s32.totalorder %s359, 8
        $region62: #{bigram_bert_forward.10} parent=50 // loop_header_branch
          %362 = sbr.rel (%p360) target = $region66
        $region63: #{bigram_bert_forward.10} parent=50 // loop_body
          %s364 = smul.u32 %s357, %s359
          %s365 = sadd.s32 %s355, %s364
          %v366 = vld [vmem:[#allocation2] sm:$0xff]
          %v367 = vpack.c.bf16 %v366, %v366
          %v368 = vld [vmem:[%s342] sm:$0xff]
          %v369 = vld [vmem:[%s342 + $0x8] sm:$0xff]
          %v370 = vld [vmem:[%s342 + $0x10] sm:$0xff]
          %v371 = vld [vmem:[%s342 + $0x18] sm:$0xff]
          %v372 = vld [vmem:[%s342 + $0x20] sm:$0xff]
          %v373 = vld [vmem:[%s342 + $0x28] sm:$0xff]
          %v374 = vld [vmem:[%s342 + $0x30] sm:$0xff]
          %v375 = vld [vmem:[%s342 + $0x38] sm:$0xff]
          %v376 = vld [vmem:[%s342 + $0x40] sm:$0xff]
          %v377 = vld [vmem:[%s342 + $0x48] sm:$0xff]
          %v378 = vld [vmem:[%s342 + $0x50] sm:$0xff]
          %v379 = vld [vmem:[%s342 + $0x58] sm:$0xff]
          %v380 = vld [vmem:[%s342 + $0x60] sm:$0xff]
          %v381 = vld [vmem:[%s342 + $0x68] sm:$0xff]
          %v382 = vld [vmem:[%s342 + $0x70] sm:$0xff]
          %v383 = vld [vmem:[%s342 + $0x78] sm:$0xff]
          %v384 = vld [vmem:[%s342 + $0x80] sm:$0xff]
          %v385 = vld [vmem:[%s342 + $0x88] sm:$0xff]
          %v386 = vld [vmem:[%s342 + $0x90] sm:$0xff]
          %v387 = vld [vmem:[%s342 + $0x98] sm:$0xff]
          %v388 = vld [vmem:[%s342 + $0xa0] sm:$0xff]
          %v389 = vld [vmem:[%s342 + $0xa8] sm:$0xff]
          %v390 = vld [vmem:[%s342 + $0xb0] sm:$0xff]
          %v391 = vld [vmem:[%s342 + $0xb8] sm:$0xff]
          %v392 = vld [vmem:[%s342 + $0xc0] sm:$0xff]
          %v393 = vld [vmem:[%s342 + $0xc8] sm:$0xff]
          %v394 = vld [vmem:[%s342 + $0xd0] sm:$0xff]
          %v395 = vld [vmem:[%s342 + $0xd8] sm:$0xff]
          %v396 = vld [vmem:[%s342 + $0xe0] sm:$0xff]
          %v397 = vld [vmem:[%s342 + $0xe8] sm:$0xff]
          %v398 = vld [vmem:[%s342 + $0xf0] sm:$0xff]
          %v399 = vld [vmem:[%s342 + $0xf8] sm:$0xff]
          %s400 = smul.u32 %s365, 4
          %s401 = smul.addr %s400, 4
          %s402 = scalar_lea.vmem %s280, %s401 [#allocation4]
          %v403 = vld [vmem:[%s402] sm:$0xff]
          %v404 = vld [vmem:[%s402 + $0x8] sm:$0xff]
          %v405 = vunpack.c.l.bf16 %v403
          %v406 = vunpack.c.h.bf16 %v403
          %v407 = vunpack.c.l.bf16 %v404
          %v408 = vunpack.c.h.bf16 %v404
          %v441 = vunpack.c.l.b16 %v368
          %v442 = vunpack.c.h.b16 %v368
          %v443 = vunpack.c.l.b16 %v369
          %v444 = vunpack.c.h.b16 %v369
          %v445 = vunpack.c.l.b16 %v370
          %v446 = vunpack.c.h.b16 %v370
          %v447 = vunpack.c.l.b16 %v371
          %v448 = vunpack.c.h.b16 %v371
          %v449 = vunpack.c.l.b16 %v372
          %v450 = vunpack.c.h.b16 %v372
          %v451 = vunpack.c.l.b16 %v373
          %v452 = vunpack.c.h.b16 %v373
          %v453 = vunpack.c.l.b16 %v374
          %v454 = vunpack.c.h.b16 %v374
          %v455 = vunpack.c.l.b16 %v375
          %v456 = vunpack.c.h.b16 %v375
          %v457 = vunpack.c.l.b16 %v376
          %v458 = vunpack.c.h.b16 %v376
          %v459 = vunpack.c.l.b16 %v377
          %v460 = vunpack.c.h.b16 %v377
          %v461 = vunpack.c.l.b16 %v378
          %v462 = vunpack.c.h.b16 %v378
          %v463 = vunpack.c.l.b16 %v379
          %v464 = vunpack.c.h.b16 %v379
          %v465 = vunpack.c.l.b16 %v380
          %v466 = vunpack.c.h.b16 %v380
          %v467 = vunpack.c.l.b16 %v381
          %v468 = vunpack.c.h.b16 %v381
          %v469 = vunpack.c.l.b16 %v382
          %v470 = vunpack.c.h.b16 %v382
          %v471 = vunpack.c.l.b16 %v383
          %v472 = vunpack.c.h.b16 %v383
          %v473 = vunpack.c.l.b16 %v384
          %v474 = vunpack.c.h.b16 %v384
          %v475 = vunpack.c.l.b16 %v385
          %v476 = vunpack.c.h.b16 %v385
          %v477 = vunpack.c.l.b16 %v386
          %v478 = vunpack.c.h.b16 %v386
          %v479 = vunpack.c.l.b16 %v387
          %v480 = vunpack.c.h.b16 %v387
          %v481 = vunpack.c.l.b16 %v388
          %v482 = vunpack.c.h.b16 %v388
          %v483 = vunpack.c.l.b16 %v389
          %v484 = vunpack.c.h.b16 %v389
          %v485 = vunpack.c.l.b16 %v390
          %v486 = vunpack.c.h.b16 %v390
          %v487 = vunpack.c.l.b16 %v391
          %v488 = vunpack.c.h.b16 %v391
          %v489 = vunpack.c.l.b16 %v392
          %v490 = vunpack.c.h.b16 %v392
          %v491 = vunpack.c.l.b16 %v393
          %v492 = vunpack.c.h.b16 %v393
          %v493 = vunpack.c.l.b16 %v394
          %v494 = vunpack.c.h.b16 %v394
          %v495 = vunpack.c.l.b16 %v395
          %v496 = vunpack.c.h.b16 %v395
          %v497 = vunpack.c.l.b16 %v396
          %v498 = vunpack.c.h.b16 %v396
          %v499 = vunpack.c.l.b16 %v397
          %v500 = vunpack.c.h.b16 %v397
          %v501 = vunpack.c.l.b16 %v398
          %v502 = vunpack.c.h.b16 %v398
          %v503 = vunpack.c.l.b16 %v399
          %v504 = vunpack.c.h.b16 %v399
          %v505 = vpack.c.b16 %v445, %v441
          %v506 = vpack.c.b16 %v446, %v442
          %v507 = vpack.c.b16 %v447, %v443
          %v508 = vpack.c.b16 %v448, %v444
          %v509 = vpack.c.b16 %v453, %v449
          %v510 = vpack.c.b16 %v454, %v450
          %v511 = vpack.c.b16 %v455, %v451
          %v512 = vpack.c.b16 %v456, %v452
          %v513 = vpack.c.b16 %v461, %v457
          %v514 = vpack.c.b16 %v462, %v458
          %v515 = vpack.c.b16 %v463, %v459
          %v516 = vpack.c.b16 %v464, %v460
          %v517 = vpack.c.b16 %v469, %v465
          %v518 = vpack.c.b16 %v470, %v466
          %v519 = vpack.c.b16 %v471, %v467
          %v520 = vpack.c.b16 %v472, %v468
          %v521 = vpack.c.b16 %v477, %v473
          %v522 = vpack.c.b16 %v478, %v474
          %v523 = vpack.c.b16 %v479, %v475
          %v524 = vpack.c.b16 %v480, %v476
          %v525 = vpack.c.b16 %v485, %v481
          %v526 = vpack.c.b16 %v486, %v482
          %v527 = vpack.c.b16 %v487, %v483
          %v528 = vpack.c.b16 %v488, %v484
          %v529 = vpack.c.b16 %v493, %v489
          %v530 = vpack.c.b16 %v494, %v490
          %v531 = vpack.c.b16 %v495, %v491
          %v532 = vpack.c.b16 %v496, %v492
          %v533 = vpack.c.b16 %v501, %v497
          %v534 = vpack.c.b16 %v502, %v498
          %v535 = vpack.c.b16 %v503, %v499
          %v536 = vpack.c.b16 %v504, %v500
          %569 = vmatpush.bf16.msra.mxu0 %v533
          %570 = vmatpush.bf16.msra.mxu0 %v529
          %571 = vmatpush.bf16.msra.mxu0 %v525
          %572 = vmatpush.bf16.msra.mxu0 %v521
          %573 = vmatpush.bf16.msra.mxu0 %v517
          %574 = vmatpush.bf16.msra.mxu0 %v513
          %575 = vmatpush.bf16.msra.mxu0 %v509
          %576 = vmatpush.bf16.msra.mxu0 %v505
          %577 = vmatmul.bf16.gmra.mxu0 %v367
          %v578 = vpop.f32.mrf.mxu0
          %v579 = vadd.f32 %v405, %v578
          %v580 = vpop.f32.mrf.mxu0
          %581 = vdwg.mxu0
          %582 = vmatpush.bf16.msra.mxu0 %v534
          %583 = vmatpush.bf16.msra.mxu0 %v530
          %584 = vmatpush.bf16.msra.mxu0 %v526
          %585 = vmatpush.bf16.msra.mxu0 %v522
          %586 = vmatpush.bf16.msra.mxu0 %v518
          %587 = vmatpush.bf16.msra.mxu0 %v514
          %588 = vmatpush.bf16.msra.mxu0 %v510
          %589 = vmatpush.bf16.msra.mxu0 %v506
          %590 = vmatmul.bf16.gmra.mxu0 %v367
          %v591 = vpop.f32.mrf.mxu0
          %v592 = vadd.f32 %v406, %v591
          %v593 = vpop.f32.mrf.mxu0
          %594 = vdwg.mxu0
          %595 = vmatpush.bf16.msra.mxu0 %v535
          %596 = vmatpush.bf16.msra.mxu0 %v531
          %597 = vmatpush.bf16.msra.mxu0 %v527
          %598 = vmatpush.bf16.msra.mxu0 %v523
          %599 = vmatpush.bf16.msra.mxu0 %v519
          %600 = vmatpush.bf16.msra.mxu0 %v515
          %601 = vmatpush.bf16.msra.mxu0 %v511
          %602 = vmatpush.bf16.msra.mxu0 %v507
          %603 = vmatmul.bf16.gmra.mxu0 %v367
          %v604 = vpop.f32.mrf.mxu0
          %v605 = vadd.f32 %v407, %v604
          %v606 = vpop.f32.mrf.mxu0
          %607 = vdwg.mxu0
          %608 = vmatpush.bf16.msra.mxu0 %v536
          %609 = vmatpush.bf16.msra.mxu0 %v532
          %610 = vmatpush.bf16.msra.mxu0 %v528
          %611 = vmatpush.bf16.msra.mxu0 %v524
          %612 = vmatpush.bf16.msra.mxu0 %v520
          %613 = vmatpush.bf16.msra.mxu0 %v516
          %614 = vmatpush.bf16.msra.mxu0 %v512
          %615 = vmatpush.bf16.msra.mxu0 %v508
          %616 = vmatmul.bf16.gmra.mxu0 %v367
          %v617 = vpop.f32.mrf.mxu0
          %v618 = vadd.f32 %v408, %v617
          %v619 = vpop.f32.mrf.mxu0
          %620 = vdwg.mxu0
          %v621 = vxor.u32 %v579, 2147483648
          %v622 = vmul.f32 %v621, 1.442695
          %v623 = vpow.pop %v622
          %v624 = vadd.f32 %v623, 1.0
          %v625 = vrcp.pop %v624
          %v626 = vmul.f32 %v624, %v625
          %v627 = vsub.f32 1.0, %v626
          %v628 = vmul.f32 %v625, %v627
          %v629 = vadd.f32 %v625, %v628
          %vm630 = vweird.f32 %v624
          %vm631 = vweird.f32 %v625
          %vm632 = vmor %vm630, %vm631
          %v633 = vsel %vm632, %v625, %v629
          %v634 = vand.u32 2147483647, %v624
          %vm635 = vcmp.eq.f32.partialorder %v634, 8.507059e+37
          %v636 = vand.u32 %v624, 2147483648
          %v637 = vor.u32 1.1754944e-38, %v636
          %v638 = vsel %vm635, %v637, %v633
          %v639 = vmul.f32 1.0, %v638
          %v640 = vxor.u32 %v592, 2147483648
          %v641 = vmul.f32 %v640, 1.442695
          %v642 = vpow.pop %v641
          %v643 = vadd.f32 %v642, 1.0
          %v644 = vrcp.pop %v643
          %v645 = vmul.f32 %v643, %v644
          %v646 = vsub.f32 1.0, %v645
          %v647 = vmul.f32 %v644, %v646
          %v648 = vadd.f32 %v644, %v647
          %vm649 = vweird.f32 %v643
          %vm650 = vweird.f32 %v644
          %vm651 = vmor %vm649, %vm650
          %v652 = vsel %vm651, %v644, %v648
          %v653 = vand.u32 2147483647, %v643
          %vm654 = vcmp.eq.f32.partialorder %v653, 8.507059e+37
          %v655 = vand.u32 %v643, 2147483648
          %v656 = vor.u32 1.1754944e-38, %v655
          %v657 = vsel %vm654, %v656, %v652
          %v658 = vmul.f32 1.0, %v657
          %v659 = vtanh.pop %v605
          %v660 = vxor.u32 %v618, 2147483648
          %v661 = vmul.f32 %v660, 1.442695
          %v662 = vpow.pop %v661
          %v663 = vadd.f32 %v662, 1.0
          %v664 = vrcp.pop %v663
          %v665 = vmul.f32 %v663, %v664
          %v666 = vsub.f32 1.0, %v665
          %v667 = vmul.f32 %v664, %v666
          %v668 = vadd.f32 %v664, %v667
          %vm669 = vweird.f32 %v663
          %vm670 = vweird.f32 %v664
          %vm671 = vmor %vm669, %vm670
          %v672 = vsel %vm671, %v664, %v668
          %v673 = vand.u32 2147483647, %v663
          %vm674 = vcmp.eq.f32.partialorder %v673, 8.507059e+37
          %v675 = vand.u32 %v663, 2147483648
          %v676 = vor.u32 1.1754944e-38, %v675
          %v677 = vsel %vm674, %v676, %v672
          %v678 = vmul.f32 1.0, %v677
          %v679 = vld [vmem:[#allocation3] sm:$0xff]
          %v680 = vmul.f32 %v658, %v679
          %v681 = vmul.f32 %v639, %v659
          %v682 = vadd.f32 %v680, %v681
          %v683 = vtanh.pop %v682
          %v684 = vmul.f32 %v678, %v683
          %s685 = smul.u32 %s365, 8
          %s686 = scalar_lea.vmem %s331, %s685
          %v687 = vld [vmem:[%s686] sm:$0xff]
          %vm688 = vcmp.gt.f32.partialorder %v687, 0.0
          %v689 = vsel %vm688, 1, 0
          %690 = vset.pattern.permute.xlu0 0
          %691 = vperm.xlu0 %690, %v689
          %v692 = vpop.permute.xlu0 %691
          %vm693 = vcmp.eq.s32.totalorder %v692, 1
          %v694 = vsel %vm693, %v682, %v679
          %695 = vst [vmem:[#allocation3] sm:$0xff] %v694
          %v696 = vld [vmem:[#allocation2] sm:$0xff]
          %v697 = vsel %vm693, %v684, %v696
          %698 = vst [vmem:[#allocation2] sm:$0xff] %v697
          %v699 = vsel %vm693, %v684, 0.0
          %v700 = vpack.c.bf16 %v699, %v699
          %s701 = smul.addr %s365, 4
          %s702 = scalar_lea.vmem %s314, %s701 [#allocation5]
          %703 = vst [vmem:[%s702] sm:$0xf] %v700
        $region64: #{bigram_bert_forward.10} parent=50 // loop_footer
          %s363 = sadd.s32 1, %s359
        $region65: #{bigram_bert_forward.10} parent=50 // loop_footer_branch
          %358 = sbr.rel target = $region61
        $region66: #{bigram_bert_forward.10} parent=50 // loop_exit
          _
        %s704 = sand.u32 %s146, 1
        %s705 = sand.u32 %s146, 1
        %s706 = smul.addr %s705, 32
        %s707 = scalar_lea.vmem [#allocation5], %s706
        // Predicated region
        $region67: #{bigram_bert_forward.10} parent=50 // pred_check
          %p708 = pneg %p156
        $region68: #{bigram_bert_forward.10} parent=50 // pred_check_branch
          %710 = sbr.rel (%p708) target = $region70
        $region69: #{bigram_bert_forward.10} parent=50 // pred_region
          %s711 = ssub.s32 1, %s18
          %s712 = smul.u32 %s711, %s19
          %s713 = ssub.s32 0, %s19
          %s714 = smul.u32 %s18, %s713
          %s715 = sadd.s32 %s712, %s714
          %s716 = smul.u32 8, %s715
          %s717 = smul.addr %s716, 2
          %s718 = sadd.s32 %s18, %s717
          %s719 = smul.addr %s718, 4
          %s720 = scalar_lea.vmem %s3, %s719
          // Predicated region
          $region71: #{bigram_bert_forward.10} parent=69 // pred_check
            _
          $region72: #{bigram_bert_forward.10} parent=69 // pred_check_branch
            %722 = sbr.rel (0) target = $region74
          $region73: #{bigram_bert_forward.10} parent=69 // pred_region
            // Predicated region
            $region75: #{bigram_bert_forward.10} parent=73 // pred_check
              _
            $region76: #{bigram_bert_forward.10} parent=73 // pred_check_branch
              %724 = sbr.rel target = $region78
            $region77: #{bigram_bert_forward.10} parent=73 // pred_region
              // Predicated region
              $region90: #{bigram_bert_forward.10} parent=77 // pred_check
                _
              $region91: #{bigram_bert_forward.10} parent=77 // pred_check_branch
                %754 = sbr.rel (0) target = $region93
              $region92: #{bigram_bert_forward.10} parent=77 // pred_region
                loop: start=0, step=1, limit=1
                $region94: #{bigram_bert_forward.10} parent=92 // loop_pre_header
                  _
                $region95: #{bigram_bert_forward.10} parent=92 // loop_header
                  %s756 = sphi 0, %s760
                  %p757 = scmp.ge.s32.totalorder %s756, 1
                  %s761 = sphi %s707, %s707
                  %s762 = sphi %s720, %s720
                $region96: #{bigram_bert_forward.10} parent=92 // loop_header_branch
                  %759 = sbr.rel (%p757) target = $region100
                $region97: #{bigram_bert_forward.10} parent=92 // loop_body
                  _
                $region98: #{bigram_bert_forward.10} parent=92 // loop_footer
                  %s760 = sadd.s32 1, %s756
                $region99: #{bigram_bert_forward.10} parent=92 // loop_footer_branch
                  %755 = sbr.rel target = $region95
                $region100: #{bigram_bert_forward.10} parent=92 // loop_exit
                  _
                %s764 = ssub.s32 16, 1
                loop: start=0, step=1, limit=1
                $region101: #{bigram_bert_forward.10} parent=92 // loop_pre_header
                  _
                $region102: #{bigram_bert_forward.10} parent=92 // loop_header
                  %s766 = sphi 0, %s770
                  %p767 = scmp.ge.s32.totalorder %s766, 1
                  %s771 = sphi %s707, %s707
                  %s772 = sphi %s720, %s720
                $region103: #{bigram_bert_forward.10} parent=92 // loop_header_branch
                  %769 = sbr.rel (%p767) target = $region107
                $region104: #{bigram_bert_forward.10} parent=92 // loop_body
                  %v773 = vld [vmem:[%s771] sm:%s764]
                  %774 = vst [vmem:[%s772] sm:%s764] %v773
                  %v775 = vld [vmem:[%s771 + $0x4] sm:%s764]
                  %776 = vst [vmem:[%s772 + $0x8] sm:%s764] %v775
                  %v777 = vld [vmem:[%s771 + $0x8] sm:%s764]
                  %778 = vst [vmem:[%s772 + $0x10] sm:%s764] %v777
                  %v779 = vld [vmem:[%s771 + $0xc] sm:%s764]
                  %780 = vst [vmem:[%s772 + $0x18] sm:%s764] %v779
                  %v781 = vld [vmem:[%s771 + $0x10] sm:%s764]
                  %782 = vst [vmem:[%s772 + $0x20] sm:%s764] %v781
                  %v783 = vld [vmem:[%s771 + $0x14] sm:%s764]
                  %784 = vst [vmem:[%s772 + $0x28] sm:%s764] %v783
                  %v785 = vld [vmem:[%s771 + $0x18] sm:%s764]
                  %786 = vst [vmem:[%s772 + $0x30] sm:%s764] %v785
                  %v787 = vld [vmem:[%s771 + $0x1c] sm:%s764]
                  %788 = vst [vmem:[%s772 + $0x38] sm:%s764] %v787
                $region105: #{bigram_bert_forward.10} parent=92 // loop_footer
                  %s770 = sadd.s32 1, %s766
                $region106: #{bigram_bert_forward.10} parent=92 // loop_footer_branch
                  %765 = sbr.rel target = $region102
                $region107: #{bigram_bert_forward.10} parent=92 // loop_exit
                  _
              $region93: #{bigram_bert_forward.10} parent=77 // pred_fallthru
                _
            $region78: #{bigram_bert_forward.10} parent=73 // pred_fallthru
              _
            // Predicated region
            $region79: #{bigram_bert_forward.10} parent=73 // pred_check
              _
            $region80: #{bigram_bert_forward.10} parent=73 // pred_check_branch
              %726 = sbr.rel (0) target = $region82
            $region81: #{bigram_bert_forward.10} parent=73 // pred_region
              %s728 = ssub.s32 16, 1
              loop: start=0, step=1, limit=1
              $region83: #{bigram_bert_forward.10} parent=81 // loop_pre_header
                _
              $region84: #{bigram_bert_forward.10} parent=81 // loop_header
                %s730 = sphi 0, %s734
                %p731 = scmp.ge.s32.totalorder %s730, 1
                %s735 = sphi %s707, %s707
                %s736 = sphi %s720, %s720
              $region85: #{bigram_bert_forward.10} parent=81 // loop_header_branch
                %733 = sbr.rel (%p731) target = $region89
              $region86: #{bigram_bert_forward.10} parent=81 // loop_body
                %v737 = vld [vmem:[%s735] sm:%s728]
                %738 = vst [vmem:[%s736] sm:%s728] %v737
                %v739 = vld [vmem:[%s735 + $0x4] sm:%s728]
                %740 = vst [vmem:[%s736 + $0x8] sm:%s728] %v739
                %v741 = vld [vmem:[%s735 + $0x8] sm:%s728]
                %742 = vst [vmem:[%s736 + $0x10] sm:%s728] %v741
                %v743 = vld [vmem:[%s735 + $0xc] sm:%s728]
                %744 = vst [vmem:[%s736 + $0x18] sm:%s728] %v743
                %v745 = vld [vmem:[%s735 + $0x10] sm:%s728]
                %746 = vst [vmem:[%s736 + $0x20] sm:%s728] %v745
                %v747 = vld [vmem:[%s735 + $0x14] sm:%s728]
                %748 = vst [vmem:[%s736 + $0x28] sm:%s728] %v747
                %v749 = vld [vmem:[%s735 + $0x18] sm:%s728]
                %750 = vst [vmem:[%s736 + $0x30] sm:%s728] %v749
                %v751 = vld [vmem:[%s735 + $0x1c] sm:%s728]
                %752 = vst [vmem:[%s736 + $0x38] sm:%s728] %v751
              $region87: #{bigram_bert_forward.10} parent=81 // loop_footer
                %s734 = sadd.s32 1, %s730
              $region88: #{bigram_bert_forward.10} parent=81 // loop_footer_branch
                %729 = sbr.rel target = $region84
              $region89: #{bigram_bert_forward.10} parent=81 // loop_exit
                _
            $region82: #{bigram_bert_forward.10} parent=73 // pred_fallthru
              _
          $region74: #{bigram_bert_forward.10} parent=69 // pred_fallthru
            _
          %789 = vnop
        $region70: #{bigram_bert_forward.10} parent=50 // pred_fallthru
          _
      $region51: #{bigram_bert_forward.10} parent=5 // pred_fallthru
        _
      %p790 = scmp.le.s32.totalorder 2, %s9
      // Predicated region
      $region108: #{bigram_bert_forward.10} parent=5 // pred_check
        %p791 = pneg %p790
      $region109: #{bigram_bert_forward.10} parent=5 // pred_check_branch
        %793 = sbr.rel (%p791) target = $region111
      $region110: #{bigram_bert_forward.10} parent=5 // pred_region
        %s794 = ssub.s32 %s9, 2
        // Predicated region
        $region112: #{bigram_bert_forward.10} parent=110 // pred_check
          %p795 = pneg %p162
        $region113: #{bigram_bert_forward.10} parent=110 // pred_check_branch
          %797 = sbr.rel (%p795) target = $region115
        $region114: #{bigram_bert_forward.10} parent=110 // pred_region
          %s798 = sand.u32 %s147, 1
          %s799 = sand.u32 %s147, 1
          %s800 = smul.addr %s799, 32
          %s801 = scalar_lea.vmem [#allocation5], %s800
        $region115: #{bigram_bert_forward.10} parent=110 // pred_fallthru
          _
      $region111: #{bigram_bert_forward.10} parent=5 // pred_fallthru
        _
    $region6: #{bigram_bert_forward.10} parent=1 // loop_footer
      %s13 = sadd.s32 1, %s9
    $region7: #{bigram_bert_forward.10} parent=1 // loop_footer_branch
      %8 = sbr.rel target = $region3
    $region8: #{bigram_bert_forward.10} parent=1 // loop_exit
      _

// kernel: bigram_bert_forward.13
$region0: #{bigram_bert_forward.13}
  #allocation0 [shape = 'u32[]', space=smem, size = 0x4, offset = 0x4, fixed_abs, tag = 'smem constant byte address 0x4 - core index']
  #allocation1 [shape = 'u32[72,128]{1,0:T(1,128)}', space=vmem, size = 0x9000, scoped, tag = 'internal scratch']
  %s0 = inlined_call_operand.vmem [shape: bf16[64,256], index: 0, kind: input, shape index: {}]
  %s1 = inlined_call_operand.vmem [shape: bf16[256,128], index: 1, kind: input, shape index: {}]
  %s2 = inlined_call_operand.vmem [shape: f32[1,128], index: 2, kind: input, shape index: {}]
  %s3 = inlined_call_operand.vmem [shape: f32[64,128], index: 3, kind: output, shape index: {}]
  %s4 = sld [smem:[#allocation0]]
  $region22: #{bigram_bert_forward.13} parent=0
    _
  %s6 = ssub.s32 1, %s4
  %s7 = scalar_select 0, %s6, %s4
  // Predicated region
  $region2: #{bigram_bert_forward.13} parent=0 // pred_check
    _
  $region3: #{bigram_bert_forward.13} parent=0 // pred_check_branch
    %9 = sbr.rel (0) target = $region5
  $region4: #{bigram_bert_forward.13} parent=0 // pred_region
    _
  $region5: #{bigram_bert_forward.13} parent=0 // pred_fallthru
    _
  // Predicated region
  $region6: #{bigram_bert_forward.13} parent=0 // pred_check
    _
  $region7: #{bigram_bert_forward.13} parent=0 // pred_check_branch
    %11 = sbr.rel (0) target = $region9
  $region8: #{bigram_bert_forward.13} parent=0 // pred_region
    _
  $region9: #{bigram_bert_forward.13} parent=0 // pred_fallthru
    _
  // Predicated region
  $region10: #{bigram_bert_forward.13} parent=0 // pred_check
    _
  $region11: #{bigram_bert_forward.13} parent=0 // pred_check_branch
    %13 = sbr.rel (0) target = $region13
  $region12: #{bigram_bert_forward.13} parent=0 // pred_region
    _
  $region13: #{bigram_bert_forward.13} parent=0 // pred_fallthru
    _
  %v14 = vld [vmem:[%s0] sm:$0xff]
  %v15 = vld [vmem:[%s0 + $0x8] sm:$0xff]
  %v16 = vld [vmem:[%s0 + $0x10] sm:$0xff]
  %v17 = vld [vmem:[%s0 + $0x18] sm:$0xff]
  %v18 = vld [vmem:[%s0 + $0x20] sm:$0xff]
  %v19 = vld [vmem:[%s0 + $0x28] sm:$0xff]
  %v20 = vld [vmem:[%s0 + $0x30] sm:$0xff]
  %v21 = vld [vmem:[%s0 + $0x38] sm:$0xff]
  %v22 = vld [vmem:[%s1] sm:$0xf]
  %v23 = vld [vmem:[%s1 + $0x4] sm:$0xf]
  %v24 = vld [vmem:[%s1 + $0x8] sm:$0xf]
  %v25 = vld [vmem:[%s1 + $0xc] sm:$0xf]
  %v26 = vld [vmem:[%s1 + $0x10] sm:$0xf]
  %v27 = vld [vmem:[%s1 + $0x14] sm:$0xf]
  %v28 = vld [vmem:[%s1 + $0x18] sm:$0xf]
  %v29 = vld [vmem:[%s1 + $0x1c] sm:$0xf]
  %v30 = vld [vmem:[%s1 + $0x20] sm:$0xf]
  %v31 = vld [vmem:[%s1 + $0x24] sm:$0xf]
  %v32 = vld [vmem:[%s1 + $0x28] sm:$0xf]
  %v33 = vld [vmem:[%s1 + $0x2c] sm:$0xf]
  %v34 = vld [vmem:[%s1 + $0x30] sm:$0xf]
  %v35 = vld [vmem:[%s1 + $0x34] sm:$0xf]
  %v36 = vld [vmem:[%s1 + $0x38] sm:$0xf]
  %v37 = vld [vmem:[%s1 + $0x3c] sm:$0xf]
  %v38 = vld [vmem:[%s1 + $0x40] sm:$0xf]
  %v39 = vld [vmem:[%s1 + $0x44] sm:$0xf]
  %v40 = vld [vmem:[%s1 + $0x48] sm:$0xf]
  %v41 = vld [vmem:[%s1 + $0x4c] sm:$0xf]
  %v42 = vld [vmem:[%s1 + $0x50] sm:$0xf]
  %v43 = vld [vmem:[%s1 + $0x54] sm:$0xf]
  %v44 = vld [vmem:[%s1 + $0x58] sm:$0xf]
  %v45 = vld [vmem:[%s1 + $0x5c] sm:$0xf]
  %v46 = vld [vmem:[%s1 + $0x60] sm:$0xf]
  %v47 = vld [vmem:[%s1 + $0x64] sm:$0xf]
  %v48 = vld [vmem:[%s1 + $0x68] sm:$0xf]
  %v49 = vld [vmem:[%s1 + $0x6c] sm:$0xf]
  %v50 = vld [vmem:[%s1 + $0x70] sm:$0xf]
  %v51 = vld [vmem:[%s1 + $0x74] sm:$0xf]
  %v52 = vld [vmem:[%s1 + $0x78] sm:$0xf]
  %v53 = vld [vmem:[%s1 + $0x7c] sm:$0xf]
  %v54 = vld [vmem:[%s2] sm:$0x1]
  %v56 = vperm.slane %v54, 0
  %v66 = vunpack.c.l.b16 %v14
  %v67 = vunpack.c.h.b16 %v14
  %v68 = vunpack.c.l.b16 %v15
  %v69 = vunpack.c.h.b16 %v15
  %v70 = vunpack.c.l.b16 %v16
  %v71 = vunpack.c.h.b16 %v16
  %v72 = vunpack.c.l.b16 %v17
  %v73 = vunpack.c.h.b16 %v17
  %v74 = vunpack.c.l.b16 %v18
  %v75 = vunpack.c.h.b16 %v18
  %v76 = vunpack.c.l.b16 %v19
  %v77 = vunpack.c.h.b16 %v19
  %v78 = vunpack.c.l.b16 %v20
  %v79 = vunpack.c.h.b16 %v20
  %v80 = vunpack.c.l.b16 %v21
  %v81 = vunpack.c.h.b16 %v21
  %v82 = vpack.c.b16 %v68, %v66
  %v83 = vpack.c.b16 %v69, %v67
  %v84 = vpack.c.b16 %v72, %v70
  %v85 = vpack.c.b16 %v73, %v71
  %v86 = vpack.c.b16 %v76, %v74
  %v87 = vpack.c.b16 %v77, %v75
  %v88 = vpack.c.b16 %v80, %v78
  %v89 = vpack.c.b16 %v81, %v79
  %v130 = vunpack.c.l.b16 %v22
  %v131 = vunpack.c.l.b16 %v23
  %v132 = vunpack.c.l.b16 %v24
  %v133 = vunpack.c.l.b16 %v25
  %v134 = vunpack.c.l.b16 %v26
  %v135 = vunpack.c.l.b16 %v27
  %v136 = vunpack.c.l.b16 %v28
  %v137 = vunpack.c.l.b16 %v29
  %v138 = vunpack.c.l.b16 %v30
  %v139 = vunpack.c.l.b16 %v31
  %v140 = vunpack.c.l.b16 %v32
  %v141 = vunpack.c.l.b16 %v33
  %v142 = vunpack.c.l.b16 %v34
  %v143 = vunpack.c.l.b16 %v35
  %v144 = vunpack.c.l.b16 %v36
  %v145 = vunpack.c.l.b16 %v37
  %v146 = vunpack.c.l.b16 %v38
  %v147 = vunpack.c.l.b16 %v39
  %v148 = vunpack.c.l.b16 %v40
  %v149 = vunpack.c.l.b16 %v41
  %v150 = vunpack.c.l.b16 %v42
  %v151 = vunpack.c.l.b16 %v43
  %v152 = vunpack.c.l.b16 %v44
  %v153 = vunpack.c.l.b16 %v45
  %v154 = vunpack.c.l.b16 %v46
  %v155 = vunpack.c.l.b16 %v47
  %v156 = vunpack.c.l.b16 %v48
  %v157 = vunpack.c.l.b16 %v49
  %v158 = vunpack.c.l.b16 %v50
  %v159 = vunpack.c.l.b16 %v51
  %v160 = vunpack.c.l.b16 %v52
  %v161 = vunpack.c.l.b16 %v53
  %v162 = vpack.c.b16 %v131, %v130
  %v163 = vpack.c.b16 %v133, %v132
  %v164 = vpack.c.b16 %v135, %v134
  %v165 = vpack.c.b16 %v137, %v136
  %v166 = vpack.c.b16 %v139, %v138
  %v167 = vpack.c.b16 %v141, %v140
  %v168 = vpack.c.b16 %v143, %v142
  %v169 = vpack.c.b16 %v145, %v144
  %v170 = vpack.c.b16 %v147, %v146
  %v171 = vpack.c.b16 %v149, %v148
  %v172 = vpack.c.b16 %v151, %v150
  %v173 = vpack.c.b16 %v153, %v152
  %v174 = vpack.c.b16 %v155, %v154
  %v175 = vpack.c.b16 %v157, %v156
  %v176 = vpack.c.b16 %v159, %v158
  %v177 = vpack.c.b16 %v161, %v160
  %194 = vmatpush.bf16.msra.mxu0 %v169
  %195 = vmatpush.bf16.msra.mxu0 %v168
  %196 = vmatpush.bf16.msra.mxu0 %v167
  %197 = vmatpush.bf16.msra.mxu0 %v166
  %198 = vmatpush.bf16.msra.mxu0 %v165
  %199 = vmatpush.bf16.msra.mxu0 %v164
  %200 = vmatpush.bf16.msra.mxu0 %v163
  %201 = vmatpush.bf16.msra.mxu0 %v162
  %202 = vmatmul.bf16.gmra.mxu0 %v82
  %v203 = vpop.f32.mrf.mxu0
  %v204 = vadd.f32 %v56, %v203
  %v205 = vpop.f32.mrf.mxu0
  %v206 = vadd.f32 %v56, %v205
  %207 = vmatmul.bf16.gmra.mxu0 %v84
  %v208 = vpop.f32.mrf.mxu0
  %v209 = vadd.f32 %v56, %v208
  %v210 = vpop.f32.mrf.mxu0
  %v211 = vadd.f32 %v56, %v210
  %212 = vmatmul.bf16.gmra.mxu0 %v86
  %v213 = vpop.f32.mrf.mxu0
  %v214 = vadd.f32 %v56, %v213
  %v215 = vpop.f32.mrf.mxu0
  %v216 = vadd.f32 %v56, %v215
  %217 = vmatmul.bf16.gmra.mxu0 %v88
  %v218 = vpop.f32.mrf.mxu0
  %v219 = vadd.f32 %v56, %v218
  %v220 = vpop.f32.mrf.mxu0
  %v221 = vadd.f32 %v56, %v220
  %222 = vdwg.mxu0
  %223 = vmatpush.bf16.msra.mxu0 %v177
  %224 = vmatpush.bf16.msra.mxu0 %v176
  %225 = vmatpush.bf16.msra.mxu0 %v175
  %226 = vmatpush.bf16.msra.mxu0 %v174
  %227 = vmatpush.bf16.msra.mxu0 %v173
  %228 = vmatpush.bf16.msra.mxu0 %v172
  %229 = vmatpush.bf16.msra.mxu0 %v171
  %230 = vmatpush.bf16.msra.mxu0 %v170
  %231 = vmatmul.bf16.gmra.mxu0 %v83
  %v232 = vpop.f32.mrf.mxu0
  %v233 = vadd.f32 %v204, %v232
  %v234 = vpop.f32.mrf.mxu0
  %v235 = vadd.f32 %v206, %v234
  %236 = vmatmul.bf16.gmra.mxu0 %v85
  %v237 = vpop.f32.mrf.mxu0
  %v238 = vadd.f32 %v209, %v237
  %v239 = vpop.f32.mrf.mxu0
  %v240 = vadd.f32 %v211, %v239
  %241 = vmatmul.bf16.gmra.mxu0 %v87
  %v242 = vpop.f32.mrf.mxu0
  %v243 = vadd.f32 %v214, %v242
  %v244 = vpop.f32.mrf.mxu0
  %v245 = vadd.f32 %v216, %v244
  %246 = vmatmul.bf16.gmra.mxu0 %v89
  %v247 = vpop.f32.mrf.mxu0
  %v248 = vadd.f32 %v219, %v247
  %v249 = vpop.f32.mrf.mxu0
  %v250 = vadd.f32 %v221, %v249
  %251 = vdwg.mxu0
  %vm252 = vcmp.ge.f32.partialorder %v233, 0.0
  %vm253 = vcmp.ge.f32.partialorder %v235, 0.0
  %vm254 = vcmp.ge.f32.partialorder %v238, 0.0
  %vm255 = vcmp.ge.f32.partialorder %v240, 0.0
  %vm256 = vcmp.ge.f32.partialorder %v243, 0.0
  %vm257 = vcmp.ge.f32.partialorder %v245, 0.0
  %vm258 = vcmp.ge.f32.partialorder %v248, 0.0
  %vm259 = vcmp.ge.f32.partialorder %v250, 0.0
  %v260 = vmul.f32 %v233, 0.1
  %v261 = vmul.f32 %v235, 0.1
  %v262 = vmul.f32 %v238, 0.1
  %v263 = vmul.f32 %v240, 0.1
  %v264 = vmul.f32 %v243, 0.1
  %v265 = vmul.f32 %v245, 0.1
  %v266 = vmul.f32 %v248, 0.1
  %v267 = vmul.f32 %v250, 0.1
  %v268 = vsel %vm252, %v233, %v260
  %v269 = vsel %vm253, %v235, %v261
  %v270 = vsel %vm254, %v238, %v262
  %v271 = vsel %vm255, %v240, %v263
  %v272 = vsel %vm256, %v243, %v264
  %v273 = vsel %vm257, %v245, %v265
  %v274 = vsel %vm258, %v248, %v266
  %v275 = vsel %vm259, %v250, %v267
  %276 = vst [vmem:[%s3] sm:$0xff] %v268
  %277 = vst [vmem:[%s3 + $0x8] sm:$0xff] %v269
  %278 = vst [vmem:[%s3 + $0x10] sm:$0xff] %v270
  %279 = vst [vmem:[%s3 + $0x18] sm:$0xff] %v271
  %280 = vst [vmem:[%s3 + $0x20] sm:$0xff] %v272
  %281 = vst [vmem:[%s3 + $0x28] sm:$0xff] %v273
  %282 = vst [vmem:[%s3 + $0x30] sm:$0xff] %v274
  %283 = vst [vmem:[%s3 + $0x38] sm:$0xff] %v275
  // Predicated region
  $region14: #{bigram_bert_forward.13} parent=0 // pred_check
    _
  $region15: #{bigram_bert_forward.13} parent=0 // pred_check_branch
    %285 = sbr.rel (0) target = $region17
  $region16: #{bigram_bert_forward.13} parent=0 // pred_region
    _
  $region17: #{bigram_bert_forward.13} parent=0 // pred_fallthru
    _
  // Predicated region
  $region18: #{bigram_bert_forward.13} parent=0 // pred_check
    _
  $region19: #{bigram_bert_forward.13} parent=0 // pred_check_branch
    %287 = sbr.rel (0) target = $region21
  $region20: #{bigram_bert_forward.13} parent=0 // pred_region
    _
  $region21: #{bigram_bert_forward.13} parent=0 // pred_fallthru
    _

// kernel: bigram_bert_forward.11
$region0: #{bigram_bert_forward.11}
  #allocation0 [shape = 'u32[]', space=smem, size = 0x4, offset = 0x4, fixed_abs, tag = 'smem constant byte address 0x4 - core index']
  #allocation1 [shape = 'u32[72,128]{1,0:T(1,128)}', space=vmem, size = 0x9000, scoped, tag = 'internal scratch']
  %s0 = inlined_call_operand.vmem [shape: bf16[64,256], index: 0, kind: input, shape index: {}]
  %s1 = inlined_call_operand.vmem [shape: bf16[256,1024], index: 1, kind: input, shape index: {}]
  %s2 = inlined_call_operand.vmem [shape: f32[1,1024], index: 2, kind: input, shape index: {}]
  %s3 = inlined_call_operand.vmem [shape: bf16[64,1024], index: 3, kind: output, shape index: {}]
  %s4 = sld [smem:[#allocation0]]
  $region22: #{bigram_bert_forward.11} parent=0
    _
  %s6 = ssub.s32 1, %s4
  %s7 = scalar_select 0, %s6, %s4
  // Predicated region
  $region2: #{bigram_bert_forward.11} parent=0 // pred_check
    _
  $region3: #{bigram_bert_forward.11} parent=0 // pred_check_branch
    %9 = sbr.rel (0) target = $region5
  $region4: #{bigram_bert_forward.11} parent=0 // pred_region
    _
  $region5: #{bigram_bert_forward.11} parent=0 // pred_fallthru
    _
  // Predicated region
  $region6: #{bigram_bert_forward.11} parent=0 // pred_check
    _
  $region7: #{bigram_bert_forward.11} parent=0 // pred_check_branch
    %11 = sbr.rel (0) target = $region9
  $region8: #{bigram_bert_forward.11} parent=0 // pred_region
    _
  $region9: #{bigram_bert_forward.11} parent=0 // pred_fallthru
    _
  // Predicated region
  $region10: #{bigram_bert_forward.11} parent=0 // pred_check
    _
  $region11: #{bigram_bert_forward.11} parent=0 // pred_check_branch
    %13 = sbr.rel (0) target = $region13
  $region12: #{bigram_bert_forward.11} parent=0 // pred_region
    _
  $region13: #{bigram_bert_forward.11} parent=0 // pred_fallthru
    _
  %v14 = vld [vmem:[%s0] sm:$0xff]
  %v15 = vld [vmem:[%s0 + $0x8] sm:$0xff]
  %v16 = vld [vmem:[%s0 + $0x10] sm:$0xff]
  %v17 = vld [vmem:[%s0 + $0x18] sm:$0xff]
  %v18 = vld [vmem:[%s0 + $0x20] sm:$0xff]
  %v19 = vld [vmem:[%s0 + $0x28] sm:$0xff]
  %v20 = vld [vmem:[%s0 + $0x30] sm:$0xff]
  %v21 = vld [vmem:[%s0 + $0x38] sm:$0xff]
  %v22 = vld [vmem:[%s1] sm:$0xff]
  %v23 = vld [vmem:[%s1 + $0x8] sm:$0xff]
  %v24 = vld [vmem:[%s1 + $0x10] sm:$0xff]
  %v25 = vld [vmem:[%s1 + $0x18] sm:$0xff]
  %v26 = vld [vmem:[%s1 + $0x20] sm:$0xff]
  %v27 = vld [vmem:[%s1 + $0x28] sm:$0xff]
  %v28 = vld [vmem:[%s1 + $0x30] sm:$0xff]
  %v29 = vld [vmem:[%s1 + $0x38] sm:$0xff]
  %v30 = vld [vmem:[%s1 + $0x40] sm:$0xff]
  %v31 = vld [vmem:[%s1 + $0x48] sm:$0xff]
  %v32 = vld [vmem:[%s1 + $0x50] sm:$0xff]
  %v33 = vld [vmem:[%s1 + $0x58] sm:$0xff]
  %v34 = vld [vmem:[%s1 + $0x60] sm:$0xff]
  %v35 = vld [vmem:[%s1 + $0x68] sm:$0xff]
  %v36 = vld [vmem:[%s1 + $0x70] sm:$0xff]
  %v37 = vld [vmem:[%s1 + $0x78] sm:$0xff]
  %v38 = vld [vmem:[%s1 + $0x80] sm:$0xff]
  %v39 = vld [vmem:[%s1 + $0x88] sm:$0xff]
  %v40 = vld [vmem:[%s1 + $0x90] sm:$0xff]
  %v41 = vld [vmem:[%s1 + $0x98] sm:$0xff]
  %v42 = vld [vmem:[%s1 + $0xa0] sm:$0xff]
  %v43 = vld [vmem:[%s1 + $0xa8] sm:$0xff]
  %v44 = vld [vmem:[%s1 + $0xb0] sm:$0xff]
  %v45 = vld [vmem:[%s1 + $0xb8] sm:$0xff]
  %v46 = vld [vmem:[%s1 + $0xc0] sm:$0xff]
  %v47 = vld [vmem:[%s1 + $0xc8] sm:$0xff]
  %v48 = vld [vmem:[%s1 + $0xd0] sm:$0xff]
  %v49 = vld [vmem:[%s1 + $0xd8] sm:$0xff]
  %v50 = vld [vmem:[%s1 + $0xe0] sm:$0xff]
  %v51 = vld [vmem:[%s1 + $0xe8] sm:$0xff]
  %v52 = vld [vmem:[%s1 + $0xf0] sm:$0xff]
  %v53 = vld [vmem:[%s1 + $0xf8] sm:$0xff]
  %v54 = vld [vmem:[%s1 + $0x100] sm:$0xff]
  %v55 = vld [vmem:[%s1 + $0x108] sm:$0xff]
  %v56 = vld [vmem:[%s1 + $0x110] sm:$0xff]
  %v57 = vld [vmem:[%s1 + $0x118] sm:$0xff]
  %v58 = vld [vmem:[%s1 + $0x120] sm:$0xff]
  %v59 = vld [vmem:[%s1 + $0x128] sm:$0xff]
  %v60 = vld [vmem:[%s1 + $0x130] sm:$0xff]
  %v61 = vld [vmem:[%s1 + $0x138] sm:$0xff]
  %v62 = vld [vmem:[%s1 + $0x140] sm:$0xff]
  %v63 = vld [vmem:[%s1 + $0x148] sm:$0xff]
  %v64 = vld [vmem:[%s1 + $0x150] sm:$0xff]
  %v65 = vld [vmem:[%s1 + $0x158] sm:$0xff]
  %v66 = vld [vmem:[%s1 + $0x160] sm:$0xff]
  %v67 = vld [vmem:[%s1 + $0x168] sm:$0xff]
  %v68 = vld [vmem:[%s1 + $0x170] sm:$0xff]
  %v69 = vld [vmem:[%s1 + $0x178] sm:$0xff]
  %v70 = vld [vmem:[%s1 + $0x180] sm:$0xff]
  %v71 = vld [vmem:[%s1 + $0x188] sm:$0xff]
  %v72 = vld [vmem:[%s1 + $0x190] sm:$0xff]
  %v73 = vld [vmem:[%s1 + $0x198] sm:$0xff]
  %v74 = vld [vmem:[%s1 + $0x1a0] sm:$0xff]
  %v75 = vld [vmem:[%s1 + $0x1a8] sm:$0xff]
  %v76 = vld [vmem:[%s1 + $0x1b0] sm:$0xff]
  %v77 = vld [vmem:[%s1 + $0x1b8] sm:$0xff]
  %v78 = vld [vmem:[%s1 + $0x1c0] sm:$0xff]
  %v79 = vld [vmem:[%s1 + $0x1c8] sm:$0xff]
  %v80 = vld [vmem:[%s1 + $0x1d0] sm:$0xff]
  %v81 = vld [vmem:[%s1 + $0x1d8] sm:$0xff]
  %v82 = vld [vmem:[%s1 + $0x1e0] sm:$0xff]
  %v83 = vld [vmem:[%s1 + $0x1e8] sm:$0xff]
  %v84 = vld [vmem:[%s1 + $0x1f0] sm:$0xff]
  %v85 = vld [vmem:[%s1 + $0x1f8] sm:$0xff]
  %v86 = vld [vmem:[%s1 + $0x200] sm:$0xff]
  %v87 = vld [vmem:[%s1 + $0x208] sm:$0xff]
  %v88 = vld [vmem:[%s1 + $0x210] sm:$0xff]
  %v89 = vld [vmem:[%s1 + $0x218] sm:$0xff]
  %v90 = vld [vmem:[%s1 + $0x220] sm:$0xff]
  %v91 = vld [vmem:[%s1 + $0x228] sm:$0xff]
  %v92 = vld [vmem:[%s1 + $0x230] sm:$0xff]
  %v93 = vld [vmem:[%s1 + $0x238] sm:$0xff]
  %v94 = vld [vmem:[%s1 + $0x240] sm:$0xff]
  %v95 = vld [vmem:[%s1 + $0x248] sm:$0xff]
  %v96 = vld [vmem:[%s1 + $0x250] sm:$0xff]
  %v97 = vld [vmem:[%s1 + $0x258] sm:$0xff]
  %v98 = vld [vmem:[%s1 + $0x260] sm:$0xff]
  %v99 = vld [vmem:[%s1 + $0x268] sm:$0xff]
  %v100 = vld [vmem:[%s1 + $0x270] sm:$0xff]
  %v101 = vld [vmem:[%s1 + $0x278] sm:$0xff]
  %v102 = vld [vmem:[%s1 + $0x280] sm:$0xff]
  %v103 = vld [vmem:[%s1 + $0x288] sm:$0xff]
  %v104 = vld [vmem:[%s1 + $0x290] sm:$0xff]
  %v105 = vld [vmem:[%s1 + $0x298] sm:$0xff]
  %v106 = vld [vmem:[%s1 + $0x2a0] sm:$0xff]
  %v107 = vld [vmem:[%s1 + $0x2a8] sm:$0xff]
  %v108 = vld [vmem:[%s1 + $0x2b0] sm:$0xff]
  %v109 = vld [vmem:[%s1 + $0x2b8] sm:$0xff]
  %v110 = vld [vmem:[%s1 + $0x2c0] sm:$0xff]
  %v111 = vld [vmem:[%s1 + $0x2c8] sm:$0xff]
  %v112 = vld [vmem:[%s1 + $0x2d0] sm:$0xff]
  %v113 = vld [vmem:[%s1 + $0x2d8] sm:$0xff]
  %v114 = vld [vmem:[%s1 + $0x2e0] sm:$0xff]
  %v115 = vld [vmem:[%s1 + $0x2e8] sm:$0xff]
  %v116 = vld [vmem:[%s1 + $0x2f0] sm:$0xff]
  %v117 = vld [vmem:[%s1 + $0x2f8] sm:$0xff]
  %v118 = vld [vmem:[%s1 + $0x300] sm:$0xff]
  %v119 = vld [vmem:[%s1 + $0x308] sm:$0xff]
  %v120 = vld [vmem:[%s1 + $0x310] sm:$0xff]
  %v121 = vld [vmem:[%s1 + $0x318] sm:$0xff]
  %v122 = vld [vmem:[%s1 + $0x320] sm:$0xff]
  %v123 = vld [vmem:[%s1 + $0x328] sm:$0xff]
  %v124 = vld [vmem:[%s1 + $0x330] sm:$0xff]
  %v125 = vld [vmem:[%s1 + $0x338] sm:$0xff]
  %v126 = vld [vmem:[%s1 + $0x340] sm:$0xff]
  %v127 = vld [vmem:[%s1 + $0x348] sm:$0xff]
  %v128 = vld [vmem:[%s1 + $0x350] sm:$0xff]
  %v129 = vld [vmem:[%s1 + $0x358] sm:$0xff]
  %v130 = vld [vmem:[%s1 + $0x360] sm:$0xff]
  %v131 = vld [vmem:[%s1 + $0x368] sm:$0xff]
  %v132 = vld [vmem:[%s1 + $0x370] sm:$0xff]
  %v133 = vld [vmem:[%s1 + $0x378] sm:$0xff]
  %v134 = vld [vmem:[%s1 + $0x380] sm:$0xff]
  %v135 = vld [vmem:[%s1 + $0x388] sm:$0xff]
  %v136 = vld [vmem:[%s1 + $0x390] sm:$0xff]
  %v137 = vld [vmem:[%s1 + $0x398] sm:$0xff]
  %v138 = vld [vmem:[%s1 + $0x3a0] sm:$0xff]
  %v139 = vld [vmem:[%s1 + $0x3a8] sm:$0xff]
  %v140 = vld [vmem:[%s1 + $0x3b0] sm:$0xff]
  %v141 = vld [vmem:[%s1 + $0x3b8] sm:$0xff]
  %v142 = vld [vmem:[%s1 + $0x3c0] sm:$0xff]
  %v143 = vld [vmem:[%s1 + $0x3c8] sm:$0xff]
  %v144 = vld [vmem:[%s1 + $0x3d0] sm:$0xff]
  %v145 = vld [vmem:[%s1 + $0x3d8] sm:$0xff]
  %v146 = vld [vmem:[%s1 + $0x3e0] sm:$0xff]
  %v147 = vld [vmem:[%s1 + $0x3e8] sm:$0xff]
  %v148 = vld [vmem:[%s1 + $0x3f0] sm:$0xff]
  %v149 = vld [vmem:[%s1 + $0x3f8] sm:$0xff]
  %v150 = vld [vmem:[%s2] sm:$0xff]
  %v152 = vperm.slane %v150, 0
  %v153 = vperm.slane %v150, 1
  %v154 = vperm.slane %v150, 2
  %v155 = vperm.slane %v150, 3
  %v156 = vperm.slane %v150, 4
  %v157 = vperm.slane %v150, 5
  %v158 = vperm.slane %v150, 6
  %v159 = vperm.slane %v150, 7
  %v176 = vunpack.c.l.b16 %v14
  %v177 = vunpack.c.h.b16 %v14
  %v178 = vunpack.c.l.b16 %v15
  %v179 = vunpack.c.h.b16 %v15
  %v180 = vunpack.c.l.b16 %v16
  %v181 = vunpack.c.h.b16 %v16
  %v182 = vunpack.c.l.b16 %v17
  %v183 = vunpack.c.h.b16 %v17
  %v184 = vunpack.c.l.b16 %v18
  %v185 = vunpack.c.h.b16 %v18
  %v186 = vunpack.c.l.b16 %v19
  %v187 = vunpack.c.h.b16 %v19
  %v188 = vunpack.c.l.b16 %v20
  %v189 = vunpack.c.h.b16 %v20
  %v190 = vunpack.c.l.b16 %v21
  %v191 = vunpack.c.h.b16 %v21
  %v192 = vpack.c.b16 %v178, %v176
  %v193 = vpack.c.b16 %v179, %v177
  %v194 = vpack.c.b16 %v182, %v180
  %v195 = vpack.c.b16 %v183, %v181
  %v196 = vpack.c.b16 %v186, %v184
  %v197 = vpack.c.b16 %v187, %v185
  %v198 = vpack.c.b16 %v190, %v188
  %v199 = vpack.c.b16 %v191, %v189
  %v336 = vunpack.c.l.b16 %v22
  %v337 = vunpack.c.h.b16 %v22
  %v338 = vunpack.c.l.b16 %v23
  %v339 = vunpack.c.h.b16 %v23
  %v340 = vunpack.c.l.b16 %v24
  %v341 = vunpack.c.h.b16 %v24
  %v342 = vunpack.c.l.b16 %v25
  %v343 = vunpack.c.h.b16 %v25
  %v344 = vunpack.c.l.b16 %v26
  %v345 = vunpack.c.h.b16 %v26
  %v346 = vunpack.c.l.b16 %v27
  %v347 = vunpack.c.h.b16 %v27
  %v348 = vunpack.c.l.b16 %v28
  %v349 = vunpack.c.h.b16 %v28
  %v350 = vunpack.c.l.b16 %v29
  %v351 = vunpack.c.h.b16 %v29
  %v352 = vunpack.c.l.b16 %v30
  %v353 = vunpack.c.h.b16 %v30
  %v354 = vunpack.c.l.b16 %v31
  %v355 = vunpack.c.h.b16 %v31
  %v356 = vunpack.c.l.b16 %v32
  %v357 = vunpack.c.h.b16 %v32
  %v358 = vunpack.c.l.b16 %v33
  %v359 = vunpack.c.h.b16 %v33
  %v360 = vunpack.c.l.b16 %v34
  %v361 = vunpack.c.h.b16 %v34
  %v362 = vunpack.c.l.b16 %v35
  %v363 = vunpack.c.h.b16 %v35
  %v364 = vunpack.c.l.b16 %v36
  %v365 = vunpack.c.h.b16 %v36
  %v366 = vunpack.c.l.b16 %v37
  %v367 = vunpack.c.h.b16 %v37
  %v368 = vunpack.c.l.b16 %v38
  %v369 = vunpack.c.h.b16 %v38
  %v370 = vunpack.c.l.b16 %v39
  %v371 = vunpack.c.h.b16 %v39
  %v372 = vunpack.c.l.b16 %v40
  %v373 = vunpack.c.h.b16 %v40
  %v374 = vunpack.c.l.b16 %v41
  %v375 = vunpack.c.h.b16 %v41
  %v376 = vunpack.c.l.b16 %v42
  %v377 = vunpack.c.h.b16 %v42
  %v378 = vunpack.c.l.b16 %v43
  %v379 = vunpack.c.h.b16 %v43
  %v380 = vunpack.c.l.b16 %v44
  %v381 = vunpack.c.h.b16 %v44
  %v382 = vunpack.c.l.b16 %v45
  %v383 = vunpack.c.h.b16 %v45
  %v384 = vunpack.c.l.b16 %v46
  %v385 = vunpack.c.h.b16 %v46
  %v386 = vunpack.c.l.b16 %v47
  %v387 = vunpack.c.h.b16 %v47
  %v388 = vunpack.c.l.b16 %v48
  %v389 = vunpack.c.h.b16 %v48
  %v390 = vunpack.c.l.b16 %v49
  %v391 = vunpack.c.h.b16 %v49
  %v392 = vunpack.c.l.b16 %v50
  %v393 = vunpack.c.h.b16 %v50
  %v394 = vunpack.c.l.b16 %v51
  %v395 = vunpack.c.h.b16 %v51
  %v396 = vunpack.c.l.b16 %v52
  %v397 = vunpack.c.h.b16 %v52
  %v398 = vunpack.c.l.b16 %v53
  %v399 = vunpack.c.h.b16 %v53
  %v400 = vunpack.c.l.b16 %v54
  %v401 = vunpack.c.h.b16 %v54
  %v402 = vunpack.c.l.b16 %v55
  %v403 = vunpack.c.h.b16 %v55
  %v404 = vunpack.c.l.b16 %v56
  %v405 = vunpack.c.h.b16 %v56
  %v406 = vunpack.c.l.b16 %v57
  %v407 = vunpack.c.h.b16 %v57
  %v408 = vunpack.c.l.b16 %v58
  %v409 = vunpack.c.h.b16 %v58
  %v410 = vunpack.c.l.b16 %v59
  %v411 = vunpack.c.h.b16 %v59
  %v412 = vunpack.c.l.b16 %v60
  %v413 = vunpack.c.h.b16 %v60
  %v414 = vunpack.c.l.b16 %v61
  %v415 = vunpack.c.h.b16 %v61
  %v416 = vunpack.c.l.b16 %v62
  %v417 = vunpack.c.h.b16 %v62
  %v418 = vunpack.c.l.b16 %v63
  %v419 = vunpack.c.h.b16 %v63
  %v420 = vunpack.c.l.b16 %v64
  %v421 = vunpack.c.h.b16 %v64
  %v422 = vunpack.c.l.b16 %v65
  %v423 = vunpack.c.h.b16 %v65
  %v424 = vunpack.c.l.b16 %v66
  %v425 = vunpack.c.h.b16 %v66
  %v426 = vunpack.c.l.b16 %v67
  %v427 = vunpack.c.h.b16 %v67
  %v428 = vunpack.c.l.b16 %v68
  %v429 = vunpack.c.h.b16 %v68
  %v430 = vunpack.c.l.b16 %v69
  %v431 = vunpack.c.h.b16 %v69
  %v432 = vunpack.c.l.b16 %v70
  %v433 = vunpack.c.h.b16 %v70
  %v434 = vunpack.c.l.b16 %v71
  %v435 = vunpack.c.h.b16 %v71
  %v436 = vunpack.c.l.b16 %v72
  %v437 = vunpack.c.h.b16 %v72
  %v438 = vunpack.c.l.b16 %v73
  %v439 = vunpack.c.h.b16 %v73
  %v440 = vunpack.c.l.b16 %v74
  %v441 = vunpack.c.h.b16 %v74
  %v442 = vunpack.c.l.b16 %v75
  %v443 = vunpack.c.h.b16 %v75
  %v444 = vunpack.c.l.b16 %v76
  %v445 = vunpack.c.h.b16 %v76
  %v446 = vunpack.c.l.b16 %v77
  %v447 = vunpack.c.h.b16 %v77
  %v448 = vunpack.c.l.b16 %v78
  %v449 = vunpack.c.h.b16 %v78
  %v450 = vunpack.c.l.b16 %v79
  %v451 = vunpack.c.h.b16 %v79
  %v452 = vunpack.c.l.b16 %v80
  %v453 = vunpack.c.h.b16 %v80
  %v454 = vunpack.c.l.b16 %v81
  %v455 = vunpack.c.h.b16 %v81
  %v456 = vunpack.c.l.b16 %v82
  %v457 = vunpack.c.h.b16 %v82
  %v458 = vunpack.c.l.b16 %v83
  %v459 = vunpack.c.h.b16 %v83
  %v460 = vunpack.c.l.b16 %v84
  %v461 = vunpack.c.h.b16 %v84
  %v462 = vunpack.c.l.b16 %v85
  %v463 = vunpack.c.h.b16 %v85
  %v464 = vunpack.c.l.b16 %v86
  %v465 = vunpack.c.h.b16 %v86
  %v466 = vunpack.c.l.b16 %v87
  %v467 = vunpack.c.h.b16 %v87
  %v468 = vunpack.c.l.b16 %v88
  %v469 = vunpack.c.h.b16 %v88
  %v470 = vunpack.c.l.b16 %v89
  %v471 = vunpack.c.h.b16 %v89
  %v472 = vunpack.c.l.b16 %v90
  %v473 = vunpack.c.h.b16 %v90
  %v474 = vunpack.c.l.b16 %v91
  %v475 = vunpack.c.h.b16 %v91
  %v476 = vunpack.c.l.b16 %v92
  %v477 = vunpack.c.h.b16 %v92
  %v478 = vunpack.c.l.b16 %v93
  %v479 = vunpack.c.h.b16 %v93
  %v480 = vunpack.c.l.b16 %v94
  %v481 = vunpack.c.h.b16 %v94
  %v482 = vunpack.c.l.b16 %v95
  %v483 = vunpack.c.h.b16 %v95
  %v484 = vunpack.c.l.b16 %v96
  %v485 = vunpack.c.h.b16 %v96
  %v486 = vunpack.c.l.b16 %v97
  %v487 = vunpack.c.h.b16 %v97
  %v488 = vunpack.c.l.b16 %v98
  %v489 = vunpack.c.h.b16 %v98
  %v490 = vunpack.c.l.b16 %v99
  %v491 = vunpack.c.h.b16 %v99
  %v492 = vunpack.c.l.b16 %v100
  %v493 = vunpack.c.h.b16 %v100
  %v494 = vunpack.c.l.b16 %v101
  %v495 = vunpack.c.h.b16 %v101
  %v496 = vunpack.c.l.b16 %v102
  %v497 = vunpack.c.h.b16 %v102
  %v498 = vunpack.c.l.b16 %v103
  %v499 = vunpack.c.h.b16 %v103
  %v500 = vunpack.c.l.b16 %v104
  %v501 = vunpack.c.h.b16 %v104
  %v502 = vunpack.c.l.b16 %v105
  %v503 = vunpack.c.h.b16 %v105
  %v504 = vunpack.c.l.b16 %v106
  %v505 = vunpack.c.h.b16 %v106
  %v506 = vunpack.c.l.b16 %v107
  %v507 = vunpack.c.h.b16 %v107
  %v508 = vunpack.c.l.b16 %v108
  %v509 = vunpack.c.h.b16 %v108
  %v510 = vunpack.c.l.b16 %v109
  %v511 = vunpack.c.h.b16 %v109
  %v512 = vunpack.c.l.b16 %v110
  %v513 = vunpack.c.h.b16 %v110
  %v514 = vunpack.c.l.b16 %v111
  %v515 = vunpack.c.h.b16 %v111
  %v516 = vunpack.c.l.b16 %v112
  %v517 = vunpack.c.h.b16 %v112
  %v518 = vunpack.c.l.b16 %v113
  %v519 = vunpack.c.h.b16 %v113
  %v520 = vunpack.c.l.b16 %v114
  %v521 = vunpack.c.h.b16 %v114
  %v522 = vunpack.c.l.b16 %v115
  %v523 = vunpack.c.h.b16 %v115
  %v524 = vunpack.c.l.b16 %v116
  %v525 = vunpack.c.h.b16 %v116
  %v526 = vunpack.c.l.b16 %v117
  %v527 = vunpack.c.h.b16 %v117
  %v528 = vunpack.c.l.b16 %v118
  %v529 = vunpack.c.h.b16 %v118
  %v530 = vunpack.c.l.b16 %v119
  %v531 = vunpack.c.h.b16 %v119
  %v532 = vunpack.c.l.b16 %v120
  %v533 = vunpack.c.h.b16 %v120
  %v534 = vunpack.c.l.b16 %v121
  %v535 = vunpack.c.h.b16 %v121
  %v536 = vunpack.c.l.b16 %v122
  %v537 = vunpack.c.h.b16 %v122
  %v538 = vunpack.c.l.b16 %v123
  %v539 = vunpack.c.h.b16 %v123
  %v540 = vunpack.c.l.b16 %v124
  %v541 = vunpack.c.h.b16 %v124
  %v542 = vunpack.c.l.b16 %v125
  %v543 = vunpack.c.h.b16 %v125
  %v544 = vunpack.c.l.b16 %v126
  %v545 = vunpack.c.h.b16 %v126
  %v546 = vunpack.c.l.b16 %v127
  %v547 = vunpack.c.h.b16 %v127
  %v548 = vunpack.c.l.b16 %v128
  %v549 = vunpack.c.h.b16 %v128
  %v550 = vunpack.c.l.b16 %v129
  %v551 = vunpack.c.h.b16 %v129
  %v552 = vunpack.c.l.b16 %v130
  %v553 = vunpack.c.h.b16 %v130
  %v554 = vunpack.c.l.b16 %v131
  %v555 = vunpack.c.h.b16 %v131
  %v556 = vunpack.c.l.b16 %v132
  %v557 = vunpack.c.h.b16 %v132
  %v558 = vunpack.c.l.b16 %v133
  %v559 = vunpack.c.h.b16 %v133
  %v560 = vunpack.c.l.b16 %v134
  %v561 = vunpack.c.h.b16 %v134
  %v562 = vunpack.c.l.b16 %v135
  %v563 = vunpack.c.h.b16 %v135
  %v564 = vunpack.c.l.b16 %v136
  %v565 = vunpack.c.h.b16 %v136
  %v566 = vunpack.c.l.b16 %v137
  %v567 = vunpack.c.h.b16 %v137
  %v568 = vunpack.c.l.b16 %v138
  %v569 = vunpack.c.h.b16 %v138
  %v570 = vunpack.c.l.b16 %v139
  %v571 = vunpack.c.h.b16 %v139
  %v572 = vunpack.c.l.b16 %v140
  %v573 = vunpack.c.h.b16 %v140
  %v574 = vunpack.c.l.b16 %v141
  %v575 = vunpack.c.h.b16 %v141
  %v576 = vunpack.c.l.b16 %v142
  %v577 = vunpack.c.h.b16 %v142
  %v578 = vunpack.c.l.b16 %v143
  %v579 = vunpack.c.h.b16 %v143
  %v580 = vunpack.c.l.b16 %v144
  %v581 = vunpack.c.h.b16 %v144
  %v582 = vunpack.c.l.b16 %v145
  %v583 = vunpack.c.h.b16 %v145
  %v584 = vunpack.c.l.b16 %v146
  %v585 = vunpack.c.h.b16 %v146
  %v586 = vunpack.c.l.b16 %v147
  %v587 = vunpack.c.h.b16 %v147
  %v588 = vunpack.c.l.b16 %v148
  %v589 = vunpack.c.h.b16 %v148
  %v590 = vunpack.c.l.b16 %v149
  %v591 = vunpack.c.h.b16 %v149
  %v592 = vpack.c.b16 %v344, %v336
  %v593 = vpack.c.b16 %v345, %v337
  %v594 = vpack.c.b16 %v346, %v338
  %v595 = vpack.c.b16 %v347, %v339
  %v596 = vpack.c.b16 %v348, %v340
  %v597 = vpack.c.b16 %v349, %v341
  %v598 = vpack.c.b16 %v350, %v342
  %v599 = vpack.c.b16 %v351, %v343
  %v600 = vpack.c.b16 %v360, %v352
  %v601 = vpack.c.b16 %v361, %v353
  %v602 = vpack.c.b16 %v362, %v354
  %v603 = vpack.c.b16 %v363, %v355
  %v604 = vpack.c.b16 %v364, %v356
  %v605 = vpack.c.b16 %v365, %v357
  %v606 = vpack.c.b16 %v366, %v358
  %v607 = vpack.c.b16 %v367, %v359
  %v608 = vpack.c.b16 %v376, %v368
  %v609 = vpack.c.b16 %v377, %v369
  %v610 = vpack.c.b16 %v378, %v370
  %v611 = vpack.c.b16 %v379, %v371
  %v612 = vpack.c.b16 %v380, %v372
  %v613 = vpack.c.b16 %v381, %v373
  %v614 = vpack.c.b16 %v382, %v374
  %v615 = vpack.c.b16 %v383, %v375
  %v616 = vpack.c.b16 %v392, %v384
  %v617 = vpack.c.b16 %v393, %v385
  %v618 = vpack.c.b16 %v394, %v386
  %v619 = vpack.c.b16 %v395, %v387
  %v620 = vpack.c.b16 %v396, %v388
  %v621 = vpack.c.b16 %v397, %v389
  %v622 = vpack.c.b16 %v398, %v390
  %v623 = vpack.c.b16 %v399, %v391
  %v624 = vpack.c.b16 %v408, %v400
  %v625 = vpack.c.b16 %v409, %v401
  %v626 = vpack.c.b16 %v410, %v402
  %v627 = vpack.c.b16 %v411, %v403
  %v628 = vpack.c.b16 %v412, %v404
  %v629 = vpack.c.b16 %v413, %v405
  %v630 = vpack.c.b16 %v414, %v406
  %v631 = vpack.c.b16 %v415, %v407
  %v632 = vpack.c.b16 %v424, %v416
  %v633 = vpack.c.b16 %v425, %v417
  %v634 = vpack.c.b16 %v426, %v418
  %v635 = vpack.c.b16 %v427, %v419
  %v636 = vpack.c.b16 %v428, %v420
  %v637 = vpack.c.b16 %v429, %v421
  %v638 = vpack.c.b16 %v430, %v422
  %v639 = vpack.c.b16 %v431, %v423
  %v640 = vpack.c.b16 %v440, %v432
  %v641 = vpack.c.b16 %v441, %v433
  %v642 = vpack.c.b16 %v442, %v434
  %v643 = vpack.c.b16 %v443, %v435
  %v644 = vpack.c.b16 %v444, %v436
  %v645 = vpack.c.b16 %v445, %v437
  %v646 = vpack.c.b16 %v446, %v438
  %v647 = vpack.c.b16 %v447, %v439
  %v648 = vpack.c.b16 %v456, %v448
  %v649 = vpack.c.b16 %v457, %v449
  %v650 = vpack.c.b16 %v458, %v450
  %v651 = vpack.c.b16 %v459, %v451
  %v652 = vpack.c.b16 %v460, %v452
  %v653 = vpack.c.b16 %v461, %v453
  %v654 = vpack.c.b16 %v462, %v454
  %v655 = vpack.c.b16 %v463, %v455
  %v656 = vpack.c.b16 %v472, %v464
  %v657 = vpack.c.b16 %v473, %v465
  %v658 = vpack.c.b16 %v474, %v466
  %v659 = vpack.c.b16 %v475, %v467
  %v660 = vpack.c.b16 %v476, %v468
  %v661 = vpack.c.b16 %v477, %v469
  %v662 = vpack.c.b16 %v478, %v470
  %v663 = vpack.c.b16 %v479, %v471
  %v664 = vpack.c.b16 %v488, %v480
  %v665 = vpack.c.b16 %v489, %v481
  %v666 = vpack.c.b16 %v490, %v482
  %v667 = vpack.c.b16 %v491, %v483
  %v668 = vpack.c.b16 %v492, %v484
  %v669 = vpack.c.b16 %v493, %v485
  %v670 = vpack.c.b16 %v494, %v486
  %v671 = vpack.c.b16 %v495, %v487
  %v672 = vpack.c.b16 %v504, %v496
  %v673 = vpack.c.b16 %v505, %v497
  %v674 = vpack.c.b16 %v506, %v498
  %v675 = vpack.c.b16 %v507, %v499
  %v676 = vpack.c.b16 %v508, %v500
  %v677 = vpack.c.b16 %v509, %v501
  %v678 = vpack.c.b16 %v510, %v502
  %v679 = vpack.c.b16 %v511, %v503
  %v680 = vpack.c.b16 %v520, %v512
  %v681 = vpack.c.b16 %v521, %v513
  %v682 = vpack.c.b16 %v522, %v514
  %v683 = vpack.c.b16 %v523, %v515
  %v684 = vpack.c.b16 %v524, %v516
  %v685 = vpack.c.b16 %v525, %v517
  %v686 = vpack.c.b16 %v526, %v518
  %v687 = vpack.c.b16 %v527, %v519
  %v688 = vpack.c.b16 %v536, %v528
  %v689 = vpack.c.b16 %v537, %v529
  %v690 = vpack.c.b16 %v538, %v530
  %v691 = vpack.c.b16 %v539, %v531
  %v692 = vpack.c.b16 %v540, %v532
  %v693 = vpack.c.b16 %v541, %v533
  %v694 = vpack.c.b16 %v542, %v534
  %v695 = vpack.c.b16 %v543, %v535
  %v696 = vpack.c.b16 %v552, %v544
  %v697 = vpack.c.b16 %v553, %v545
  %v698 = vpack.c.b16 %v554, %v546
  %v699 = vpack.c.b16 %v555, %v547
  %v700 = vpack.c.b16 %v556, %v548
  %v701 = vpack.c.b16 %v557, %v549
  %v702 = vpack.c.b16 %v558, %v550
  %v703 = vpack.c.b16 %v559, %v551
  %v704 = vpack.c.b16 %v568, %v560
  %v705 = vpack.c.b16 %v569, %v561
  %v706 = vpack.c.b16 %v570, %v562
  %v707 = vpack.c.b16 %v571, %v563
  %v708 = vpack.c.b16 %v572, %v564
  %v709 = vpack.c.b16 %v573, %v565
  %v710 = vpack.c.b16 %v574, %v566
  %v711 = vpack.c.b16 %v575, %v567
  %v712 = vpack.c.b16 %v584, %v576
  %v713 = vpack.c.b16 %v585, %v577
  %v714 = vpack.c.b16 %v586, %v578
  %v715 = vpack.c.b16 %v587, %v579
  %v716 = vpack.c.b16 %v588, %v580
  %v717 = vpack.c.b16 %v589, %v581
  %v718 = vpack.c.b16 %v590, %v582
  %v719 = vpack.c.b16 %v591, %v583
  %848 = vmatpush.bf16.msra.mxu0 %v648
  %849 = vmatpush.bf16.msra.mxu0 %v640
  %850 = vmatpush.bf16.msra.mxu0 %v632
  %851 = vmatpush.bf16.msra.mxu0 %v624
  %852 = vmatpush.bf16.msra.mxu0 %v616
  %853 = vmatpush.bf16.msra.mxu0 %v608
  %854 = vmatpush.bf16.msra.mxu0 %v600
  %855 = vmatpush.bf16.msra.mxu0 %v592
  %856 = vmatmul.bf16.gmra.mxu0 %v192
  %v857 = vpop.f32.mrf.mxu0
  %v858 = vadd.f32 %v152, %v857
  %v859 = vpop.f32.mrf.mxu0
  %v860 = vadd.f32 %v152, %v859
  %861 = vmatmul.bf16.gmra.mxu0 %v194
  %v862 = vpop.f32.mrf.mxu0
  %v863 = vadd.f32 %v152, %v862
  %v864 = vpop.f32.mrf.mxu0
  %v865 = vadd.f32 %v152, %v864
  %866 = vmatmul.bf16.gmra.mxu0 %v196
  %v867 = vpop.f32.mrf.mxu0
  %v868 = vadd.f32 %v152, %v867
  %v869 = vpop.f32.mrf.mxu0
  %v870 = vadd.f32 %v152, %v869
  %871 = vmatmul.bf16.gmra.mxu0 %v198
  %v872 = vpop.f32.mrf.mxu0
  %v873 = vadd.f32 %v152, %v872
  %v874 = vpop.f32.mrf.mxu0
  %v875 = vadd.f32 %v152, %v874
  %876 = vdwg.mxu0
  %877 = vmatpush.bf16.msra.mxu0 %v712
  %878 = vmatpush.bf16.msra.mxu0 %v704
  %879 = vmatpush.bf16.msra.mxu0 %v696
  %880 = vmatpush.bf16.msra.mxu0 %v688
  %881 = vmatpush.bf16.msra.mxu0 %v680
  %882 = vmatpush.bf16.msra.mxu0 %v672
  %883 = vmatpush.bf16.msra.mxu0 %v664
  %884 = vmatpush.bf16.msra.mxu0 %v656
  %885 = vmatmul.bf16.gmra.mxu0 %v193
  %v886 = vpop.f32.mrf.mxu0
  %v887 = vadd.f32 %v858, %v886
  %v888 = vpop.f32.mrf.mxu0
  %v889 = vadd.f32 %v860, %v888
  %890 = vmatmul.bf16.gmra.mxu0 %v195
  %v891 = vpop.f32.mrf.mxu0
  %v892 = vadd.f32 %v863, %v891
  %v893 = vpop.f32.mrf.mxu0
  %v894 = vadd.f32 %v865, %v893
  %895 = vmatmul.bf16.gmra.mxu0 %v197
  %v896 = vpop.f32.mrf.mxu0
  %v897 = vadd.f32 %v868, %v896
  %v898 = vpop.f32.mrf.mxu0
  %v899 = vadd.f32 %v870, %v898
  %900 = vmatmul.bf16.gmra.mxu0 %v199
  %v901 = vpop.f32.mrf.mxu0
  %v902 = vadd.f32 %v873, %v901
  %v903 = vpop.f32.mrf.mxu0
  %v904 = vadd.f32 %v875, %v903
  %905 = vdwg.mxu0
  %906 = vmatpush.bf16.msra.mxu0 %v649
  %907 = vmatpush.bf16.msra.mxu0 %v641
  %908 = vmatpush.bf16.msra.mxu0 %v633
  %909 = vmatpush.bf16.msra.mxu0 %v625
  %910 = vmatpush.bf16.msra.mxu0 %v617
  %911 = vmatpush.bf16.msra.mxu0 %v609
  %912 = vmatpush.bf16.msra.mxu0 %v601
  %913 = vmatpush.bf16.msra.mxu0 %v593
  %914 = vmatmul.bf16.gmra.mxu0 %v192
  %v915 = vpop.f32.mrf.mxu0
  %v916 = vadd.f32 %v153, %v915
  %v917 = vpop.f32.mrf.mxu0
  %v918 = vadd.f32 %v153, %v917
  %919 = vmatmul.bf16.gmra.mxu0 %v194
  %v920 = vpop.f32.mrf.mxu0
  %v921 = vadd.f32 %v153, %v920
  %v922 = vpop.f32.mrf.mxu0
  %v923 = vadd.f32 %v153, %v922
  %924 = vmatmul.bf16.gmra.mxu0 %v196
  %v925 = vpop.f32.mrf.mxu0
  %v926 = vadd.f32 %v153, %v925
  %v927 = vpop.f32.mrf.mxu0
  %v928 = vadd.f32 %v153, %v927
  %929 = vmatmul.bf16.gmra.mxu0 %v198
  %v930 = vpop.f32.mrf.mxu0
  %v931 = vadd.f32 %v153, %v930
  %v932 = vpop.f32.mrf.mxu0
  %v933 = vadd.f32 %v153, %v932
  %934 = vdwg.mxu0
  %935 = vmatpush.bf16.msra.mxu0 %v713
  %936 = vmatpush.bf16.msra.mxu0 %v705
  %937 = vmatpush.bf16.msra.mxu0 %v697
  %938 = vmatpush.bf16.msra.mxu0 %v689
  %939 = vmatpush.bf16.msra.mxu0 %v681
  %940 = vmatpush.bf16.msra.mxu0 %v673
  %941 = vmatpush.bf16.msra.mxu0 %v665
  %942 = vmatpush.bf16.msra.mxu0 %v657
  %943 = vmatmul.bf16.gmra.mxu0 %v193
  %v944 = vpop.f32.mrf.mxu0
  %v945 = vadd.f32 %v916, %v944
  %v946 = vpop.f32.mrf.mxu0
  %v947 = vadd.f32 %v918, %v946
  %948 = vmatmul.bf16.gmra.mxu0 %v195
  %v949 = vpop.f32.mrf.mxu0
  %v950 = vadd.f32 %v921, %v949
  %v951 = vpop.f32.mrf.mxu0
  %v952 = vadd.f32 %v923, %v951
  %953 = vmatmul.bf16.gmra.mxu0 %v197
  %v954 = vpop.f32.mrf.mxu0
  %v955 = vadd.f32 %v926, %v954
  %v956 = vpop.f32.mrf.mxu0
  %v957 = vadd.f32 %v928, %v956
  %958 = vmatmul.bf16.gmra.mxu0 %v199
  %v959 = vpop.f32.mrf.mxu0
  %v960 = vadd.f32 %v931, %v959
  %v961 = vpop.f32.mrf.mxu0
  %v962 = vadd.f32 %v933, %v961
  %963 = vdwg.mxu0
  %964 = vmatpush.bf16.msra.mxu0 %v650
  %965 = vmatpush.bf16.msra.mxu0 %v642
  %966 = vmatpush.bf16.msra.mxu0 %v634
  %967 = vmatpush.bf16.msra.mxu0 %v626
  %968 = vmatpush.bf16.msra.mxu0 %v618
  %969 = vmatpush.bf16.msra.mxu0 %v610
  %970 = vmatpush.bf16.msra.mxu0 %v602
  %971 = vmatpush.bf16.msra.mxu0 %v594
  %972 = vmatmul.bf16.gmra.mxu0 %v192
  %v973 = vpop.f32.mrf.mxu0
  %v974 = vadd.f32 %v154, %v973
  %v975 = vpop.f32.mrf.mxu0
  %v976 = vadd.f32 %v154, %v975
  %977 = vmatmul.bf16.gmra.mxu0 %v194
  %v978 = vpop.f32.mrf.mxu0
  %v979 = vadd.f32 %v154, %v978
  %v980 = vpop.f32.mrf.mxu0
  %v981 = vadd.f32 %v154, %v980
  %982 = vmatmul.bf16.gmra.mxu0 %v196
  %v983 = vpop.f32.mrf.mxu0
  %v984 = vadd.f32 %v154, %v983
  %v985 = vpop.f32.mrf.mxu0
  %v986 = vadd.f32 %v154, %v985
  %987 = vmatmul.bf16.gmra.mxu0 %v198
  %v988 = vpop.f32.mrf.mxu0
  %v989 = vadd.f32 %v154, %v988
  %v990 = vpop.f32.mrf.mxu0
  %v991 = vadd.f32 %v154, %v990
  %992 = vdwg.mxu0
  %993 = vmatpush.bf16.msra.mxu0 %v714
  %994 = vmatpush.bf16.msra.mxu0 %v706
  %995 = vmatpush.bf16.msra.mxu0 %v698
  %996 = vmatpush.bf16.msra.mxu0 %v690
  %997 = vmatpush.bf16.msra.mxu0 %v682
  %998 = vmatpush.bf16.msra.mxu0 %v674
  %999 = vmatpush.bf16.msra.mxu0 %v666
  %1000 = vmatpush.bf16.msra.mxu0 %v658
  %1001 = vmatmul.bf16.gmra.mxu0 %v193
  %v1002 = vpop.f32.mrf.mxu0
  %v1003 = vadd.f32 %v974, %v1002
  %v1004 = vpop.f32.mrf.mxu0
  %v1005 = vadd.f32 %v976, %v1004
  %1006 = vmatmul.bf16.gmra.mxu0 %v195
  %v1007 = vpop.f32.mrf.mxu0
  %v1008 = vadd.f32 %v979, %v1007
  %v1009 = vpop.f32.mrf.mxu0
  %v1010 = vadd.f32 %v981, %v1009
  %1011 = vmatmul.bf16.gmra.mxu0 %v197
  %v1012 = vpop.f32.mrf.mxu0
  %v1013 = vadd.f32 %v984, %v1012
  %v1014 = vpop.f32.mrf.mxu0
  %v1015 = vadd.f32 %v986, %v1014
  %1016 = vmatmul.bf16.gmra.mxu0 %v199
  %v1017 = vpop.f32.mrf.mxu0
  %v1018 = vadd.f32 %v989, %v1017
  %v1019 = vpop.f32.mrf.mxu0
  %v1020 = vadd.f32 %v991, %v1019
  %1021 = vdwg.mxu0
  %1022 = vmatpush.bf16.msra.mxu0 %v651
  %1023 = vmatpush.bf16.msra.mxu0 %v643
  %1024 = vmatpush.bf16.msra.mxu0 %v635
  %1025 = vmatpush.bf16.msra.mxu0 %v627
  %1026 = vmatpush.bf16.msra.mxu0 %v619
  %1027 = vmatpush.bf16.msra.mxu0 %v611
  %1028 = vmatpush.bf16.msra.mxu0 %v603
  %1029 = vmatpush.bf16.msra.mxu0 %v595
  %1030 = vmatmul.bf16.gmra.mxu0 %v192
  %v1031 = vpop.f32.mrf.mxu0
  %v1032 = vadd.f32 %v155, %v1031
  %v1033 = vpop.f32.mrf.mxu0
  %v1034 = vadd.f32 %v155, %v1033
  %1035 = vmatmul.bf16.gmra.mxu0 %v194
  %v1036 = vpop.f32.mrf.mxu0
  %v1037 = vadd.f32 %v155, %v1036
  %v1038 = vpop.f32.mrf.mxu0
  %v1039 = vadd.f32 %v155, %v1038
  %1040 = vmatmul.bf16.gmra.mxu0 %v196
  %v1041 = vpop.f32.mrf.mxu0
  %v1042 = vadd.f32 %v155, %v1041
  %v1043 = vpop.f32.mrf.mxu0
  %v1044 = vadd.f32 %v155, %v1043
  %1045 = vmatmul.bf16.gmra.mxu0 %v198
  %v1046 = vpop.f32.mrf.mxu0
  %v1047 = vadd.f32 %v155, %v1046
  %v1048 = vpop.f32.mrf.mxu0
  %v1049 = vadd.f32 %v155, %v1048
  %1050 = vdwg.mxu0
  %1051 = vmatpush.bf16.msra.mxu0 %v715
  %1052 = vmatpush.bf16.msra.mxu0 %v707
  %1053 = vmatpush.bf16.msra.mxu0 %v699
  %1054 = vmatpush.bf16.msra.mxu0 %v691
  %1055 = vmatpush.bf16.msra.mxu0 %v683
  %1056 = vmatpush.bf16.msra.mxu0 %v675
  %1057 = vmatpush.bf16.msra.mxu0 %v667
  %1058 = vmatpush.bf16.msra.mxu0 %v659
  %1059 = vmatmul.bf16.gmra.mxu0 %v193
  %v1060 = vpop.f32.mrf.mxu0
  %v1061 = vadd.f32 %v1032, %v1060
  %v1062 = vpop.f32.mrf.mxu0
  %v1063 = vadd.f32 %v1034, %v1062
  %1064 = vmatmul.bf16.gmra.mxu0 %v195
  %v1065 = vpop.f32.mrf.mxu0
  %v1066 = vadd.f32 %v1037, %v1065
  %v1067 = vpop.f32.mrf.mxu0
  %v1068 = vadd.f32 %v1039, %v1067
  %1069 = vmatmul.bf16.gmra.mxu0 %v197
  %v1070 = vpop.f32.mrf.mxu0
  %v1071 = vadd.f32 %v1042, %v1070
  %v1072 = vpop.f32.mrf.mxu0
  %v1073 = vadd.f32 %v1044, %v1072
  %1074 = vmatmul.bf16.gmra.mxu0 %v199
  %v1075 = vpop.f32.mrf.mxu0
  %v1076 = vadd.f32 %v1047, %v1075
  %v1077 = vpop.f32.mrf.mxu0
  %v1078 = vadd.f32 %v1049, %v1077
  %1079 = vdwg.mxu0
  %1080 = vmatpush.bf16.msra.mxu0 %v652
  %1081 = vmatpush.bf16.msra.mxu0 %v644
  %1082 = vmatpush.bf16.msra.mxu0 %v636
  %1083 = vmatpush.bf16.msra.mxu0 %v628
  %1084 = vmatpush.bf16.msra.mxu0 %v620
  %1085 = vmatpush.bf16.msra.mxu0 %v612
  %1086 = vmatpush.bf16.msra.mxu0 %v604
  %1087 = vmatpush.bf16.msra.mxu0 %v596
  %1088 = vmatmul.bf16.gmra.mxu0 %v192
  %v1089 = vpop.f32.mrf.mxu0
  %v1090 = vadd.f32 %v156, %v1089
  %v1091 = vpop.f32.mrf.mxu0
  %v1092 = vadd.f32 %v156, %v1091
  %1093 = vmatmul.bf16.gmra.mxu0 %v194
  %v1094 = vpop.f32.mrf.mxu0
  %v1095 = vadd.f32 %v156, %v1094
  %v1096 = vpop.f32.mrf.mxu0
  %v1097 = vadd.f32 %v156, %v1096
  %1098 = vmatmul.bf16.gmra.mxu0 %v196
  %v1099 = vpop.f32.mrf.mxu0
  %v1100 = vadd.f32 %v156, %v1099
  %v1101 = vpop.f32.mrf.mxu0
  %v1102 = vadd.f32 %v156, %v1101
  %1103 = vmatmul.bf16.gmra.mxu0 %v198
  %v1104 = vpop.f32.mrf.mxu0
  %v1105 = vadd.f32 %v156, %v1104
  %v1106 = vpop.f32.mrf.mxu0
  %v1107 = vadd.f32 %v156, %v1106
  %1108 = vdwg.mxu0
  %1109 = vmatpush.bf16.msra.mxu0 %v716
  %1110 = vmatpush.bf16.msra.mxu0 %v708
  %1111 = vmatpush.bf16.msra.mxu0 %v700
  %1112 = vmatpush.bf16.msra.mxu0 %v692
  %1113 = vmatpush.bf16.msra.mxu0 %v684
  %1114 = vmatpush.bf16.msra.mxu0 %v676
  %1115 = vmatpush.bf16.msra.mxu0 %v668
  %1116 = vmatpush.bf16.msra.mxu0 %v660
  %1117 = vmatmul.bf16.gmra.mxu0 %v193
  %v1118 = vpop.f32.mrf.mxu0
  %v1119 = vadd.f32 %v1090, %v1118
  %v1120 = vpop.f32.mrf.mxu0
  %v1121 = vadd.f32 %v1092, %v1120
  %1122 = vmatmul.bf16.gmra.mxu0 %v195
  %v1123 = vpop.f32.mrf.mxu0
  %v1124 = vadd.f32 %v1095, %v1123
  %v1125 = vpop.f32.mrf.mxu0
  %v1126 = vadd.f32 %v1097, %v1125
  %1127 = vmatmul.bf16.gmra.mxu0 %v197
  %v1128 = vpop.f32.mrf.mxu0
  %v1129 = vadd.f32 %v1100, %v1128
  %v1130 = vpop.f32.mrf.mxu0
  %v1131 = vadd.f32 %v1102, %v1130
  %1132 = vmatmul.bf16.gmra.mxu0 %v199
  %v1133 = vpop.f32.mrf.mxu0
  %v1134 = vadd.f32 %v1105, %v1133
  %v1135 = vpop.f32.mrf.mxu0
  %v1136 = vadd.f32 %v1107, %v1135
  %1137 = vdwg.mxu0
  %1138 = vmatpush.bf16.msra.mxu0 %v653
  %1139 = vmatpush.bf16.msra.mxu0 %v645
  %1140 = vmatpush.bf16.msra.mxu0 %v637
  %1141 = vmatpush.bf16.msra.mxu0 %v629
  %1142 = vmatpush.bf16.msra.mxu0 %v621
  %1143 = vmatpush.bf16.msra.mxu0 %v613
  %1144 = vmatpush.bf16.msra.mxu0 %v605
  %1145 = vmatpush.bf16.msra.mxu0 %v597
  %1146 = vmatmul.bf16.gmra.mxu0 %v192
  %v1147 = vpop.f32.mrf.mxu0
  %v1148 = vadd.f32 %v157, %v1147
  %v1149 = vpop.f32.mrf.mxu0
  %v1150 = vadd.f32 %v157, %v1149
  %1151 = vmatmul.bf16.gmra.mxu0 %v194
  %v1152 = vpop.f32.mrf.mxu0
  %v1153 = vadd.f32 %v157, %v1152
  %v1154 = vpop.f32.mrf.mxu0
  %v1155 = vadd.f32 %v157, %v1154
  %1156 = vmatmul.bf16.gmra.mxu0 %v196
  %v1157 = vpop.f32.mrf.mxu0
  %v1158 = vadd.f32 %v157, %v1157
  %v1159 = vpop.f32.mrf.mxu0
  %v1160 = vadd.f32 %v157, %v1159
  %1161 = vmatmul.bf16.gmra.mxu0 %v198
  %v1162 = vpop.f32.mrf.mxu0
  %v1163 = vadd.f32 %v157, %v1162
  %v1164 = vpop.f32.mrf.mxu0
  %v1165 = vadd.f32 %v157, %v1164
  %1166 = vdwg.mxu0
  %1167 = vmatpush.bf16.msra.mxu0 %v717
  %1168 = vmatpush.bf16.msra.mxu0 %v709
  %1169 = vmatpush.bf16.msra.mxu0 %v701
  %1170 = vmatpush.bf16.msra.mxu0 %v693
  %1171 = vmatpush.bf16.msra.mxu0 %v685
  %1172 = vmatpush.bf16.msra.mxu0 %v677
  %1173 = vmatpush.bf16.msra.mxu0 %v669
  %1174 = vmatpush.bf16.msra.mxu0 %v661
  %1175 = vmatmul.bf16.gmra.mxu0 %v193
  %v1176 = vpop.f32.mrf.mxu0
  %v1177 = vadd.f32 %v1148, %v1176
  %v1178 = vpop.f32.mrf.mxu0
  %v1179 = vadd.f32 %v1150, %v1178
  %1180 = vmatmul.bf16.gmra.mxu0 %v195
  %v1181 = vpop.f32.mrf.mxu0
  %v1182 = vadd.f32 %v1153, %v1181
  %v1183 = vpop.f32.mrf.mxu0
  %v1184 = vadd.f32 %v1155, %v1183
  %1185 = vmatmul.bf16.gmra.mxu0 %v197
  %v1186 = vpop.f32.mrf.mxu0
  %v1187 = vadd.f32 %v1158, %v1186
  %v1188 = vpop.f32.mrf.mxu0
  %v1189 = vadd.f32 %v1160, %v1188
  %1190 = vmatmul.bf16.gmra.mxu0 %v199
  %v1191 = vpop.f32.mrf.mxu0
  %v1192 = vadd.f32 %v1163, %v1191
  %v1193 = vpop.f32.mrf.mxu0
  %v1194 = vadd.f32 %v1165, %v1193
  %1195 = vdwg.mxu0
  %1196 = vmatpush.bf16.msra.mxu0 %v654
  %1197 = vmatpush.bf16.msra.mxu0 %v646
  %1198 = vmatpush.bf16.msra.mxu0 %v638
  %1199 = vmatpush.bf16.msra.mxu0 %v630
  %1200 = vmatpush.bf16.msra.mxu0 %v622
  %1201 = vmatpush.bf16.msra.mxu0 %v614
  %1202 = vmatpush.bf16.msra.mxu0 %v606
  %1203 = vmatpush.bf16.msra.mxu0 %v598
  %1204 = vmatmul.bf16.gmra.mxu0 %v192
  %v1205 = vpop.f32.mrf.mxu0
  %v1206 = vadd.f32 %v158, %v1205
  %v1207 = vpop.f32.mrf.mxu0
  %v1208 = vadd.f32 %v158, %v1207
  %1209 = vmatmul.bf16.gmra.mxu0 %v194
  %v1210 = vpop.f32.mrf.mxu0
  %v1211 = vadd.f32 %v158, %v1210
  %v1212 = vpop.f32.mrf.mxu0
  %v1213 = vadd.f32 %v158, %v1212
  %1214 = vmatmul.bf16.gmra.mxu0 %v196
  %v1215 = vpop.f32.mrf.mxu0
  %v1216 = vadd.f32 %v158, %v1215
  %v1217 = vpop.f32.mrf.mxu0
  %v1218 = vadd.f32 %v158, %v1217
  %1219 = vmatmul.bf16.gmra.mxu0 %v198
  %v1220 = vpop.f32.mrf.mxu0
  %v1221 = vadd.f32 %v158, %v1220
  %v1222 = vpop.f32.mrf.mxu0
  %v1223 = vadd.f32 %v158, %v1222
  %1224 = vdwg.mxu0
  %1225 = vmatpush.bf16.msra.mxu0 %v718
  %1226 = vmatpush.bf16.msra.mxu0 %v710
  %1227 = vmatpush.bf16.msra.mxu0 %v702
  %1228 = vmatpush.bf16.msra.mxu0 %v694
  %1229 = vmatpush.bf16.msra.mxu0 %v686
  %1230 = vmatpush.bf16.msra.mxu0 %v678
  %1231 = vmatpush.bf16.msra.mxu0 %v670
  %1232 = vmatpush.bf16.msra.mxu0 %v662
  %1233 = vmatmul.bf16.gmra.mxu0 %v193
  %v1234 = vpop.f32.mrf.mxu0
  %v1235 = vadd.f32 %v1206, %v1234
  %v1236 = vpop.f32.mrf.mxu0
  %v1237 = vadd.f32 %v1208, %v1236
  %1238 = vmatmul.bf16.gmra.mxu0 %v195
  %v1239 = vpop.f32.mrf.mxu0
  %v1240 = vadd.f32 %v1211, %v1239
  %v1241 = vpop.f32.mrf.mxu0
  %v1242 = vadd.f32 %v1213, %v1241
  %1243 = vmatmul.bf16.gmra.mxu0 %v197
  %v1244 = vpop.f32.mrf.mxu0
  %v1245 = vadd.f32 %v1216, %v1244
  %v1246 = vpop.f32.mrf.mxu0
  %v1247 = vadd.f32 %v1218, %v1246
  %1248 = vmatmul.bf16.gmra.mxu0 %v199
  %v1249 = vpop.f32.mrf.mxu0
  %v1250 = vadd.f32 %v1221, %v1249
  %v1251 = vpop.f32.mrf.mxu0
  %v1252 = vadd.f32 %v1223, %v1251
  %1253 = vdwg.mxu0
  %1254 = vmatpush.bf16.msra.mxu0 %v655
  %1255 = vmatpush.bf16.msra.mxu0 %v647
  %1256 = vmatpush.bf16.msra.mxu0 %v639
  %1257 = vmatpush.bf16.msra.mxu0 %v631
  %1258 = vmatpush.bf16.msra.mxu0 %v623
  %1259 = vmatpush.bf16.msra.mxu0 %v615
  %1260 = vmatpush.bf16.msra.mxu0 %v607
  %1261 = vmatpush.bf16.msra.mxu0 %v599
  %1262 = vmatmul.bf16.gmra.mxu0 %v192
  %v1263 = vpop.f32.mrf.mxu0
  %v1264 = vadd.f32 %v159, %v1263
  %v1265 = vpop.f32.mrf.mxu0
  %v1266 = vadd.f32 %v159, %v1265
  %1267 = vmatmul.bf16.gmra.mxu0 %v194
  %v1268 = vpop.f32.mrf.mxu0
  %v1269 = vadd.f32 %v159, %v1268
  %v1270 = vpop.f32.mrf.mxu0
  %v1271 = vadd.f32 %v159, %v1270
  %1272 = vmatmul.bf16.gmra.mxu0 %v196
  %v1273 = vpop.f32.mrf.mxu0
  %v1274 = vadd.f32 %v159, %v1273
  %v1275 = vpop.f32.mrf.mxu0
  %v1276 = vadd.f32 %v159, %v1275
  %1277 = vmatmul.bf16.gmra.mxu0 %v198
  %v1278 = vpop.f32.mrf.mxu0
  %v1279 = vadd.f32 %v159, %v1278
  %v1280 = vpop.f32.mrf.mxu0
  %v1281 = vadd.f32 %v159, %v1280
  %1282 = vdwg.mxu0
  %1283 = vmatpush.bf16.msra.mxu0 %v719
  %1284 = vmatpush.bf16.msra.mxu0 %v711
  %1285 = vmatpush.bf16.msra.mxu0 %v703
  %1286 = vmatpush.bf16.msra.mxu0 %v695
  %1287 = vmatpush.bf16.msra.mxu0 %v687
  %1288 = vmatpush.bf16.msra.mxu0 %v679
  %1289 = vmatpush.bf16.msra.mxu0 %v671
  %1290 = vmatpush.bf16.msra.mxu0 %v663
  %1291 = vmatmul.bf16.gmra.mxu0 %v193
  %v1292 = vpop.f32.mrf.mxu0
  %v1293 = vadd.f32 %v1264, %v1292
  %v1294 = vpop.f32.mrf.mxu0
  %v1295 = vadd.f32 %v1266, %v1294
  %1296 = vmatmul.bf16.gmra.mxu0 %v195
  %v1297 = vpop.f32.mrf.mxu0
  %v1298 = vadd.f32 %v1269, %v1297
  %v1299 = vpop.f32.mrf.mxu0
  %v1300 = vadd.f32 %v1271, %v1299
  %1301 = vmatmul.bf16.gmra.mxu0 %v197
  %v1302 = vpop.f32.mrf.mxu0
  %v1303 = vadd.f32 %v1274, %v1302
  %v1304 = vpop.f32.mrf.mxu0
  %v1305 = vadd.f32 %v1276, %v1304
  %1306 = vmatmul.bf16.gmra.mxu0 %v199
  %v1307 = vpop.f32.mrf.mxu0
  %v1308 = vadd.f32 %v1279, %v1307
  %v1309 = vpop.f32.mrf.mxu0
  %v1310 = vadd.f32 %v1281, %v1309
  %1311 = vdwg.mxu0
  %v1312 = vpack.c.bf16 %v945, %v887
  %v1313 = vpack.c.bf16 %v1061, %v1003
  %v1314 = vpack.c.bf16 %v1177, %v1119
  %v1315 = vpack.c.bf16 %v1293, %v1235
  %v1316 = vpack.c.bf16 %v947, %v889
  %v1317 = vpack.c.bf16 %v1063, %v1005
  %v1318 = vpack.c.bf16 %v1179, %v1121
  %v1319 = vpack.c.bf16 %v1295, %v1237
  %v1320 = vpack.c.bf16 %v950, %v892
  %v1321 = vpack.c.bf16 %v1066, %v1008
  %v1322 = vpack.c.bf16 %v1182, %v1124
  %v1323 = vpack.c.bf16 %v1298, %v1240
  %v1324 = vpack.c.bf16 %v952, %v894
  %v1325 = vpack.c.bf16 %v1068, %v1010
  %v1326 = vpack.c.bf16 %v1184, %v1126
  %v1327 = vpack.c.bf16 %v1300, %v1242
  %v1328 = vpack.c.bf16 %v955, %v897
  %v1329 = vpack.c.bf16 %v1071, %v1013
  %v1330 = vpack.c.bf16 %v1187, %v1129
  %v1331 = vpack.c.bf16 %v1303, %v1245
  %v1332 = vpack.c.bf16 %v957, %v899
  %v1333 = vpack.c.bf16 %v1073, %v1015
  %v1334 = vpack.c.bf16 %v1189, %v1131
  %v1335 = vpack.c.bf16 %v1305, %v1247
  %v1336 = vpack.c.bf16 %v960, %v902
  %v1337 = vpack.c.bf16 %v1076, %v1018
  %v1338 = vpack.c.bf16 %v1192, %v1134
  %v1339 = vpack.c.bf16 %v1308, %v1250
  %v1340 = vpack.c.bf16 %v962, %v904
  %v1341 = vpack.c.bf16 %v1078, %v1020
  %v1342 = vpack.c.bf16 %v1194, %v1136
  %v1343 = vpack.c.bf16 %v1310, %v1252
  %1344 = vst [vmem:[%s3] sm:$0xff] %v1312
  %1345 = vst [vmem:[%s3 + $0x8] sm:$0xff] %v1313
  %1346 = vst [vmem:[%s3 + $0x10] sm:$0xff] %v1314
  %1347 = vst [vmem:[%s3 + $0x18] sm:$0xff] %v1315
  %1348 = vst [vmem:[%s3 + $0x20] sm:$0xff] %v1316
  %1349 = vst [vmem:[%s3 + $0x28] sm:$0xff] %v1317
  %1350 = vst [vmem:[%s3 + $0x30] sm:$0xff] %v1318
  %1351 = vst [vmem:[%s3 + $0x38] sm:$0xff] %v1319
  %1352 = vst [vmem:[%s3 + $0x40] sm:$0xff] %v1320
  %1353 = vst [vmem:[%s3 + $0x48] sm:$0xff] %v1321
  %1354 = vst [vmem:[%s3 + $0x50] sm:$0xff] %v1322
  %1355 = vst [vmem:[%s3 + $0x58] sm:$0xff] %v1323
  %1356 = vst [vmem:[%s3 + $0x60] sm:$0xff] %v1324
  %1357 = vst [vmem:[%s3 + $0x68] sm:$0xff] %v1325
  %1358 = vst [vmem:[%s3 + $0x70] sm:$0xff] %v1326
  %1359 = vst [vmem:[%s3 + $0x78] sm:$0xff] %v1327
  %1360 = vst [vmem:[%s3 + $0x80] sm:$0xff] %v1328
  %1361 = vst [vmem:[%s3 + $0x88] sm:$0xff] %v1329
  %1362 = vst [vmem:[%s3 + $0x90] sm:$0xff] %v1330
  %1363 = vst [vmem:[%s3 + $0x98] sm:$0xff] %v1331
  %1364 = vst [vmem:[%s3 + $0xa0] sm:$0xff] %v1332
  %1365 = vst [vmem:[%s3 + $0xa8] sm:$0xff] %v1333
  %1366 = vst [vmem:[%s3 + $0xb0] sm:$0xff] %v1334
  %1367 = vst [vmem:[%s3 + $0xb8] sm:$0xff] %v1335
  %1368 = vst [vmem:[%s3 + $0xc0] sm:$0xff] %v1336
  %1369 = vst [vmem:[%s3 + $0xc8] sm:$0xff] %v1337
  %1370 = vst [vmem:[%s3 + $0xd0] sm:$0xff] %v1338
  %1371 = vst [vmem:[%s3 + $0xd8] sm:$0xff] %v1339
  %1372 = vst [vmem:[%s3 + $0xe0] sm:$0xff] %v1340
  %1373 = vst [vmem:[%s3 + $0xe8] sm:$0xff] %v1341
  %1374 = vst [vmem:[%s3 + $0xf0] sm:$0xff] %v1342
  %1375 = vst [vmem:[%s3 + $0xf8] sm:$0xff] %v1343
  // Predicated region
  $region14: #{bigram_bert_forward.11} parent=0 // pred_check
    _
  $region15: #{bigram_bert_forward.11} parent=0 // pred_check_branch
    %1377 = sbr.rel (0) target = $region17
  $region16: #{bigram_bert_forward.11} parent=0 // pred_region
    _
  $region17: #{bigram_bert_forward.11} parent=0 // pred_fallthru
    _
  // Predicated region
  $region18: #{bigram_bert_forward.11} parent=0 // pred_check
    _
  $region19: #{bigram_bert_forward.11} parent=0 // pred_check_branch
    %1379 = sbr.rel (0) target = $region21
  $region20: #{bigram_bert_forward.11} parent=0 // pred_region
    _
  $region21: #{bigram_bert_forward.11} parent=0 // pred_fallthru
    _

// kernel: bigram_bert_forward.14
$region0: #{bigram_bert_forward.14}
  #allocation0 [shape = 'u32[]', space=smem, size = 0x4, offset = 0x4, fixed_abs, tag = 'smem constant byte address 0x4 - core index']
  #allocation1 [shape = 'u32[72,128]{1,0:T(1,128)}', space=vmem, size = 0x9000, scoped, tag = 'internal scratch']
  %s0 = inlined_call_operand.vmem [shape: f32[6,4,128], index: 0, kind: input, shape index: {}]
  %s1 = inlined_call_operand.vmem [shape: f32[6,1,128], index: 1, kind: input, shape index: {}]
  %s2 = inlined_call_operand.vmem [shape: f32[4,4], index: 2, kind: input, shape index: {}]
  %s3 = inlined_call_operand.vmem [shape: f32[4,1], index: 3, kind: input, shape index: {}]
  %s4 = inlined_call_operand.vmem [shape: f32[4,1], index: 4, kind: input, shape index: {}]
  %s5 = inlined_call_operand.vmem [shape: f32[1,128], index: 5, kind: output, shape index: {}]
  %s6 = sld [smem:[#allocation0]]
  $region37: #{bigram_bert_forward.14} parent=0
    _
  %s8 = ssub.s32 1, %s6
  %s9 = scalar_select 0, %s8, %s6
  // Predicated region
  $region2: #{bigram_bert_forward.14} parent=0 // pred_check
    _
  $region3: #{bigram_bert_forward.14} parent=0 // pred_check_branch
    %11 = sbr.rel (0) target = $region5
  $region4: #{bigram_bert_forward.14} parent=0 // pred_region
    _
  $region5: #{bigram_bert_forward.14} parent=0 // pred_fallthru
    _
  // Predicated region
  $region6: #{bigram_bert_forward.14} parent=0 // pred_check
    _
  $region7: #{bigram_bert_forward.14} parent=0 // pred_check_branch
    %13 = sbr.rel (0) target = $region9
  $region8: #{bigram_bert_forward.14} parent=0 // pred_region
    _
  $region9: #{bigram_bert_forward.14} parent=0 // pred_fallthru
    _
  // Predicated region
  $region10: #{bigram_bert_forward.14} parent=0 // pred_check
    _
  $region11: #{bigram_bert_forward.14} parent=0 // pred_check_branch
    %15 = sbr.rel (0) target = $region13
  $region12: #{bigram_bert_forward.14} parent=0 // pred_region
    _
  $region13: #{bigram_bert_forward.14} parent=0 // pred_fallthru
    _
  // Predicated region
  $region14: #{bigram_bert_forward.14} parent=0 // pred_check
    _
  $region15: #{bigram_bert_forward.14} parent=0 // pred_check_branch
    %17 = sbr.rel (0) target = $region17
  $region16: #{bigram_bert_forward.14} parent=0 // pred_region
    _
  $region17: #{bigram_bert_forward.14} parent=0 // pred_fallthru
    _
  // Predicated region
  $region18: #{bigram_bert_forward.14} parent=0 // pred_check
    _
  $region19: #{bigram_bert_forward.14} parent=0 // pred_check_branch
    %19 = sbr.rel (0) target = $region21
  $region20: #{bigram_bert_forward.14} parent=0 // pred_region
    _
  $region21: #{bigram_bert_forward.14} parent=0 // pred_fallthru
    _
  %v20 = vld [vmem:[%s3] sm:$0xf]
  %v21 = vld [vmem:[%s0] sm:$0xf]
  %23 = vset.pattern.permute.xlu0 0
  %24 = vperm.xlu0 %23, %v20
  %v25 = vpop.permute.xlu0 %24
  %v27 = vadd.f32 %v25, %v21
  loop: start=1, step=1, limit=6
  $region22: #{bigram_bert_forward.14} parent=0 // loop_pre_header
    _
  $region23: #{bigram_bert_forward.14} parent=0 // loop_header
    %s29 = sphi 1, %s33
    %p30 = scmp.ge.s32.totalorder %s29, 6
    %v34 = vphi %v27, %v154
  $region24: #{bigram_bert_forward.14} parent=0 // loop_header_branch
    %32 = sbr.rel (%p30) target = $region28
  $region25: #{bigram_bert_forward.14} parent=0 // loop_body
    %s35 = scalar_lea.vmem %s1, %s29
    %v36 = vld [vmem:[%s35] sm:$0x1]
    %vm37 = vcmp.gt.f32.partialorder %v36, 0.0
    %v38 = vld [vmem:[%s2] sm:$0xf]
    %40 = vset.pattern.permute.xlu0 0
    %41 = vperm.xlu0 %40, %v38
    %v42 = vpop.permute.xlu0 %41
    %v44 = vadd.f32 %v34, %v42
    %vm45 = vcmask 1043456
    %v46 = vsel %vm45, %v44, -inf
    %v47 = vrot.slane %v46, 4
    %v48 = vmax.f32 %v46, %v47
    %v49 = vrot.slane %v48, 2
    %v50 = vmax.f32 %v48, %v49
    %v51 = vrot.slane %v50, 1
    %v52 = vmax.f32 %v50, %v51
    %v53 = vsub.f32 %v44, %v52
    %v54 = vmul.f32 %v53, 1.442695
    %v55 = vpow.pop %v54
    %v56 = vsel %vm45, %v55, 0.0
    %v57 = vrot.slane %v56, 4
    %v58 = vadd.f32 %v56, %v57
    %v59 = vrot.slane %v58, 2
    %v60 = vadd.f32 %v58, %v59
    %v61 = vrot.slane %v60, 1
    %v62 = vadd.f32 %v60, %v61
    %v63 = vlog2.pop %v62
    %v64 = vmul.f32 %v63, 0.6931472
    %v65 = vadd.f32 %v64, %v52
    %66 = vset.pattern.permute.xlu0 1
    %67 = vperm.xlu0 %66, %v38
    %v68 = vpop.permute.xlu0 %67
    %v70 = vadd.f32 %v34, %v68
    %v71 = vsel %vm45, %v70, -inf
    %v72 = vrot.slane %v71, 4
    %v73 = vmax.f32 %v71, %v72
    %v74 = vrot.slane %v73, 2
    %v75 = vmax.f32 %v73, %v74
    %v76 = vrot.slane %v75, 1
    %v77 = vmax.f32 %v75, %v76
    %v78 = vsub.f32 %v70, %v77
    %v79 = vmul.f32 %v78, 1.442695
    %v80 = vpow.pop %v79
    %v81 = vsel %vm45, %v80, 0.0
    %v82 = vrot.slane %v81, 4
    %v83 = vadd.f32 %v81, %v82
    %v84 = vrot.slane %v83, 2
    %v85 = vadd.f32 %v83, %v84
    %v86 = vrot.slane %v85, 1
    %v87 = vadd.f32 %v85, %v86
    %v88 = vlog2.pop %v87
    %v89 = vmul.f32 %v88, 0.6931472
    %v90 = vadd.f32 %v89, %v77
    %91 = vset.pattern.permute.xlu0 2
    %92 = vperm.xlu0 %91, %v38
    %v93 = vpop.permute.xlu0 %92
    %v95 = vadd.f32 %v34, %v93
    %v96 = vsel %vm45, %v95, -inf
    %v97 = vrot.slane %v96, 4
    %v98 = vmax.f32 %v96, %v97
    %v99 = vrot.slane %v98, 2
    %v100 = vmax.f32 %v98, %v99
    %v101 = vrot.slane %v100, 1
    %v102 = vmax.f32 %v100, %v101
    %v103 = vsub.f32 %v95, %v102
    %v104 = vmul.f32 %v103, 1.442695
    %v105 = vpow.pop %v104
    %v106 = vsel %vm45, %v105, 0.0
    %v107 = vrot.slane %v106, 4
    %v108 = vadd.f32 %v106, %v107
    %v109 = vrot.slane %v108, 2
    %v110 = vadd.f32 %v108, %v109
    %v111 = vrot.slane %v110, 1
    %v112 = vadd.f32 %v110, %v111
    %v113 = vlog2.pop %v112
    %v114 = vmul.f32 %v113, 0.6931472
    %v115 = vadd.f32 %v114, %v102
    %116 = vset.pattern.permute.xlu0 3
    %117 = vperm.xlu0 %116, %v38
    %v118 = vpop.permute.xlu0 %117
    %v120 = vadd.f32 %v34, %v118
    %v121 = vsel %vm45, %v120, -inf
    %v122 = vrot.slane %v121, 4
    %v123 = vmax.f32 %v121, %v122
    %v124 = vrot.slane %v123, 2
    %v125 = vmax.f32 %v123, %v124
    %v126 = vrot.slane %v125, 1
    %v127 = vmax.f32 %v125, %v126
    %v128 = vsub.f32 %v120, %v127
    %v129 = vmul.f32 %v128, 1.442695
    %v130 = vpow.pop %v129
    %v131 = vsel %vm45, %v130, 0.0
    %v132 = vrot.slane %v131, 4
    %v133 = vadd.f32 %v131, %v132
    %v134 = vrot.slane %v133, 2
    %v135 = vadd.f32 %v133, %v134
    %v136 = vrot.slane %v135, 1
    %v137 = vadd.f32 %v135, %v136
    %v138 = vlog2.pop %v137
    %v139 = vmul.f32 %v138, 0.6931472
    %v140 = vadd.f32 %v139, %v127
    %vm141 = vcmask 1040384
    %v142 = vsel %vm141, %v65, %v90
    %vm143 = vcmask 1041408
    %v144 = vsel %vm143, %v142, %v115
    %vm145 = vcmask 1042432
    %v146 = vsel %vm145, %v144, %v140
    %s147 = smul.u32 %s29, 4
    %s148 = scalar_lea.vmem %s0, %s147
    %v149 = vld [vmem:[%s148] sm:$0xf]
    %v150 = vadd.f32 %v146, %v149
    %v151 = vsel %vm37, 1, 0
    %v152 = vperm.slane %v151, 0
    %vm153 = vcmp.eq.s32.totalorder %v152, 1
    %v154 = vsel %vm153, %v150, %v34
  $region26: #{bigram_bert_forward.14} parent=0 // loop_footer
    %s33 = sadd.s32 1, %s29
  $region27: #{bigram_bert_forward.14} parent=0 // loop_footer_branch
    %28 = sbr.rel target = $region23
  $region28: #{bigram_bert_forward.14} parent=0 // loop_exit
    _
  %v155 = vld [vmem:[%s4] sm:$0xf]
  %157 = vset.pattern.permute.xlu0 0
  %158 = vperm.xlu0 %157, %v155
  %v159 = vpop.permute.xlu0 %158
  %v161 = vadd.f32 %v34, %v159
  %vm162 = vcmask 1043456
  %v163 = vsel %vm162, %v161, -inf
  %v164 = vrot.slane %v163, 4
  %v165 = vmax.f32 %v163, %v164
  %v166 = vrot.slane %v165, 2
  %v167 = vmax.f32 %v165, %v166
  %v168 = vrot.slane %v167, 1
  %v169 = vmax.f32 %v167, %v168
  %v170 = vsub.f32 %v161, %v169
  %v171 = vmul.f32 %v170, 1.442695
  %v172 = vpow.pop %v171
  %v173 = vsel %vm162, %v172, 0.0
  %v174 = vrot.slane %v173, 4
  %v175 = vadd.f32 %v173, %v174
  %v176 = vrot.slane %v175, 2
  %v177 = vadd.f32 %v175, %v176
  %v178 = vrot.slane %v177, 1
  %v179 = vadd.f32 %v177, %v178
  %v180 = vlog2.pop %v179
  %v181 = vmul.f32 %v180, 0.6931472
  %v182 = vadd.f32 %v181, %v169
  %183 = vst [vmem:[%s5] sm:$0x1] %v182
  // Predicated region
  $region29: #{bigram_bert_forward.14} parent=0 // pred_check
    _
  $region30: #{bigram_bert_forward.14} parent=0 // pred_check_branch
    %185 = sbr.rel (0) target = $region32
  $region31: #{bigram_bert_forward.14} parent=0 // pred_region
    _
  $region32: #{bigram_bert_forward.14} parent=0 // pred_fallthru
    _
  // Predicated region
  $region33: #{bigram_bert_forward.14} parent=0 // pred_check
    _
  $region34: #{bigram_bert_forward.14} parent=0 // pred_check_branch
    %187 = sbr.rel (0) target = $region36
  $region35: #{bigram_bert_forward.14} parent=0 // pred_region
    _
  $region36: #{bigram_bert_forward.14} parent=0 // pred_fallthru
    _

// kernel: bigram_bert_forward.15
$region0: #{bigram_bert_forward.15}
  #allocation0 [shape = 'u32[]', space=smem, size = 0x4, offset = 0x4, fixed_abs, tag = 'smem constant byte address 0x4 - core index']
  #allocation1 [shape = 'u32[72,128]{1,0:T(1,128)}', space=vmem, size = 0x9000, scoped, tag = 'internal scratch']
  %s0 = inlined_call_operand.vmem [shape: f32[6,2,128], index: 0, kind: input, shape index: {}]
  %s1 = inlined_call_operand.vmem [shape: f32[6,1,128], index: 1, kind: input, shape index: {}]
  %s2 = inlined_call_operand.vmem [shape: f32[2,2], index: 2, kind: input, shape index: {}]
  %s3 = inlined_call_operand.vmem [shape: f32[2,1], index: 3, kind: input, shape index: {}]
  %s4 = inlined_call_operand.vmem [shape: f32[2,1], index: 4, kind: input, shape index: {}]
  %s5 = inlined_call_operand.vmem [shape: f32[1,128], index: 5, kind: output, shape index: {}]
  %s6 = sld [smem:[#allocation0]]
  $region37: #{bigram_bert_forward.15} parent=0
    _
  %s8 = ssub.s32 1, %s6
  %s9 = scalar_select 0, %s8, %s6
  // Predicated region
  $region2: #{bigram_bert_forward.15} parent=0 // pred_check
    _
  $region3: #{bigram_bert_forward.15} parent=0 // pred_check_branch
    %11 = sbr.rel (0) target = $region5
  $region4: #{bigram_bert_forward.15} parent=0 // pred_region
    _
  $region5: #{bigram_bert_forward.15} parent=0 // pred_fallthru
    _
  // Predicated region
  $region6: #{bigram_bert_forward.15} parent=0 // pred_check
    _
  $region7: #{bigram_bert_forward.15} parent=0 // pred_check_branch
    %13 = sbr.rel (0) target = $region9
  $region8: #{bigram_bert_forward.15} parent=0 // pred_region
    _
  $region9: #{bigram_bert_forward.15} parent=0 // pred_fallthru
    _
  // Predicated region
  $region10: #{bigram_bert_forward.15} parent=0 // pred_check
    _
  $region11: #{bigram_bert_forward.15} parent=0 // pred_check_branch
    %15 = sbr.rel (0) target = $region13
  $region12: #{bigram_bert_forward.15} parent=0 // pred_region
    _
  $region13: #{bigram_bert_forward.15} parent=0 // pred_fallthru
    _
  // Predicated region
  $region14: #{bigram_bert_forward.15} parent=0 // pred_check
    _
  $region15: #{bigram_bert_forward.15} parent=0 // pred_check_branch
    %17 = sbr.rel (0) target = $region17
  $region16: #{bigram_bert_forward.15} parent=0 // pred_region
    _
  $region17: #{bigram_bert_forward.15} parent=0 // pred_fallthru
    _
  // Predicated region
  $region18: #{bigram_bert_forward.15} parent=0 // pred_check
    _
  $region19: #{bigram_bert_forward.15} parent=0 // pred_check_branch
    %19 = sbr.rel (0) target = $region21
  $region20: #{bigram_bert_forward.15} parent=0 // pred_region
    _
  $region21: #{bigram_bert_forward.15} parent=0 // pred_fallthru
    _
  %v20 = vld [vmem:[%s3] sm:$0x3]
  %v21 = vld [vmem:[%s0] sm:$0x3]
  %23 = vset.pattern.permute.xlu0 0
  %24 = vperm.xlu0 %23, %v20
  %v25 = vpop.permute.xlu0 %24
  %v27 = vadd.f32 %v25, %v21
  loop: start=1, step=1, limit=6
  $region22: #{bigram_bert_forward.15} parent=0 // loop_pre_header
    _
  $region23: #{bigram_bert_forward.15} parent=0 // loop_header
    %s29 = sphi 1, %s33
    %p30 = scmp.ge.s32.totalorder %s29, 6
    %v34 = vphi %v27, %v100
  $region24: #{bigram_bert_forward.15} parent=0 // loop_header_branch
    %32 = sbr.rel (%p30) target = $region28
  $region25: #{bigram_bert_forward.15} parent=0 // loop_body
    %s35 = scalar_lea.vmem %s1, %s29
    %v36 = vld [vmem:[%s35] sm:$0x1]
    %vm37 = vcmp.gt.f32.partialorder %v36, 0.0
    %v38 = vld [vmem:[%s2] sm:$0x3]
    %40 = vset.pattern.permute.xlu0 0
    %41 = vperm.xlu0 %40, %v38
    %v42 = vpop.permute.xlu0 %41
    %v44 = vadd.f32 %v34, %v42
    %vm45 = vcmask 1041408
    %v46 = vsel %vm45, %v44, -inf
    %v47 = vrot.slane %v46, 4
    %v48 = vmax.f32 %v46, %v47
    %v49 = vrot.slane %v48, 2
    %v50 = vmax.f32 %v48, %v49
    %v51 = vrot.slane %v50, 1
    %v52 = vmax.f32 %v50, %v51
    %v53 = vsub.f32 %v44, %v52
    %v54 = vmul.f32 %v53, 1.442695
    %v55 = vpow.pop %v54
    %v56 = vsel %vm45, %v55, 0.0
    %v57 = vrot.slane %v56, 4
    %v58 = vadd.f32 %v56, %v57
    %v59 = vrot.slane %v58, 2
    %v60 = vadd.f32 %v58, %v59
    %v61 = vrot.slane %v60, 1
    %v62 = vadd.f32 %v60, %v61
    %v63 = vlog2.pop %v62
    %v64 = vmul.f32 %v63, 0.6931472
    %v65 = vadd.f32 %v64, %v52
    %66 = vset.pattern.permute.xlu0 1
    %67 = vperm.xlu0 %66, %v38
    %v68 = vpop.permute.xlu0 %67
    %v70 = vadd.f32 %v34, %v68
    %v71 = vsel %vm45, %v70, -inf
    %v72 = vrot.slane %v71, 4
    %v73 = vmax.f32 %v71, %v72
    %v74 = vrot.slane %v73, 2
    %v75 = vmax.f32 %v73, %v74
    %v76 = vrot.slane %v75, 1
    %v77 = vmax.f32 %v75, %v76
    %v78 = vsub.f32 %v70, %v77
    %v79 = vmul.f32 %v78, 1.442695
    %v80 = vpow.pop %v79
    %v81 = vsel %vm45, %v80, 0.0
    %v82 = vrot.slane %v81, 4
    %v83 = vadd.f32 %v81, %v82
    %v84 = vrot.slane %v83, 2
    %v85 = vadd.f32 %v83, %v84
    %v86 = vrot.slane %v85, 1
    %v87 = vadd.f32 %v85, %v86
    %v88 = vlog2.pop %v87
    %v89 = vmul.f32 %v88, 0.6931472
    %v90 = vadd.f32 %v89, %v77
    %vm91 = vcmask 1040384
    %v92 = vsel %vm91, %v65, %v90
    %s93 = smul.u32 %s29, 2
    %s94 = scalar_lea.vmem %s0, %s93
    %v95 = vld [vmem:[%s94] sm:$0x3]
    %v96 = vadd.f32 %v92, %v95
    %v97 = vsel %vm37, 1, 0
    %v98 = vperm.slane %v97, 0
    %vm99 = vcmp.eq.s32.totalorder %v98, 1
    %v100 = vsel %vm99, %v96, %v34
  $region26: #{bigram_bert_forward.15} parent=0 // loop_footer
    %s33 = sadd.s32 1, %s29
  $region27: #{bigram_bert_forward.15} parent=0 // loop_footer_branch
    %28 = sbr.rel target = $region23
  $region28: #{bigram_bert_forward.15} parent=0 // loop_exit
    _
  %v101 = vld [vmem:[%s4] sm:$0x3]
  %103 = vset.pattern.permute.xlu0 0
  %104 = vperm.xlu0 %103, %v101
  %v105 = vpop.permute.xlu0 %104
  %v107 = vadd.f32 %v34, %v105
  %vm108 = vcmask 1041408
  %v109 = vsel %vm108, %v107, -inf
  %v110 = vrot.slane %v109, 4
  %v111 = vmax.f32 %v109, %v110
  %v112 = vrot.slane %v111, 2
  %v113 = vmax.f32 %v111, %v112
  %v114 = vrot.slane %v113, 1
  %v115 = vmax.f32 %v113, %v114
  %v116 = vsub.f32 %v107, %v115
  %v117 = vmul.f32 %v116, 1.442695
  %v118 = vpow.pop %v117
  %v119 = vsel %vm108, %v118, 0.0
  %v120 = vrot.slane %v119, 4
  %v121 = vadd.f32 %v119, %v120
  %v122 = vrot.slane %v121, 2
  %v123 = vadd.f32 %v121, %v122
  %v124 = vrot.slane %v123, 1
  %v125 = vadd.f32 %v123, %v124
  %v126 = vlog2.pop %v125
  %v127 = vmul.f32 %v126, 0.6931472
  %v128 = vadd.f32 %v127, %v115
  %129 = vst [vmem:[%s5] sm:$0x1] %v128
  // Predicated region
  $region29: #{bigram_bert_forward.15} parent=0 // pred_check
    _
  $region30: #{bigram_bert_forward.15} parent=0 // pred_check_branch
    %131 = sbr.rel (0) target = $region32
  $region31: #{bigram_bert_forward.15} parent=0 // pred_region
    _
  $region32: #{bigram_bert_forward.15} parent=0 // pred_fallthru
    _
  // Predicated region
  $region33: #{bigram_bert_forward.15} parent=0 // pred_check
    _
  $region34: #{bigram_bert_forward.15} parent=0 // pred_check_branch
    %133 = sbr.rel (0) target = $region36
  $region35: #{bigram_bert_forward.15} parent=0 // pred_region
    _
  $region36: #{bigram_bert_forward.15} parent=0 // pred_fallthru
    _

</llo_original>
